<compile_context>
chip_gen: v7x
topology: tpu7x:2x2x1
jax: 0.10.0
libtpu: 0.0.40
codegen_flags: <defaults>
</compile_context>

<pallas_src>
import functools

import jax
import jax.numpy as jnp
from jax.experimental import pallas as pl
from jax.experimental.pallas import tpu as pltpu

EPSILON = float(jnp.finfo(jnp.float32).eps)  # == torch.finfo(torch.float32).eps

# Storage / MXU dtype for A and the A @ V^T matmul.  bf16 is MXU-native on
# v5e/v6e/v7x and halves A's HBM/VMEM footprint; accumulation stays f32 via
# preferred_element_type.  Set to jnp.float32 for bit-closer reference parity.
A_DTYPE = jnp.bfloat16

# Keep per-kernel VMEM use under the *smallest* default scoped-VMEM limit
# across v5e (16 MiB) / v6e (32 MiB) / v7x (32 MiB) so no flag tuning needed.
_VMEM_BUDGET = 12 * 1024 * 1024


# ---------------------------------------------------------------------------
# Kernel 1: graph construction (hoisted out of the layer loop, computed once).
#   A[p, q]    = exp(-((lx_p-lx_q)^2 + (ly_p-ly_q)^2) * inv_s1
#                   -(sum_t |I[t,p]-I[t,q]|)^2        * inv_s2)
#   row_sum[p] = sum_q A[p, q]        (the diagonal of D)
# Tiled over P rows; the grid axis is "parallel" (independent row slabs).
# ---------------------------------------------------------------------------
def _graph_kernel(scale_ref, locs_r_ref, iT_r_ref, locs_c_ref, i_c_ref,
                  a_ref, rs_ref):
    inv_s1 = scale_ref[0]
    inv_s2 = scale_ref[1]
    num_t = i_c_ref.shape[0]

    lx_r = locs_r_ref[:, 0:1]            # (TP, 1)  row coords (sublane axis)
    ly_r = locs_r_ref[:, 1:2]
    lx_c = locs_c_ref[0:1, :]            # (1, P)   col coords (lane axis)
    ly_c = locs_c_ref[1:2, :]
    xd = lx_r - lx_c                     # (TP, P)
    yd = ly_r - ly_c
    t_dis = xd * xd + yd * yd            # |.|**2 without the generic pow

    # Replace the (T, P, P) broadcast with a static loop over T keeping one
    # (TP, P) accumulator live (T is small and static: unrolled).
    # TODO(synk): for very large T (hundreds of frames) switch to a chunked
    # fori_loop to bound compile time; not needed for the shapes tested here.
    z = jnp.zeros(a_ref.shape, jnp.float32)
    for t in range(num_t):
        z = z + jnp.abs(iT_r_ref[:, t:t + 1] - i_c_ref[t:t + 1, :])

    a = jnp.exp(-(t_dis * inv_s1 + (z * z) * inv_s2))
    a_ref[...] = a.astype(a_ref.dtype)
    # Fused row-sum (diag of D) while the A tile is still in registers/VMEM.
    rs_ref[...] = jnp.sum(a, axis=1, keepdims=True)      # (TP, 1), f32


def _build_graph(locs, i_mat, inv_s1, inv_s2, tp):
    p = locs.shape[0]
    t = i_mat.shape[0]
    locs_rows = locs.astype(jnp.float32)            # (P, 2)  sublane-side copy
    locs_cols = locs_rows.T                         # (2, P)  lane-side copy
    i_cols = i_mat.astype(jnp.float32)              # (T, P)
    i_rows = i_cols.T                               # (P, T)
    scales = jnp.stack([inv_s1, inv_s2]).astype(jnp.float32)

    a, row_sum = pl.pallas_call(
        _graph_kernel,
        out_shape=(jax.ShapeDtypeStruct((p, p), A_DTYPE),
                   jax.ShapeDtypeStruct((p, 1), jnp.float32)),
        grid=(p // tp,),
        in_specs=[
            pl.BlockSpec(memory_space=pltpu.MemorySpace.SMEM),   # inv_s1, inv_s2
            pl.BlockSpec((tp, 2), lambda i: (i, 0)),             # locs row slab
            pl.BlockSpec((tp, t), lambda i: (i, 0)),             # I^T row slab
            pl.BlockSpec((2, p), lambda i: (0, 0)),              # locs (lane side)
            pl.BlockSpec((t, p), lambda i: (0, 0)),              # I    (lane side)
        ],
        out_specs=(pl.BlockSpec((tp, p), lambda i: (i, 0)),      # A row slab
                   pl.BlockSpec((tp, 1), lambda i: (i, 0))),     # row sums
        compiler_params=pltpu.CompilerParams(
            dimension_semantics=("parallel",)),
    )(scales, locs_rows, i_rows, locs_cols, i_cols)
    # (P, 1) -> (1, P) is a free row-major reshape; consumed lane-dense below.
    return a, row_sum.reshape(1, p)


# ---------------------------------------------------------------------------
# Kernel 2: the full n_layers multiplicative-update loop.
#   grid = (n_layers, P // TP); V is kept resident in two VMEM ping-pong
#   scratch buffers across the whole grid; per tile (lane-dense (K, TP)):
#     num = lin_X + l1 * (V @ A)[:, tile] + l2 * P
#     den = |Gt @ V[:, tile] + bias + l1 * row_sum * V[:, tile]
#            + l2 * P * colsum_K(V[:, tile])| + eps
#     V'  = V * num / den ;  V' = V' / (colsum_K(V') + eps)
# ---------------------------------------------------------------------------
def _layer_kernel(const_ref, lin_x_ref, gt_ref, bias_ref, rs_ref, a_ref,
                  v0_ref, vout_ref, v_scr0, v_scr1):
    layer = pl.program_id(0)
    j = pl.program_id(1)
    l1 = const_ref[0]
    l2p = const_ref[1]                    # lambda2 * P  (== l2 * Jm @ J^T)
    eps = const_ref[2]

    tp = vout_ref.shape[1]
    col0 = pl.multiple_of(j * tp, tp)

    # Seed the resident V buffer once, before the first update.
    @pl.when(jnp.logical_and(layer == 0, j == 0))
    def _():
        v_scr0[...] = v0_ref[...]

    def update(src_ref, dst_ref):
        v_old = src_ref[...]                                    # (K, P)
        v_old_t = src_ref[:, pl.ds(col0, tp)]                   # (K, TP)
        # numerator:  lin_X + l1 * (V @ A)[:, tile] + l2 * P
        av = jnp.dot(v_old.astype(a_ref.dtype), a_ref[...],
                     preferred_element_type=jnp.float32)        # (K, TP)
        num = lin_x_ref[...] + l1 * av + l2p
        # denominator: |Gt@V + bias + l1*row_sum*V + l2*P*colsum(V)| + eps
        gv = jnp.dot(gt_ref[...], v_old_t,
                     preferred_element_type=jnp.float32)        # (K, TP)
        colsum_old = jnp.sum(v_old_t, axis=0, keepdims=True)    # (1, TP)
        den = jnp.abs(gv + bias_ref[...] + l1 * rs_ref[...] * v_old_t
                      + l2p * colsum_old) + eps
        v_new = v_old_t * num * pl.reciprocal(den, approx=True)
        # column-wise normalisation  V / (sum_k V + eps)
        colsum_new = jnp.sum(v_new, axis=0, keepdims=True)
        v_new = v_new * pl.reciprocal(colsum_new + eps, approx=True)
        dst_ref[:, pl.ds(col0, tp)] = v_new
        vout_ref[...] = v_new

    # Ping-pong so every tile of layer L reads the COMPLETE V of layer L-1.
    @pl.when(layer % 2 == 0)
    def _():
        update(v_scr0, v_scr1)

    @pl.when(layer % 2 == 1)
    def _():
        update(v_scr1, v_scr0)


def _run_layers(n_layers, l1, l2, lin_x, gt, bias_col, row_sum, a, v0, tp):
    k, p = v0.shape
    n_tiles = p // tp
    consts = jnp.stack([l1, l2 * p, jnp.float32(EPSILON)]).astype(jnp.float32)

    return pl.pallas_call(
        _layer_kernel,
        out_shape=jax.ShapeDtypeStruct((k, p), jnp.float32),
        grid=(n_layers, n_tiles),
        in_specs=[
            pl.BlockSpec(memory_space=pltpu.MemorySpace.SMEM),    # l1, l2*P, eps
            pl.BlockSpec((k, tp), lambda n, j: (0, j)),           # lin_X tile
            pl.BlockSpec((k, k), lambda n, j: (0, 0)),            # Gt (resident)
            pl.BlockSpec((k, 1), lambda n, j: (0, 0)),            # bias (resident)
            pl.BlockSpec((1, tp), lambda n, j: (0, j)),           # row_sum tile
            # A column tile.  When tp == p the block index is constant, so A is
            # DMA'd from HBM exactly once and stays resident for all layers.
            pl.BlockSpec((p, tp), lambda n, j: (0, j)),
            pl.BlockSpec((k, p), lambda n, j: (0, 0)),            # V_init (resident)
        ],
        out_specs=pl.BlockSpec((k, tp), lambda n, j: (0, j)),
        scratch_shapes=[pltpu.VMEM((k, p), jnp.float32),          # V ping
                        pltpu.VMEM((k, p), jnp.float32)],         # V pong
        # Both axes sequential: the layer axis carries V through VMEM scratch,
        # so it must not be re-ordered or sharded across cores.
        compiler_params=pltpu.CompilerParams(
            dimension_semantics=("arbitrary", "arbitrary")),
    )(consts, lin_x, gt, bias_col, row_sum, a, v0)


def _pick_tile(p, tile_p, bytes_per_col, fixed_bytes=0):
    """Largest valid P-tile that keeps the kernel's VMEM under budget.

    bytes_per_col: approximate VMEM bytes consumed per unit of the tile width
    (double-buffered blocks + in-kernel f32 temporaries).  Preferring tp == p
    when it fits makes constant-index-map inputs (notably A in the layer loop)
    fully resident, eliminating their per-layer HBM re-reads.
    """
    if tile_p is not None:
        tile_p = int(tile_p)
        if p % tile_p != 0 or (tile_p != p and tile_p % 128 != 0):
            raise ValueError("tile_p must divide P and be a multiple of 128 "
                             "(or equal P)")
        return tile_p
    avail = max(_VMEM_BUDGET - fixed_bytes, 0)
    if avail >= p * bytes_per_col:
        return p                          # everything resident, fetched once
    max_tp = avail // max(bytes_per_col, 1)
    cand = (min(max_tp, p) // 128) * 128
    while cand >= 128:
        if p % cand == 0:
            return cand
        cand -= 128
    # Nothing under budget divides P: fall back to the minimum viable tile.
    return 128 if p % 128 == 0 else p


def supernet_forward(n_layers, params, locs, x, v, i_mat, w, bias, *,
                     tile_p=None):
    """SuperNet.forward: n_layers identical SuperLayer updates (shared params).

    Returns (V, b) exactly like the PyTorch module.
    """
    # TODO(synk): requires_grad toggling / torch.mps.empty_cache / device
    # moves have no inference-time effect and are intentionally omitted.
    x = jnp.asarray(x, jnp.float32)
    w = jnp.asarray(w, jnp.float32)
    bias = jnp.asarray(bias, jnp.float32)
    v = jnp.asarray(v, jnp.float32)
    locs = jnp.asarray(locs, jnp.float32)
    i_mat = jnp.asarray(i_mat, jnp.float32)
    params = jnp.asarray(params, jnp.float32)

    _, p = x.shape
    k = w.shape[0]
    eps = jnp.float32(EPSILON)
    l1, l2, s1, s2 = params[0], params[1], params[2], params[3]

    # Graph kernel: ~2 bf16 output buffers + ~3 f32 (tp, P) temporaries.
    tg = _pick_tile(p, tile_p, bytes_per_col=16 * p)
    # Layer kernel: double-buffered bf16 A column tile dominates; small fixed
    # cost for the resident V copies (input + two ping-pong scratch buffers).
    tl = _pick_tile(p, tile_p, bytes_per_col=6 * p, fixed_bytes=20 * k * p)

    # ---- layer-invariant quantities, hoisted and computed once (plain XLA) --
    b_mat = w.T + bias[None, :]                  # (F, K) == B1_fc(eye(F))
    lin_x = w @ x + bias[:, None]                # (K, P) == B1_fc(X^T)^T
    gt = w @ b_mat                               # (K, K) == (b^T W^T)^T
    bias_col = bias.reshape(k, 1)

    a, row_sum = _build_graph(locs, i_mat,
                              1.0 / (s1 * s1 + eps),
                              1.0 / (s2 * s2 + eps), tg)

    v_out = _run_layers(n_layers, l1, l2, lin_x, gt, bias_col, row_sum, a, v,
                        tl)
    return v_out, b_mat


# ------------------------------ pure-JAX reference --------------------------
def super_layer_ref(params, locs, i_mat, x, w, bias, v):
    l1, l2, s1, s2 = [params[idx] for idx in range(4)]
    eps = jnp.float32(EPSILON)
    lx = locs[:, 0]
    ly = locs[:, 1]
    x_difs = lx[:, None] - lx[None, :]
    y_difs = ly[:, None] - ly[None, :]
    t_dis = jnp.abs(x_difs) ** 2 + jnp.abs(y_difs) ** 2
    z_difs = jnp.sum(jnp.abs(i_mat[:, :, None] - i_mat[:, None, :]), axis=0)
    A = jnp.exp(-(t_dis / (s1 ** 2 + eps) + z_difs ** 2 / (s2 ** 2 + eps)))
    D = jnp.diag(jnp.sum(A, axis=1))
    F, P = x.shape
    K = w.shape[0]
    Jm = jnp.ones((P, P), jnp.float32)
    J = jnp.ones((K, P), jnp.float32)
    E = jnp.ones((P, K), jnp.float32) * eps
    b = jnp.eye(F, dtype=jnp.float32) @ w.T + bias
    num = x.T @ w.T + bias + l1 * (A @ v.T) + l2 * (Jm @ J.T)
    den = jnp.abs((v.T @ b.T) @ w.T + bias + l1 * (D @ v.T)
                  + l2 * ((v.T @ J) @ J.T)) + E
    delta = num / den
    Vn = (v.T * delta).T
    Vn = Vn / (jnp.sum(Vn, axis=0) + jnp.ones(P, jnp.float32) * eps)
    return Vn, b


def supernet_ref(n_layers, params, locs, x, v, i_mat, w, bias):
    b = None
    for _ in range(n_layers):
        v, b = super_layer_ref(params, locs, i_mat, x, w, bias, v)
    return v, b


if __name__ == "__main__":
    # Small shapes consistent with the module (original F=10431, K=5).
    F, P, K, T = 32, 256, 5, 8
    n_layers = 3

    key = jax.random.PRNGKey(0)
    k_x, k_v, k_i, k_loc, k_w, k_b = jax.random.split(key, 6)

    x = jax.random.uniform(k_x, (F, P), jnp.float32)             # data matrix
    v = jax.random.uniform(k_v, (K, P), jnp.float32, 0.1, 1.0)   # initial V
    i_mat = jax.random.uniform(k_i, (T, P), jnp.float32)         # activity
    locs = jax.random.uniform(k_loc, (P, 2), jnp.float32, 0.0, 10.0)

    # B1_fc Linear(F, K) parameters, PyTorch-style uniform init bounds.
    bound = 1.0 / (F ** 0.5)
    w = jax.random.uniform(k_w, (K, F), jnp.float32, -bound, bound)
    bias = jax.random.uniform(k_b, (K,), jnp.float32, -bound, bound)

    # lambda1, lambda2, sigma1, sigma2 exactly as in SuperNet.__init__.
    params = jnp.array([32.0, 18.0, 22.0, 8.0], jnp.float32)

    v_ref, b_ref = supernet_ref(n_layers, params, locs, x, v, i_mat, w, bias)

    # Exercise both the explicitly tiled path (2 column tiles / layer) and the
    # auto-picked fully-resident path (A fetched from HBM once for all layers).
    for tp in (128, None):
        run = jax.jit(functools.partial(supernet_forward, n_layers, tile_p=tp))
        v_out, b_out = run(params, locs, x, v, i_mat, w, bias)
        v_out = jax.block_until_ready(v_out)
        b_out = jax.block_until_ready(b_out)
        assert v_out.shape == (K, P) and b_out.shape == (F, K)
        # bf16 A @ V on the MXU + EUP approx reciprocals => slightly looser rtol.
        assert jnp.allclose(v_out, v_ref, rtol=1e-2, atol=1e-4), (
            tp, float(jnp.max(jnp.abs(v_out - v_ref))))
        assert jnp.allclose(b_out, b_ref, rtol=1e-5, atol=1e-6)

    print("KERNEL_OK")
</pallas_src>

<mosaic_0001>
module attributes {stable_mosaic.version = 11 : i64} {
  func.func @_graph_kernel(%arg0: i32, %arg1: memref<2xf32, #tpu.memory_space<smem>>, %arg2: memref<128x2xf32, #tpu.memory_space<vmem>>, %arg3: memref<128x8xf32, #tpu.memory_space<vmem>>, %arg4: memref<2x256xf32, #tpu.memory_space<vmem>>, %arg5: memref<8x256xf32, #tpu.memory_space<vmem>>, %arg6: memref<128x256xbf16, #tpu.memory_space<vmem>>, %arg7: memref<128x1xf32, #tpu.memory_space<vmem>>) attributes {dimension_semantics = [#tpu.dimension_semantics<parallel>], iteration_bounds = array<i64: 2>, scalar_prefetch = 0 : i64, scratch_operands = 0 : i64, tpu.core_type = #tpu.core_type<tc>, window_params = [{transform_indices = @transform_0, window_bounds = array<i64: 2>}, {transform_indices = @transform_1, window_bounds = array<i64: 128, 2>}, {transform_indices = @transform_2, window_bounds = array<i64: 128, 8>}, {pipeline_mode = #tpu.pipeline_mode<synchronous>, transform_indices = @transform_3, window_bounds = array<i64: 2, 256>}, {pipeline_mode = #tpu.pipeline_mode<synchronous>, transform_indices = @transform_4, window_bounds = array<i64: 8, 256>}, {transform_indices = @transform_5, window_bounds = array<i64: 128, 256>}, {transform_indices = @transform_6, window_bounds = array<i64: 128, 1>}]} {
    %c0 = arith.constant 0 : index
    %0 = memref.load %arg1[%c0] : memref<2xf32, #tpu.memory_space<smem>>
    %c1 = arith.constant 1 : index
    %1 = memref.load %arg1[%c1] : memref<2xf32, #tpu.memory_space<smem>>
    %c0_0 = arith.constant 0 : index
    %c0_1 = arith.constant 0 : index
    %2 = vector.load %arg2[%c0_0, %c0_1] : memref<128x2xf32, #tpu.memory_space<vmem>>, vector<128x1xf32>
    %c0_2 = arith.constant 0 : index
    %c1_3 = arith.constant 1 : index
    %3 = vector.load %arg2[%c0_2, %c1_3] : memref<128x2xf32, #tpu.memory_space<vmem>>, vector<128x1xf32>
    %c0_4 = arith.constant 0 : index
    %c0_5 = arith.constant 0 : index
    %4 = vector.load %arg4[%c0_4, %c0_5] : memref<2x256xf32, #tpu.memory_space<vmem>>, vector<1x256xf32>
    %c1_6 = arith.constant 1 : index
    %c0_7 = arith.constant 0 : index
    %5 = vector.load %arg4[%c1_6, %c0_7] : memref<2x256xf32, #tpu.memory_space<vmem>>, vector<1x256xf32>
    %6 = vector.broadcast %2 : vector<128x1xf32> to vector<128x256xf32>
    %7 = vector.broadcast %4 : vector<1x256xf32> to vector<128x256xf32>
    %8 = arith.subf %6, %7 : vector<128x256xf32>
    %9 = vector.broadcast %3 : vector<128x1xf32> to vector<128x256xf32>
    %10 = vector.broadcast %5 : vector<1x256xf32> to vector<128x256xf32>
    %11 = arith.subf %9, %10 : vector<128x256xf32>
    %12 = arith.mulf %8, %8 : vector<128x256xf32>
    %13 = arith.mulf %11, %11 : vector<128x256xf32>
    %14 = arith.addf %12, %13 : vector<128x256xf32>
    %cst = arith.constant 0.000000e+00 : f32
    %15 = vector.broadcast %cst : f32 to vector<128x256xf32>
    %c0_8 = arith.constant 0 : index
    %c0_9 = arith.constant 0 : index
    %16 = vector.load %arg3[%c0_8, %c0_9] : memref<128x8xf32, #tpu.memory_space<vmem>>, vector<128x1xf32>
    %c0_10 = arith.constant 0 : index
    %c0_11 = arith.constant 0 : index
    %17 = vector.load %arg5[%c0_10, %c0_11] : memref<8x256xf32, #tpu.memory_space<vmem>>, vector<1x256xf32>
    %18 = vector.broadcast %16 : vector<128x1xf32> to vector<128x256xf32>
    %19 = vector.broadcast %17 : vector<1x256xf32> to vector<128x256xf32>
    %20 = arith.subf %18, %19 : vector<128x256xf32>
    %21 = math.absf %20 : vector<128x256xf32>
    %22 = arith.addf %15, %21 : vector<128x256xf32>
    %c0_12 = arith.constant 0 : index
    %c1_13 = arith.constant 1 : index
    %23 = vector.load %arg3[%c0_12, %c1_13] : memref<128x8xf32, #tpu.memory_space<vmem>>, vector<128x1xf32>
    %c1_14 = arith.constant 1 : index
    %c0_15 = arith.constant 0 : index
    %24 = vector.load %arg5[%c1_14, %c0_15] : memref<8x256xf32, #tpu.memory_space<vmem>>, vector<1x256xf32>
    %25 = vector.broadcast %23 : vector<128x1xf32> to vector<128x256xf32>
    %26 = vector.broadcast %24 : vector<1x256xf32> to vector<128x256xf32>
    %27 = arith.subf %25, %26 : vector<128x256xf32>
    %28 = math.absf %27 : vector<128x256xf32>
    %29 = arith.addf %22, %28 : vector<128x256xf32>
    %c0_16 = arith.constant 0 : index
    %c2 = arith.constant 2 : index
    %30 = vector.load %arg3[%c0_16, %c2] : memref<128x8xf32, #tpu.memory_space<vmem>>, vector<128x1xf32>
    %c2_17 = arith.constant 2 : index
    %c0_18 = arith.constant 0 : index
    %31 = vector.load %arg5[%c2_17, %c0_18] : memref<8x256xf32, #tpu.memory_space<vmem>>, vector<1x256xf32>
    %32 = vector.broadcast %30 : vector<128x1xf32> to vector<128x256xf32>
    %33 = vector.broadcast %31 : vector<1x256xf32> to vector<128x256xf32>
    %34 = arith.subf %32, %33 : vector<128x256xf32>
    %35 = math.absf %34 : vector<128x256xf32>
    %36 = arith.addf %29, %35 : vector<128x256xf32>
    %c0_19 = arith.constant 0 : index
    %c3 = arith.constant 3 : index
    %37 = vector.load %arg3[%c0_19, %c3] : memref<128x8xf32, #tpu.memory_space<vmem>>, vector<128x1xf32>
    %c3_20 = arith.constant 3 : index
    %c0_21 = arith.constant 0 : index
    %38 = vector.load %arg5[%c3_20, %c0_21] : memref<8x256xf32, #tpu.memory_space<vmem>>, vector<1x256xf32>
    %39 = vector.broadcast %37 : vector<128x1xf32> to vector<128x256xf32>
    %40 = vector.broadcast %38 : vector<1x256xf32> to vector<128x256xf32>
    %41 = arith.subf %39, %40 : vector<128x256xf32>
    %42 = math.absf %41 : vector<128x256xf32>
    %43 = arith.addf %36, %42 : vector<128x256xf32>
    %c0_22 = arith.constant 0 : index
    %c4 = arith.constant 4 : index
    %44 = vector.load %arg3[%c0_22, %c4] : memref<128x8xf32, #tpu.memory_space<vmem>>, vector<128x1xf32>
    %c4_23 = arith.constant 4 : index
    %c0_24 = arith.constant 0 : index
    %45 = vector.load %arg5[%c4_23, %c0_24] : memref<8x256xf32, #tpu.memory_space<vmem>>, vector<1x256xf32>
    %46 = vector.broadcast %44 : vector<128x1xf32> to vector<128x256xf32>
    %47 = vector.broadcast %45 : vector<1x256xf32> to vector<128x256xf32>
    %48 = arith.subf %46, %47 : vector<128x256xf32>
    %49 = math.absf %48 : vector<128x256xf32>
    %50 = arith.addf %43, %49 : vector<128x256xf32>
    %c0_25 = arith.constant 0 : index
    %c5 = arith.constant 5 : index
    %51 = vector.load %arg3[%c0_25, %c5] : memref<128x8xf32, #tpu.memory_space<vmem>>, vector<128x1xf32>
    %c5_26 = arith.constant 5 : index
    %c0_27 = arith.constant 0 : index
    %52 = vector.load %arg5[%c5_26, %c0_27] : memref<8x256xf32, #tpu.memory_space<vmem>>, vector<1x256xf32>
    %53 = vector.broadcast %51 : vector<128x1xf32> to vector<128x256xf32>
    %54 = vector.broadcast %52 : vector<1x256xf32> to vector<128x256xf32>
    %55 = arith.subf %53, %54 : vector<128x256xf32>
    %56 = math.absf %55 : vector<128x256xf32>
    %57 = arith.addf %50, %56 : vector<128x256xf32>
    %c0_28 = arith.constant 0 : index
    %c6 = arith.constant 6 : index
    %58 = vector.load %arg3[%c0_28, %c6] : memref<128x8xf32, #tpu.memory_space<vmem>>, vector<128x1xf32>
    %c6_29 = arith.constant 6 : index
    %c0_30 = arith.constant 0 : index
    %59 = vector.load %arg5[%c6_29, %c0_30] : memref<8x256xf32, #tpu.memory_space<vmem>>, vector<1x256xf32>
    %60 = vector.broadcast %58 : vector<128x1xf32> to vector<128x256xf32>
    %61 = vector.broadcast %59 : vector<1x256xf32> to vector<128x256xf32>
    %62 = arith.subf %60, %61 : vector<128x256xf32>
    %63 = math.absf %62 : vector<128x256xf32>
    %64 = arith.addf %57, %63 : vector<128x256xf32>
    %c0_31 = arith.constant 0 : index
    %c7 = arith.constant 7 : index
    %65 = vector.load %arg3[%c0_31, %c7] : memref<128x8xf32, #tpu.memory_space<vmem>>, vector<128x1xf32>
    %c7_32 = arith.constant 7 : index
    %c0_33 = arith.constant 0 : index
    %66 = vector.load %arg5[%c7_32, %c0_33] : memref<8x256xf32, #tpu.memory_space<vmem>>, vector<1x256xf32>
    %67 = vector.broadcast %65 : vector<128x1xf32> to vector<128x256xf32>
    %68 = vector.broadcast %66 : vector<1x256xf32> to vector<128x256xf32>
    %69 = arith.subf %67, %68 : vector<128x256xf32>
    %70 = math.absf %69 : vector<128x256xf32>
    %71 = arith.addf %64, %70 : vector<128x256xf32>
    %72 = vector.broadcast %0 : f32 to vector<128x256xf32>
    %73 = arith.mulf %14, %72 : vector<128x256xf32>
    %74 = arith.mulf %71, %71 : vector<128x256xf32>
    %75 = vector.broadcast %1 : f32 to vector<128x256xf32>
    %76 = arith.mulf %74, %75 : vector<128x256xf32>
    %77 = arith.addf %73, %76 : vector<128x256xf32>
    %cst_34 = arith.constant 0.000000e+00 : f32
    %78 = vector.broadcast %cst_34 : f32 to vector<128x256xf32>
    %79 = arith.subf %78, %77 : vector<128x256xf32>
    %80 = math.exp %79 : vector<128x256xf32>
    %81 = arith.truncf %80 : vector<128x256xf32> to vector<128x256xbf16>
    %c0_35 = arith.constant 0 : index
    %c0_36 = arith.constant 0 : index
    %82 = vector.load %arg6[%c0_35, %c0_36] : memref<128x256xbf16, #tpu.memory_space<vmem>>, vector<128x256xbf16>
    tpu.vector_store %arg6[%c0_35, %c0_36], %81 {strides = array<i32>} : memref<128x256xbf16, #tpu.memory_space<vmem>>, vector<128x256xbf16>,
    %cst_37 = arith.constant dense<0.000000e+00> : vector<128xf32>
    %83 = vector.multi_reduction <add>, %80, %cst_37 [1] : vector<128x256xf32> to vector<128xf32>
    %84 = vector.shape_cast %83 : vector<128xf32> to vector<128x1xf32>
    %c0_38 = arith.constant 0 : index
    %c0_39 = arith.constant 0 : index
    %85 = vector.load %arg7[%c0_38, %c0_39] : memref<128x1xf32, #tpu.memory_space<vmem>>, vector<128x1xf32>
    tpu.vector_store %arg7[%c0_38, %c0_39], %84 {strides = array<i32>} : memref<128x1xf32, #tpu.memory_space<vmem>>, vector<128x1xf32>,
    return
  }
  func.func @transform_0(%arg0: i32) -> i32 {
    %c0_i32 = arith.constant 0 : i32
    %c0_i32_0 = arith.constant 0 : i32
    return %c0_i32 : i32
  }
  func.func @transform_1(%arg0: i32) -> (i32, i32) {
    %c0_i32 = arith.constant 0 : i32
    %c0_i32_0 = arith.constant 0 : i32
    return %arg0, %c0_i32 : i32, i32
  }
  func.func @transform_2(%arg0: i32) -> (i32, i32) {
    %c0_i32 = arith.constant 0 : i32
    %c0_i32_0 = arith.constant 0 : i32
    return %arg0, %c0_i32 : i32, i32
  }
  func.func @transform_3(%arg0: i32) -> (i32, i32) {
    %c0_i32 = arith.constant 0 : i32
    %c0_i32_0 = arith.constant 0 : i32
    %c0_i32_1 = arith.constant 0 : i32
    return %c0_i32, %c0_i32_0 : i32, i32
  }
  func.func @transform_4(%arg0: i32) -> (i32, i32) {
    %c0_i32 = arith.constant 0 : i32
    %c0_i32_0 = arith.constant 0 : i32
    %c0_i32_1 = arith.constant 0 : i32
    return %c0_i32, %c0_i32_0 : i32, i32
  }
  func.func @transform_5(%arg0: i32) -> (i32, i32) {
    %c0_i32 = arith.constant 0 : i32
    %c0_i32_0 = arith.constant 0 : i32
    return %arg0, %c0_i32 : i32, i32
  }
  func.func @transform_6(%arg0: i32) -> (i32, i32) {
    %c0_i32 = arith.constant 0 : i32
    %c0_i32_0 = arith.constant 0 : i32
    return %arg0, %c0_i32 : i32, i32
  }
}

module attributes {stable_mosaic.version = 11 : i64} {
  func.func @_layer_kernel(%arg0: i32, %arg1: i32, %arg2: memref<3xf32, #tpu.memory_space<smem>>, %arg3: memref<5x128xf32, #tpu.memory_space<vmem>>, %arg4: memref<5x5xf32, #tpu.memory_space<vmem>>, %arg5: memref<5x1xf32, #tpu.memory_space<vmem>>, %arg6: memref<1x128xf32, #tpu.memory_space<vmem>>, %arg7: memref<256x128xbf16, #tpu.memory_space<vmem>>, %arg8: memref<5x256xf32, #tpu.memory_space<vmem>>, %arg9: memref<5x128xf32, #tpu.memory_space<vmem>>, %arg10: memref<5x256xf32, #tpu.memory_space<vmem>>, %arg11: memref<5x256xf32, #tpu.memory_space<vmem>>) attributes {dimension_semantics = [#tpu.dimension_semantics<arbitrary>, #tpu.dimension_semantics<arbitrary>], iteration_bounds = array<i64: 3, 2>, scalar_prefetch = 0 : i64, scratch_operands = 2 : i64, tpu.core_type = #tpu.core_type<tc>, window_params = [{transform_indices = @transform_0, window_bounds = array<i64: 3>}, {transform_indices = @transform_1, window_bounds = array<i64: 5, 128>}, {pipeline_mode = #tpu.pipeline_mode<synchronous>, transform_indices = @transform_2, window_bounds = array<i64: 5, 5>}, {pipeline_mode = #tpu.pipeline_mode<synchronous>, transform_indices = @transform_3, window_bounds = array<i64: 5, 1>}, {transform_indices = @transform_4, window_bounds = array<i64: 1, 128>}, {transform_indices = @transform_5, window_bounds = array<i64: 256, 128>}, {pipeline_mode = #tpu.pipeline_mode<synchronous>, transform_indices = @transform_6, window_bounds = array<i64: 5, 256>}, {transform_indices = @transform_7, window_bounds = array<i64: 5, 128>}]} {
    %c0 = arith.constant 0 : index
    %0 = memref.load %arg2[%c0] : memref<3xf32, #tpu.memory_space<smem>>
    %c1 = arith.constant 1 : index
    %1 = memref.load %arg2[%c1] : memref<3xf32, #tpu.memory_space<smem>>
    %c2 = arith.constant 2 : index
    %2 = memref.load %arg2[%c2] : memref<3xf32, #tpu.memory_space<smem>>
    %c128_i32 = arith.constant 128 : i32
    %3 = arith.muli %arg1, %c128_i32 : i32
    %4 = tpu.assume_multiple %3, 128 : i32
    %c0_i32 = arith.constant 0 : i32
    %5 = arith.cmpi eq, %arg0, %c0_i32 : i32
    %c0_i32_0 = arith.constant 0 : i32
    %6 = arith.cmpi eq, %arg1, %c0_i32_0 : i32
    %7 = arith.andi %5, %6 : i1
    %8 = arith.extui %7 : i1 to i32
    %c0_i32_1 = arith.constant 0 : i32
    %9 = arith.cmpi ne, %8, %c0_i32_1 : i32
    scf.if %9 {
      %c0_16 = arith.constant 0 : index
      %c0_17 = arith.constant 0 : index
      %36 = vector.load %arg8[%c0_16, %c0_17] : memref<5x256xf32, #tpu.memory_space<vmem>>, vector<5x256xf32>
      %c0_18 = arith.constant 0 : index
      %c0_19 = arith.constant 0 : index
      %37 = vector.load %arg10[%c0_18, %c0_19] : memref<5x256xf32, #tpu.memory_space<vmem>>, vector<5x256xf32>
      tpu.vector_store %arg10[%c0_18, %c0_19], %36 {strides = array<i32>} : memref<5x256xf32, #tpu.memory_space<vmem>>, vector<5x256xf32>,
    } else {
    }
    %c2_i32 = arith.constant 2 : i32
    %c0_i32_2 = arith.constant 0 : i32
    %10 = arith.cmpi eq, %c2_i32, %c0_i32_2 : i32
    %c1_i32 = arith.constant 1 : i32
    %11 = arith.select %10, %c1_i32, %c2_i32 : i32
    %12 = arith.remsi %arg0, %11 : i32
    %c0_i32_3 = arith.constant 0 : i32
    %13 = arith.cmpi ne, %12, %c0_i32_3 : i32
    %c0_i32_4 = arith.constant 0 : i32
    %14 = arith.cmpi slt, %12, %c0_i32_4 : i32
    %c0_i32_5 = arith.constant 0 : i32
    %15 = arith.cmpi slt, %11, %c0_i32_5 : i32
    %16 = arith.xori %14, %15 : i1
    %17 = arith.andi %16, %13 : i1
    %18 = arith.addi %12, %11 : i32
    %19 = arith.select %17, %18, %12 : i32
    %c0_i32_6 = arith.constant 0 : i32
    %20 = arith.cmpi eq, %19, %c0_i32_6 : i32
    %21 = arith.extui %20 : i1 to i32
    %c0_i32_7 = arith.constant 0 : i32
    %22 = arith.cmpi ne, %21, %c0_i32_7 : i32
    scf.if %22 {
      %c0_16 = arith.constant 0 : index
      %c0_17 = arith.constant 0 : index
      %36 = vector.load %arg10[%c0_16, %c0_17] : memref<5x256xf32, #tpu.memory_space<vmem>>, vector<5x256xf32>
      %c0_18 = arith.constant 0 : index
      %37 = arith.index_cast %4 : i32 to index
      %38 = vector.load %arg10[%c0_18, %37] : memref<5x256xf32, #tpu.memory_space<vmem>>, vector<5x128xf32>
      %39 = arith.truncf %36 : vector<5x256xf32> to vector<5x256xbf16>
      %c0_19 = arith.constant 0 : index
      %c0_20 = arith.constant 0 : index
      %40 = vector.load %arg7[%c0_19, %c0_20] : memref<256x128xbf16, #tpu.memory_space<vmem>>, vector<256x128xbf16>
      %cst = arith.constant dense<0.000000e+00> : vector<5x128xf32>
      %41 = tpu.matmul %39, %40, %cst {dimension_numbers = #tpu.dot_dimension_numbers<[1], [0], [0], [1], [0, 0, 1, 1], [], []>} : vector<5x256xbf16>, vector<256x128xbf16>, vector<5x128xf32> -> vector<5x128xf32>
      %c0_21 = arith.constant 0 : index
      %c0_22 = arith.constant 0 : index
      %42 = vector.load %arg3[%c0_21, %c0_22] : memref<5x128xf32, #tpu.memory_space<vmem>>, vector<5x128xf32>
      %43 = vector.broadcast %0 : f32 to vector<5x128xf32>
      %44 = arith.mulf %43, %41 : vector<5x128xf32>
      %45 = arith.addf %42, %44 : vector<5x128xf32>
      %46 = vector.broadcast %1 : f32 to vector<5x128xf32>
      %47 = arith.addf %45, %46 : vector<5x128xf32>
      %c0_23 = arith.constant 0 : index
      %c0_24 = arith.constant 0 : index
      %48 = vector.load %arg4[%c0_23, %c0_24] : memref<5x5xf32, #tpu.memory_space<vmem>>, vector<5x5xf32>
      %cst_25 = arith.constant dense<0.000000e+00> : vector<5x128xf32>
      %49 = tpu.matmul %48, %38, %cst_25 {dimension_numbers = #tpu.dot_dimension_numbers<[1], [0], [0], [1], [0, 0, 1, 1], [], []>} : vector<5x5xf32>, vector<5x128xf32>, vector<5x128xf32> -> vector<5x128xf32>
      %cst_26 = arith.constant dense<0.000000e+00> : vector<128xf32>
      %50 = vector.multi_reduction <add>, %38, %cst_26 [0] : vector<5x128xf32> to vector<128xf32>
      %51 = vector.shape_cast %50 : vector<128xf32> to vector<1x128xf32>
      %c0_27 = arith.constant 0 : index
      %c0_28 = arith.constant 0 : index
      %52 = vector.load %arg5[%c0_27, %c0_28] : memref<5x1xf32, #tpu.memory_space<vmem>>, vector<5x1xf32>
      %53 = vector.broadcast %52 : vector<5x1xf32> to vector<5x128xf32>
      %54 = arith.addf %49, %53 : vector<5x128xf32>
      %c0_29 = arith.constant 0 : index
      %c0_30 = arith.constant 0 : index
      %55 = vector.load %arg6[%c0_29, %c0_30] : memref<1x128xf32, #tpu.memory_space<vmem>>, vector<1x128xf32>
      %56 = vector.broadcast %0 : f32 to vector<1x128xf32>
      %57 = arith.mulf %56, %55 : vector<1x128xf32>
      %58 = vector.broadcast %57 : vector<1x128xf32> to vector<5x128xf32>
      %59 = arith.mulf %58, %38 : vector<5x128xf32>
      %60 = arith.addf %54, %59 : vector<5x128xf32>
      %61 = vector.broadcast %1 : f32 to vector<1x128xf32>
      %62 = arith.mulf %61, %51 : vector<1x128xf32>
      %63 = vector.broadcast %62 : vector<1x128xf32> to vector<5x128xf32>
      %64 = arith.addf %60, %63 : vector<5x128xf32>
      %65 = math.absf %64 : vector<5x128xf32>
      %66 = vector.broadcast %2 : f32 to vector<5x128xf32>
      %67 = arith.addf %65, %66 : vector<5x128xf32>
      %68 = arith.mulf %38, %47 : vector<5x128xf32>
      %69 = tpu.reciprocal %67 {approx = true} : vector<5x128xf32> -> vector<5x128xf32>
      %70 = arith.mulf %68, %69 : vector<5x128xf32>
      %cst_31 = arith.constant dense<0.000000e+00> : vector<128xf32>
      %71 = vector.multi_reduction <add>, %70, %cst_31 [0] : vector<5x128xf32> to vector<128xf32>
      %72 = vector.shape_cast %71 : vector<128xf32> to vector<1x128xf32>
      %73 = vector.broadcast %2 : f32 to vector<1x128xf32>
      %74 = arith.addf %72, %73 : vector<1x128xf32>
      %75 = tpu.reciprocal %74 {approx = true} : vector<1x128xf32> -> vector<1x128xf32>
      %76 = vector.broadcast %75 : vector<1x128xf32> to vector<5x128xf32>
      %77 = arith.mulf %70, %76 : vector<5x128xf32>
      %c0_32 = arith.constant 0 : index
      %78 = arith.index_cast %4 : i32 to index
      %79 = vector.load %arg11[%c0_32, %78] : memref<5x256xf32, #tpu.memory_space<vmem>>, vector<5x128xf32>
      tpu.vector_store %arg11[%c0_32, %78], %77 {strides = array<i32>} : memref<5x256xf32, #tpu.memory_space<vmem>>, vector<5x128xf32>,
      %c0_33 = arith.constant 0 : index
      %c0_34 = arith.constant 0 : index
      %80 = vector.load %arg9[%c0_33, %c0_34] : memref<5x128xf32, #tpu.memory_space<vmem>>, vector<5x128xf32>
      tpu.vector_store %arg9[%c0_33, %c0_34], %77 {strides = array<i32>} : memref<5x128xf32, #tpu.memory_space<vmem>>, vector<5x128xf32>,
    } else {
    }
    %c2_i32_8 = arith.constant 2 : i32
    %c0_i32_9 = arith.constant 0 : i32
    %23 = arith.cmpi eq, %c2_i32_8, %c0_i32_9 : i32
    %c1_i32_10 = arith.constant 1 : i32
    %24 = arith.select %23, %c1_i32_10, %c2_i32_8 : i32
    %25 = arith.remsi %arg0, %24 : i32
    %c0_i32_11 = arith.constant 0 : i32
    %26 = arith.cmpi ne, %25, %c0_i32_11 : i32
    %c0_i32_12 = arith.constant 0 : i32
    %27 = arith.cmpi slt, %25, %c0_i32_12 : i32
    %c0_i32_13 = arith.constant 0 : i32
    %28 = arith.cmpi slt, %24, %c0_i32_13 : i32
    %29 = arith.xori %27, %28 : i1
    %30 = arith.andi %29, %26 : i1
    %31 = arith.addi %25, %24 : i32
    %32 = arith.select %30, %31, %25 : i32
    %c1_i32_14 = arith.constant 1 : i32
    %33 = arith.cmpi eq, %32, %c1_i32_14 : i32
    %34 = arith.extui %33 : i1 to i32
    %c0_i32_15 = arith.constant 0 : i32
    %35 = arith.cmpi ne, %34, %c0_i32_15 : i32
    scf.if %35 {
      %c0_16 = arith.constant 0 : index
      %c0_17 = arith.constant 0 : index
      %36 = vector.load %arg11[%c0_16, %c0_17] : memref<5x256xf32, #tpu.memory_space<vmem>>, vector<5x256xf32>
      %c0_18 = arith.constant 0 : index
      %37 = arith.index_cast %4 : i32 to index
      %38 = vector.load %arg11[%c0_18, %37] : memref<5x256xf32, #tpu.memory_space<vmem>>, vector<5x128xf32>
      %39 = arith.truncf %36 : vector<5x256xf32> to vector<5x256xbf16>
      %c0_19 = arith.constant 0 : index
      %c0_20 = arith.constant 0 : index
      %40 = vector.load %arg7[%c0_19, %c0_20] : memref<256x128xbf16, #tpu.memory_space<vmem>>, vector<256x128xbf16>
      %cst = arith.constant dense<0.000000e+00> : vector<5x128xf32>
      %41 = tpu.matmul %39, %40, %cst {dimension_numbers = #tpu.dot_dimension_numbers<[1], [0], [0], [1], [0, 0, 1, 1], [], []>} : vector<5x256xbf16>, vector<256x128xbf16>, vector<5x128xf32> -> vector<5x128xf32>
      %c0_21 = arith.constant 0 : index
      %c0_22 = arith.constant 0 : index
      %42 = vector.load %arg3[%c0_21, %c0_22] : memref<5x128xf32, #tpu.memory_space<vmem>>, vector<5x128xf32>
      %43 = vector.broadcast %0 : f32 to vector<5x128xf32>
      %44 = arith.mulf %43, %41 : vector<5x128xf32>
      %45 = arith.addf %42, %44 : vector<5x128xf32>
      %46 = vector.broadcast %1 : f32 to vector<5x128xf32>
      %47 = arith.addf %45, %46 : vector<5x128xf32>
      %c0_23 = arith.constant 0 : index
      %c0_24 = arith.constant 0 : index
      %48 = vector.load %arg4[%c0_23, %c0_24] : memref<5x5xf32, #tpu.memory_space<vmem>>, vector<5x5xf32>
      %cst_25 = arith.constant dense<0.000000e+00> : vector<5x128xf32>
      %49 = tpu.matmul %48, %38, %cst_25 {dimension_numbers = #tpu.dot_dimension_numbers<[1], [0], [0], [1], [0, 0, 1, 1], [], []>} : vector<5x5xf32>, vector<5x128xf32>, vector<5x128xf32> -> vector<5x128xf32>
      %cst_26 = arith.constant dense<0.000000e+00> : vector<128xf32>
      %50 = vector.multi_reduction <add>, %38, %cst_26 [0] : vector<5x128xf32> to vector<128xf32>
      %51 = vector.shape_cast %50 : vector<128xf32> to vector<1x128xf32>
      %c0_27 = arith.constant 0 : index
      %c0_28 = arith.constant 0 : index
      %52 = vector.load %arg5[%c0_27, %c0_28] : memref<5x1xf32, #tpu.memory_space<vmem>>, vector<5x1xf32>
      %53 = vector.broadcast %52 : vector<5x1xf32> to vector<5x128xf32>
      %54 = arith.addf %49, %53 : vector<5x128xf32>
      %c0_29 = arith.constant 0 : index
      %c0_30 = arith.constant 0 : index
      %55 = vector.load %arg6[%c0_29, %c0_30] : memref<1x128xf32, #tpu.memory_space<vmem>>, vector<1x128xf32>
      %56 = vector.broadcast %0 : f32 to vector<1x128xf32>
      %57 = arith.mulf %56, %55 : vector<1x128xf32>
      %58 = vector.broadcast %57 : vector<1x128xf32> to vector<5x128xf32>
      %59 = arith.mulf %58, %38 : vector<5x128xf32>
      %60 = arith.addf %54, %59 : vector<5x128xf32>
      %61 = vector.broadcast %1 : f32 to vector<1x128xf32>
      %62 = arith.mulf %61, %51 : vector<1x128xf32>
      %63 = vector.broadcast %62 : vector<1x128xf32> to vector<5x128xf32>
      %64 = arith.addf %60, %63 : vector<5x128xf32>
      %65 = math.absf %64 : vector<5x128xf32>
      %66 = vector.broadcast %2 : f32 to vector<5x128xf32>
      %67 = arith.addf %65, %66 : vector<5x128xf32>
      %68 = arith.mulf %38, %47 : vector<5x128xf32>
      %69 = tpu.reciprocal %67 {approx = true} : vector<5x128xf32> -> vector<5x128xf32>
      %70 = arith.mulf %68, %69 : vector<5x128xf32>
      %cst_31 = arith.constant dense<0.000000e+00> : vector<128xf32>
      %71 = vector.multi_reduction <add>, %70, %cst_31 [0] : vector<5x128xf32> to vector<128xf32>
      %72 = vector.shape_cast %71 : vector<128xf32> to vector<1x128xf32>
      %73 = vector.broadcast %2 : f32 to vector<1x128xf32>
      %74 = arith.addf %72, %73 : vector<1x128xf32>
      %75 = tpu.reciprocal %74 {approx = true} : vector<1x128xf32> -> vector<1x128xf32>
      %76 = vector.broadcast %75 : vector<1x128xf32> to vector<5x128xf32>
      %77 = arith.mulf %70, %76 : vector<5x128xf32>
      %c0_32 = arith.constant 0 : index
      %78 = arith.index_cast %4 : i32 to index
      %79 = vector.load %arg10[%c0_32, %78] : memref<5x256xf32, #tpu.memory_space<vmem>>, vector<5x128xf32>
      tpu.vector_store %arg10[%c0_32, %78], %77 {strides = array<i32>} : memref<5x256xf32, #tpu.memory_space<vmem>>, vector<5x128xf32>,
      %c0_33 = arith.constant 0 : index
      %c0_34 = arith.constant 0 : index
      %80 = vector.load %arg9[%c0_33, %c0_34] : memref<5x128xf32, #tpu.memory_space<vmem>>, vector<5x128xf32>
      tpu.vector_store %arg9[%c0_33, %c0_34], %77 {strides = array<i32>} : memref<5x128xf32, #tpu.memory_space<vmem>>, vector<5x128xf32>,
    } else {
    }
    return
  }
  func.func @transform_0(%arg0: i32, %arg1: i32) -> i32 {
    %c0_i32 = arith.constant 0 : i32
    %c0_i32_0 = arith.constant 0 : i32
    return %c0_i32 : i32
  }
  func.func @transform_1(%arg0: i32, %arg1: i32) -> (i32, i32) {
    %c0_i32 = arith.constant 0 : i32
    %c0_i32_0 = arith.constant 0 : i32
    return %c0_i32, %arg1 : i32, i32
  }
  func.func @transform_2(%arg0: i32, %arg1: i32) -> (i32, i32) {
    %c0_i32 = arith.constant 0 : i32
    %c0_i32_0 = arith.constant 0 : i32
    %c0_i32_1 = arith.constant 0 : i32
    return %c0_i32, %c0_i32_0 : i32, i32
  }
  func.func @transform_3(%arg0: i32, %arg1: i32) -> (i32, i32) {
    %c0_i32 = arith.constant 0 : i32
    %c0_i32_0 = arith.constant 0 : i32
    %c0_i32_1 = arith.constant 0 : i32
    return %c0_i32, %c0_i32_0 : i32, i32
  }
  func.func @transform_4(%arg0: i32, %arg1: i32) -> (i32, i32) {
    %c0_i32 = arith.constant 0 : i32
    %c0_i32_0 = arith.constant 0 : i32
    return %c0_i32, %arg1 : i32, i32
  }
  func.func @transform_5(%arg0: i32, %arg1: i32) -> (i32, i32) {
    %c0_i32 = arith.constant 0 : i32
    %c0_i32_0 = arith.constant 0 : i32
    return %c0_i32, %arg1 : i32, i32
  }
  func.func @transform_6(%arg0: i32, %arg1: i32) -> (i32, i32) {
    %c0_i32 = arith.constant 0 : i32
    %c0_i32_0 = arith.constant 0 : i32
    %c0_i32_1 = arith.constant 0 : i32
    return %c0_i32, %c0_i32_0 : i32, i32
  }
  func.func @transform_7(%arg0: i32, %arg1: i32) -> (i32, i32) {
    %c0_i32 = arith.constant 0 : i32
    %c0_i32_0 = arith.constant 0 : i32
    return %c0_i32, %arg1 : i32, i32
  }
}

</mosaic_0001>

<llo_original>
// kernel: supernet_forward.3
$region0: #{supernet_forward.3}
  #allocation0 [shape = 'u32[]', space=smem, size = 0x4, offset = 0x4, fixed_abs, tag = 'smem constant byte address 0x4 - core index']
  #allocation1 [shape = 'u32[144,128]{1,0:T(1,128)}', space=vmem, size = 0x12000, scoped, tag = 'internal scratch']
  #allocation2 [shape = 'f32[5,256]{1,0:T(8,128)}', space=vmem, size = 0x2000, scoped, tag = 'scratch operand']
  #allocation3 [shape = 'f32[5,256]{1,0:T(8,128)}', space=vmem, size = 0x2000, scoped, tag = 'scratch operand']
  %s0 = inlined_call_operand.vmem [shape: f32[3], index: 0, kind: input, shape index: {}]
  %s1 = inlined_call_operand.vmem [shape: f32[5,256], index: 1, kind: input, shape index: {}]
  %s2 = inlined_call_operand.vmem [shape: f32[5,5], index: 2, kind: input, shape index: {}]
  %s3 = inlined_call_operand.vmem [shape: f32[5,1], index: 3, kind: input, shape index: {}]
  %s4 = inlined_call_operand.vmem [shape: f32[1,256], index: 4, kind: input, shape index: {}]
  %s5 = inlined_call_operand.vmem [shape: bf16[256,256], index: 5, kind: input, shape index: {}]
  %s6 = inlined_call_operand.vmem [shape: f32[5,256], index: 6, kind: input, shape index: {}]
  %s7 = inlined_call_operand.hbm [shape: f32[5,256], index: 7, kind: output, shape index: {}]
  %s8 = sld [smem:[#allocation0]]
  $region118: #{supernet_forward.3} parent=0
    _
  %s10 = ssub.s32 1, %s8
  %s11 = scalar_select 0, %s10, %s8
  $region1: #{supernet_forward.3} parent=0
    #allocation4 [shape = 'u8[512]{0}', space=smem, size = 0x200, scoped, tag = 'input window, operand 0, single buffered']
    #allocation5 [shape = 's32[2]{0}', space=sflag, size = 0x8, scoped, tag = 'scoped memory for supernet_forward.3']
    #allocation6 [shape = 's32[2]{0}', space=sflag, size = 0x8, scoped, tag = 'scoped memory for supernet_forward.3']
    #allocation7 [shape = 'u8[131072]{0}', space=vmem, size = 0x20000, scoped, tag = 'input window, operand 5']
    #allocation8 [shape = 'u8[8192]{0}', space=vmem, size = 0x2000, scoped, tag = 'output window, operand 0']
    %12 = vsyncpa [#allocation6], 0
    %13 = vsyncpa [#allocation5], 0
    %s14 = scalar_lea.sflag [#allocation5], 1
    %15 = vsyncpa %s14, 0
    loop: start=0, step=1, limit=8
    $region2: #{supernet_forward.3} parent=1 // loop_pre_header
      _
    $region3: #{supernet_forward.3} parent=1 // loop_header
      %s17 = sphi 0, %s21
      %p18 = scmp.ge.s32.totalorder %s17, 8
      %s24 = sphi 0, %s36
      %s25 = sphi 0, %s32
      %s26 = sphi 0, %s24
      %s27 = sphi 0, %s25
      %s28 = sphi 0, %s26
      %s29 = sphi 0, %s27
      %s37 = sphi 0, %s37
      %s39 = sphi 0, %s37
      %s40 = sphi 0, %s39
      %s54 = sphi 0, %s40
      %s60 = sphi 0, %s62
      %s63 = sphi 0, %s60
      %s64 = sphi 0, %s63
      %s80 = sphi 0, %s64
      %s84 = sphi 0, %s84
      %s86 = sphi 0, %s84
      %s87 = sphi 0, %s86
      %s101 = sphi 0, %s87
      %s105 = sphi 0, %s105
      %s107 = sphi 0, %s105
      %s108 = sphi 0, %s107
      %s122 = sphi 0, %s108
      %s128 = sphi 0, %s130
      %s131 = sphi 0, %s128
      %s132 = sphi 0, %s131
      %s148 = sphi 0, %s132
      %s154 = sphi 0, %s156
      %s157 = sphi 0, %s154
      %s158 = sphi 0, %s157
      %s174 = sphi 0, %s158
      %s178 = sphi 0, %s178
      %s180 = sphi 0, %s178
      %s181 = sphi 0, %s180
      %s195 = sphi 0, %s181
      %s201 = sphi 0, %s203
      %s204 = sphi 0, %s201
      %s205 = sphi 0, %s204
      %s221 = sphi 0, %s205
    $region4: #{supernet_forward.3} parent=1 // loop_header_branch
      %20 = sbr.rel (%p18) target = $region8
    $region5: #{supernet_forward.3} parent=1 // loop_body
      %s22 = ssub.s32 %s17, 1
      %s23 = ssub.s32 %s17, 2
      %s30 = sadd.s32 1, %s25
      %p31 = scmp.ge.s32.totalorder %s30, 2
      %s32 = scalar_select %p31, 0, %s30
      %s33 = sadd.s32 1, %s24
      %s34 = scalar_select %p31, %s33, %s24
      %p35 = scmp.ge.s32.totalorder %s34, 3
      %s36 = scalar_select %p35, 0, %s34
      %s38 = sadd.s32 %s37, 1
      %p41 = scmp.eq.s32.totalorder %s17, 5
      %p42 = scmp.ne.s32.totalorder %s37, %s39
      %p43 = scmp.eq.s32.totalorder %s17, 0
      %p44 = por %p42, %p43
      %p45 = scmp.ne.s32.totalorder %s37, %s39
      %p46 = scmp.eq.s32.totalorder %s22, 5
      %p47 = por %p45, %p46
      %p48 = scmp.ne.s32.totalorder %s39, %s40
      %p49 = scmp.eq.s32.totalorder %s22, 0
      %p50 = por %p48, %p49
      %p51 = scmp.ne.s32.totalorder %s39, %s40
      %p52 = scmp.eq.s32.totalorder %s23, 5
      %p53 = por %p51, %p52
      %p55 = scmp.ne.s32.totalorder %s40, %s54
      %p56 = scmp.eq.s32.totalorder %s23, 0
      %p57 = por %p55, %p56
      %s58 = ssub.s32 %s25, %s32
      %p59 = scmp.eq.s32.totalorder %s58, 0
      %s61 = sadd.s32 %s60, 1
      %s62 = scalar_select %p59, %s60, %s61
      %p65 = pneg %p59
      %p66 = scmp.eq.s32.totalorder %s17, 5
      %p67 = por %p65, %p66
      %p68 = scmp.ne.s32.totalorder %s60, %s63
      %p69 = scmp.eq.s32.totalorder %s17, 0
      %p70 = por %p68, %p69
      %p71 = scmp.ne.s32.totalorder %s60, %s63
      %p72 = scmp.eq.s32.totalorder %s22, 5
      %p73 = por %p71, %p72
      %p74 = scmp.ne.s32.totalorder %s63, %s64
      %p75 = scmp.eq.s32.totalorder %s22, 0
      %p76 = por %p74, %p75
      %p77 = scmp.ne.s32.totalorder %s63, %s64
      %p78 = scmp.eq.s32.totalorder %s23, 5
      %p79 = por %p77, %p78
      %p81 = scmp.ne.s32.totalorder %s64, %s80
      %p82 = scmp.eq.s32.totalorder %s23, 0
      %p83 = por %p81, %p82
      %s85 = sadd.s32 %s84, 1
      %p88 = scmp.eq.s32.totalorder %s17, 5
      %p89 = scmp.ne.s32.totalorder %s84, %s86
      %p90 = scmp.eq.s32.totalorder %s17, 0
      %p91 = por %p89, %p90
      %p92 = scmp.ne.s32.totalorder %s84, %s86
      %p93 = scmp.eq.s32.totalorder %s22, 5
      %p94 = por %p92, %p93
      %p95 = scmp.ne.s32.totalorder %s86, %s87
      %p96 = scmp.eq.s32.totalorder %s22, 0
      %p97 = por %p95, %p96
      %p98 = scmp.ne.s32.totalorder %s86, %s87
      %p99 = scmp.eq.s32.totalorder %s23, 5
      %p100 = por %p98, %p99
      %p102 = scmp.ne.s32.totalorder %s87, %s101
      %p103 = scmp.eq.s32.totalorder %s23, 0
      %p104 = por %p102, %p103
      %s106 = sadd.s32 %s105, 1
      %p109 = scmp.eq.s32.totalorder %s17, 5
      %p110 = scmp.ne.s32.totalorder %s105, %s107
      %p111 = scmp.eq.s32.totalorder %s17, 0
      %p112 = por %p110, %p111
      %p113 = scmp.ne.s32.totalorder %s105, %s107
      %p114 = scmp.eq.s32.totalorder %s22, 5
      %p115 = por %p113, %p114
      %p116 = scmp.ne.s32.totalorder %s107, %s108
      %p117 = scmp.eq.s32.totalorder %s22, 0
      %p118 = por %p116, %p117
      %p119 = scmp.ne.s32.totalorder %s107, %s108
      %p120 = scmp.eq.s32.totalorder %s23, 5
      %p121 = por %p119, %p120
      %p123 = scmp.ne.s32.totalorder %s108, %s122
      %p124 = scmp.eq.s32.totalorder %s23, 0
      %p125 = por %p123, %p124
      %s126 = ssub.s32 %s25, %s32
      %p127 = scmp.eq.s32.totalorder %s126, 0
      %s129 = sadd.s32 %s128, 1
      %s130 = scalar_select %p127, %s128, %s129
      %p133 = pneg %p127
      %p134 = scmp.eq.s32.totalorder %s17, 5
      %p135 = por %p133, %p134
      %p136 = scmp.ne.s32.totalorder %s128, %s131
      %p137 = scmp.eq.s32.totalorder %s17, 0
      %p138 = por %p136, %p137
      %p139 = scmp.ne.s32.totalorder %s128, %s131
      %p140 = scmp.eq.s32.totalorder %s22, 5
      %p141 = por %p139, %p140
      %p142 = scmp.ne.s32.totalorder %s131, %s132
      %p143 = scmp.eq.s32.totalorder %s22, 0
      %p144 = por %p142, %p143
      %p145 = scmp.ne.s32.totalorder %s131, %s132
      %p146 = scmp.eq.s32.totalorder %s23, 5
      %p147 = por %p145, %p146
      %p149 = scmp.ne.s32.totalorder %s132, %s148
      %p150 = scmp.eq.s32.totalorder %s23, 0
      %p151 = por %p149, %p150
      %s152 = ssub.s32 %s25, %s32
      %p153 = scmp.eq.s32.totalorder %s152, 0
      %s155 = sadd.s32 %s154, 1
      %s156 = scalar_select %p153, %s154, %s155
      %p159 = pneg %p153
      %p160 = scmp.eq.s32.totalorder %s17, 5
      %p161 = por %p159, %p160
      %p162 = scmp.ne.s32.totalorder %s154, %s157
      %p163 = scmp.eq.s32.totalorder %s17, 0
      %p164 = por %p162, %p163
      %p165 = scmp.ne.s32.totalorder %s154, %s157
      %p166 = scmp.eq.s32.totalorder %s22, 5
      %p167 = por %p165, %p166
      %p168 = scmp.ne.s32.totalorder %s157, %s158
      %p169 = scmp.eq.s32.totalorder %s22, 0
      %p170 = por %p168, %p169
      %p171 = scmp.ne.s32.totalorder %s157, %s158
      %p172 = scmp.eq.s32.totalorder %s23, 5
      %p173 = por %p171, %p172
      %p175 = scmp.ne.s32.totalorder %s158, %s174
      %p176 = scmp.eq.s32.totalorder %s23, 0
      %p177 = por %p175, %p176
      %s179 = sadd.s32 %s178, 1
      %p182 = scmp.eq.s32.totalorder %s17, 5
      %p183 = scmp.ne.s32.totalorder %s178, %s180
      %p184 = scmp.eq.s32.totalorder %s17, 0
      %p185 = por %p183, %p184
      %p186 = scmp.ne.s32.totalorder %s178, %s180
      %p187 = scmp.eq.s32.totalorder %s22, 5
      %p188 = por %p186, %p187
      %p189 = scmp.ne.s32.totalorder %s180, %s181
      %p190 = scmp.eq.s32.totalorder %s22, 0
      %p191 = por %p189, %p190
      %p192 = scmp.ne.s32.totalorder %s180, %s181
      %p193 = scmp.eq.s32.totalorder %s23, 5
      %p194 = por %p192, %p193
      %p196 = scmp.ne.s32.totalorder %s181, %s195
      %p197 = scmp.eq.s32.totalorder %s23, 0
      %p198 = por %p196, %p197
      %s199 = ssub.s32 %s25, %s32
      %p200 = scmp.eq.s32.totalorder %s199, 0
      %s202 = sadd.s32 %s201, 1
      %s203 = scalar_select %p200, %s201, %s202
      %p206 = pneg %p200
      %p207 = scmp.eq.s32.totalorder %s17, 5
      %p208 = por %p206, %p207
      %p209 = scmp.ne.s32.totalorder %s201, %s204
      %p210 = scmp.eq.s32.totalorder %s17, 0
      %p211 = por %p209, %p210
      %p212 = scmp.ne.s32.totalorder %s201, %s204
      %p213 = scmp.eq.s32.totalorder %s22, 5
      %p214 = por %p212, %p213
      %p215 = scmp.ne.s32.totalorder %s204, %s205
      %p216 = scmp.eq.s32.totalorder %s22, 0
      %p217 = por %p215, %p216
      %p218 = scmp.ne.s32.totalorder %s204, %s205
      %p219 = scmp.eq.s32.totalorder %s23, 5
      %p220 = por %p218, %p219
      %p222 = scmp.ne.s32.totalorder %s205, %s221
      %p223 = scmp.eq.s32.totalorder %s23, 0
      %p224 = por %p222, %p223
      %p225 = scmp.le.s32.totalorder 1, %s17
      %p226 = scmp.lt.s32.totalorder %s17, 7
      %p227 = pnand %p225, %p226
      %p228 = pneg %p227
      // Predicated region
      $region9: #{supernet_forward.3} parent=5 // pred_check
        _
      $region10: #{supernet_forward.3} parent=5 // pred_check_branch
        %230 = sbr.rel (%p227) target = $region12
      $region11: #{supernet_forward.3} parent=5 // pred_region
        %s231 = ssub.s32 %s17, 1
        // Predicated region
        $region13: #{supernet_forward.3} parent=11 // pred_check
          %p232 = pneg %p50
        $region14: #{supernet_forward.3} parent=11 // pred_check_branch
          %234 = sbr.rel (%p232) target = $region16
        $region15: #{supernet_forward.3} parent=11 // pred_region
          %s236 = ssub.s32 16, 16
          %237 = vsyncadd [#allocation6], %s236
          %s239 = sshll.u32 %s0, 4
          %s240 = int_to_ptr.vmem [resolvable:$true] %s239
          %242 = dma.vmem_to_smem %s240, 16, [#allocation4], [#allocation6]
        $region16: #{supernet_forward.3} parent=11 // pred_fallthru
          _
        // Predicated region
        $region17: #{supernet_forward.3} parent=11 // pred_check
          %p243 = pneg %p97
        $region18: #{supernet_forward.3} parent=11 // pred_check_branch
          %245 = sbr.rel (%p243) target = $region20
        $region19: #{supernet_forward.3} parent=11 // pred_region
          _
        $region20: #{supernet_forward.3} parent=11 // pred_fallthru
          _
        // Predicated region
        $region21: #{supernet_forward.3} parent=11 // pred_check
          %p246 = pneg %p118
        $region22: #{supernet_forward.3} parent=11 // pred_check_branch
          %248 = sbr.rel (%p246) target = $region24
        $region23: #{supernet_forward.3} parent=11 // pred_region
          _
        $region24: #{supernet_forward.3} parent=11 // pred_fallthru
          _
        // Predicated region
        $region25: #{supernet_forward.3} parent=11 // pred_check
          %p249 = pneg %p191
        $region26: #{supernet_forward.3} parent=11 // pred_check_branch
          %251 = sbr.rel (%p249) target = $region28
        $region27: #{supernet_forward.3} parent=11 // pred_region
          _
        $region28: #{supernet_forward.3} parent=11 // pred_fallthru
          _
      $region12: #{supernet_forward.3} parent=5 // pred_fallthru
        _
      %p252 = scmp.lt.s32.totalorder %s17, 6
      // Predicated region
      $region29: #{supernet_forward.3} parent=5 // pred_check
        %p253 = pneg %p252
      $region30: #{supernet_forward.3} parent=5 // pred_check_branch
        %255 = sbr.rel (%p253) target = $region32
      $region31: #{supernet_forward.3} parent=5 // pred_region
        // Predicated region
        $region33: #{supernet_forward.3} parent=31 // pred_check
          %p256 = pneg %p70
        $region34: #{supernet_forward.3} parent=31 // pred_check_branch
          %258 = sbr.rel (%p256) target = $region36
        $region35: #{supernet_forward.3} parent=31 // pred_region
          %p259 = scmp.lt.s32.totalorder %s25, 1
          %s260 = scalar_select %p259, %s25, 1
          %s261 = smul.addr %s260, 8
          %s262 = scalar_lea.vmem %s1, %s261
        $region36: #{supernet_forward.3} parent=31 // pred_fallthru
          _
        // Predicated region
        $region37: #{supernet_forward.3} parent=31 // pred_check
          %p263 = pneg %p138
        $region38: #{supernet_forward.3} parent=31 // pred_check_branch
          %265 = sbr.rel (%p263) target = $region40
        $region39: #{supernet_forward.3} parent=31 // pred_region
          %p266 = scmp.lt.s32.totalorder %s25, 1
          %s267 = scalar_select %p266, %s25, 1
          %s268 = scalar_lea.vmem %s4, %s267
        $region40: #{supernet_forward.3} parent=31 // pred_fallthru
          _
        // Predicated region
        $region41: #{supernet_forward.3} parent=31 // pred_check
          %p269 = pneg %p164
        $region42: #{supernet_forward.3} parent=31 // pred_check_branch
          %271 = sbr.rel (%p269) target = $region44
        $region43: #{supernet_forward.3} parent=31 // pred_region
          %s272 = sand.u32 %s154, 1
          %s273 = sand.u32 %s154, 1
          %s274 = smul.addr %s273, 128
          %s275 = scalar_lea.vmem [#allocation7], %s274
          %s276 = smul.addr %s25, 4
          %s277 = scalar_lea.vmem %s5, %s276
          // Predicated region
          $region45: #{supernet_forward.3} parent=43 // pred_check
            _
          $region46: #{supernet_forward.3} parent=43 // pred_check_branch
            %279 = sbr.rel (0) target = $region48
          $region47: #{supernet_forward.3} parent=43 // pred_region
            // Predicated region
            $region49: #{supernet_forward.3} parent=47 // pred_check
              _
            $region50: #{supernet_forward.3} parent=47 // pred_check_branch
              %281 = sbr.rel target = $region52
            $region51: #{supernet_forward.3} parent=47 // pred_region
              // Predicated region
              $region64: #{supernet_forward.3} parent=51 // pred_check
                _
              $region65: #{supernet_forward.3} parent=51 // pred_check_branch
                %358 = sbr.rel (0) target = $region67
              $region66: #{supernet_forward.3} parent=51 // pred_region
                loop: start=0, step=1, limit=1
                $region68: #{supernet_forward.3} parent=66 // loop_pre_header
                  _
                $region69: #{supernet_forward.3} parent=66 // loop_header
                  %s360 = sphi 0, %s364
                  %p361 = scmp.ge.s32.totalorder %s360, 1
                  %s365 = sphi %s277, %s277
                  %s366 = sphi %s275, %s275
                $region70: #{supernet_forward.3} parent=66 // loop_header_branch
                  %363 = sbr.rel (%p361) target = $region74
                $region71: #{supernet_forward.3} parent=66 // loop_body
                  _
                $region72: #{supernet_forward.3} parent=66 // loop_footer
                  %s364 = sadd.s32 1, %s360
                $region73: #{supernet_forward.3} parent=66 // loop_footer_branch
                  %359 = sbr.rel target = $region69
                $region74: #{supernet_forward.3} parent=66 // loop_exit
                  _
                loop: start=0, step=1, limit=1
                $region75: #{supernet_forward.3} parent=66 // loop_pre_header
                  _
                $region76: #{supernet_forward.3} parent=66 // loop_header
                  %s369 = sphi 0, %s373
                  %p370 = scmp.ge.s32.totalorder %s369, 1
                  %s374 = sphi %s277, %s277
                  %s375 = sphi %s275, %s275
                $region77: #{supernet_forward.3} parent=66 // loop_header_branch
                  %372 = sbr.rel (%p370) target = $region81
                $region78: #{supernet_forward.3} parent=66 // loop_body
                  %v376 = vld [vmem:[%s374] sm:$0xf]
                  %377 = vst [vmem:[%s375] sm:$0xf] %v376
                  %v378 = vld [vmem:[%s374 + $0x8] sm:$0xf]
                  %379 = vst [vmem:[%s375 + $0x4] sm:$0xf] %v378
                  %v380 = vld [vmem:[%s374 + $0x10] sm:$0xf]
                  %381 = vst [vmem:[%s375 + $0x8] sm:$0xf] %v380
                  %v382 = vld [vmem:[%s374 + $0x18] sm:$0xf]
                  %383 = vst [vmem:[%s375 + $0xc] sm:$0xf] %v382
                  %v384 = vld [vmem:[%s374 + $0x20] sm:$0xf]
                  %385 = vst [vmem:[%s375 + $0x10] sm:$0xf] %v384
                  %v386 = vld [vmem:[%s374 + $0x28] sm:$0xf]
                  %387 = vst [vmem:[%s375 + $0x14] sm:$0xf] %v386
                  %v388 = vld [vmem:[%s374 + $0x30] sm:$0xf]
                  %389 = vst [vmem:[%s375 + $0x18] sm:$0xf] %v388
                  %v390 = vld [vmem:[%s374 + $0x38] sm:$0xf]
                  %391 = vst [vmem:[%s375 + $0x1c] sm:$0xf] %v390
                  %v392 = vld [vmem:[%s374 + $0x40] sm:$0xf]
                  %393 = vst [vmem:[%s375 + $0x20] sm:$0xf] %v392
                  %v394 = vld [vmem:[%s374 + $0x48] sm:$0xf]
                  %395 = vst [vmem:[%s375 + $0x24] sm:$0xf] %v394
                  %v396 = vld [vmem:[%s374 + $0x50] sm:$0xf]
                  %397 = vst [vmem:[%s375 + $0x28] sm:$0xf] %v396
                  %v398 = vld [vmem:[%s374 + $0x58] sm:$0xf]
                  %399 = vst [vmem:[%s375 + $0x2c] sm:$0xf] %v398
                  %v400 = vld [vmem:[%s374 + $0x60] sm:$0xf]
                  %401 = vst [vmem:[%s375 + $0x30] sm:$0xf] %v400
                  %v402 = vld [vmem:[%s374 + $0x68] sm:$0xf]
                  %403 = vst [vmem:[%s375 + $0x34] sm:$0xf] %v402
                  %v404 = vld [vmem:[%s374 + $0x70] sm:$0xf]
                  %405 = vst [vmem:[%s375 + $0x38] sm:$0xf] %v404
                  %v406 = vld [vmem:[%s374 + $0x78] sm:$0xf]
                  %407 = vst [vmem:[%s375 + $0x3c] sm:$0xf] %v406
                  %v408 = vld [vmem:[%s374 + $0x80] sm:$0xf]
                  %409 = vst [vmem:[%s375 + $0x40] sm:$0xf] %v408
                  %v410 = vld [vmem:[%s374 + $0x88] sm:$0xf]
                  %411 = vst [vmem:[%s375 + $0x44] sm:$0xf] %v410
                  %v412 = vld [vmem:[%s374 + $0x90] sm:$0xf]
                  %413 = vst [vmem:[%s375 + $0x48] sm:$0xf] %v412
                  %v414 = vld [vmem:[%s374 + $0x98] sm:$0xf]
                  %415 = vst [vmem:[%s375 + $0x4c] sm:$0xf] %v414
                  %v416 = vld [vmem:[%s374 + $0xa0] sm:$0xf]
                  %417 = vst [vmem:[%s375 + $0x50] sm:$0xf] %v416
                  %v418 = vld [vmem:[%s374 + $0xa8] sm:$0xf]
                  %419 = vst [vmem:[%s375 + $0x54] sm:$0xf] %v418
                  %v420 = vld [vmem:[%s374 + $0xb0] sm:$0xf]
                  %421 = vst [vmem:[%s375 + $0x58] sm:$0xf] %v420
                  %v422 = vld [vmem:[%s374 + $0xb8] sm:$0xf]
                  %423 = vst [vmem:[%s375 + $0x5c] sm:$0xf] %v422
                  %v424 = vld [vmem:[%s374 + $0xc0] sm:$0xf]
                  %425 = vst [vmem:[%s375 + $0x60] sm:$0xf] %v424
                  %v426 = vld [vmem:[%s374 + $0xc8] sm:$0xf]
                  %427 = vst [vmem:[%s375 + $0x64] sm:$0xf] %v426
                  %v428 = vld [vmem:[%s374 + $0xd0] sm:$0xf]
                  %429 = vst [vmem:[%s375 + $0x68] sm:$0xf] %v428
                  %v430 = vld [vmem:[%s374 + $0xd8] sm:$0xf]
                  %431 = vst [vmem:[%s375 + $0x6c] sm:$0xf] %v430
                  %v432 = vld [vmem:[%s374 + $0xe0] sm:$0xf]
                  %433 = vst [vmem:[%s375 + $0x70] sm:$0xf] %v432
                  %v434 = vld [vmem:[%s374 + $0xe8] sm:$0xf]
                  %435 = vst [vmem:[%s375 + $0x74] sm:$0xf] %v434
                  %v436 = vld [vmem:[%s374 + $0xf0] sm:$0xf]
                  %437 = vst [vmem:[%s375 + $0x78] sm:$0xf] %v436
                  %v438 = vld [vmem:[%s374 + $0xf8] sm:$0xf]
                  %439 = vst [vmem:[%s375 + $0x7c] sm:$0xf] %v438
                $region79: #{supernet_forward.3} parent=66 // loop_footer
                  %s373 = sadd.s32 1, %s369
                $region80: #{supernet_forward.3} parent=66 // loop_footer_branch
                  %368 = sbr.rel target = $region76
                $region81: #{supernet_forward.3} parent=66 // loop_exit
                  _
              $region67: #{supernet_forward.3} parent=51 // pred_fallthru
                _
            $region52: #{supernet_forward.3} parent=47 // pred_fallthru
              _
            // Predicated region
            $region53: #{supernet_forward.3} parent=47 // pred_check
              _
            $region54: #{supernet_forward.3} parent=47 // pred_check_branch
              %283 = sbr.rel (0) target = $region56
            $region55: #{supernet_forward.3} parent=47 // pred_region
              loop: start=0, step=1, limit=1
              $region57: #{supernet_forward.3} parent=55 // loop_pre_header
                _
              $region58: #{supernet_forward.3} parent=55 // loop_header
                %s286 = sphi 0, %s290
                %p287 = scmp.ge.s32.totalorder %s286, 1
                %s291 = sphi %s277, %s277
                %s292 = sphi %s275, %s275
              $region59: #{supernet_forward.3} parent=55 // loop_header_branch
                %289 = sbr.rel (%p287) target = $region63
              $region60: #{supernet_forward.3} parent=55 // loop_body
                %v293 = vld [vmem:[%s291] sm:$0xf]
                %294 = vst [vmem:[%s292] sm:$0xf] %v293
                %v295 = vld [vmem:[%s291 + $0x8] sm:$0xf]
                %296 = vst [vmem:[%s292 + $0x4] sm:$0xf] %v295
                %v297 = vld [vmem:[%s291 + $0x10] sm:$0xf]
                %298 = vst [vmem:[%s292 + $0x8] sm:$0xf] %v297
                %v299 = vld [vmem:[%s291 + $0x18] sm:$0xf]
                %300 = vst [vmem:[%s292 + $0xc] sm:$0xf] %v299
                %v301 = vld [vmem:[%s291 + $0x20] sm:$0xf]
                %302 = vst [vmem:[%s292 + $0x10] sm:$0xf] %v301
                %v303 = vld [vmem:[%s291 + $0x28] sm:$0xf]
                %304 = vst [vmem:[%s292 + $0x14] sm:$0xf] %v303
                %v305 = vld [vmem:[%s291 + $0x30] sm:$0xf]
                %306 = vst [vmem:[%s292 + $0x18] sm:$0xf] %v305
                %v307 = vld [vmem:[%s291 + $0x38] sm:$0xf]
                %308 = vst [vmem:[%s292 + $0x1c] sm:$0xf] %v307
                %v309 = vld [vmem:[%s291 + $0x40] sm:$0xf]
                %310 = vst [vmem:[%s292 + $0x20] sm:$0xf] %v309
                %v311 = vld [vmem:[%s291 + $0x48] sm:$0xf]
                %312 = vst [vmem:[%s292 + $0x24] sm:$0xf] %v311
                %v313 = vld [vmem:[%s291 + $0x50] sm:$0xf]
                %314 = vst [vmem:[%s292 + $0x28] sm:$0xf] %v313
                %v315 = vld [vmem:[%s291 + $0x58] sm:$0xf]
                %316 = vst [vmem:[%s292 + $0x2c] sm:$0xf] %v315
                %v317 = vld [vmem:[%s291 + $0x60] sm:$0xf]
                %318 = vst [vmem:[%s292 + $0x30] sm:$0xf] %v317
                %v319 = vld [vmem:[%s291 + $0x68] sm:$0xf]
                %320 = vst [vmem:[%s292 + $0x34] sm:$0xf] %v319
                %v321 = vld [vmem:[%s291 + $0x70] sm:$0xf]
                %322 = vst [vmem:[%s292 + $0x38] sm:$0xf] %v321
                %v323 = vld [vmem:[%s291 + $0x78] sm:$0xf]
                %324 = vst [vmem:[%s292 + $0x3c] sm:$0xf] %v323
                %v325 = vld [vmem:[%s291 + $0x80] sm:$0xf]
                %326 = vst [vmem:[%s292 + $0x40] sm:$0xf] %v325
                %v327 = vld [vmem:[%s291 + $0x88] sm:$0xf]
                %328 = vst [vmem:[%s292 + $0x44] sm:$0xf] %v327
                %v329 = vld [vmem:[%s291 + $0x90] sm:$0xf]
                %330 = vst [vmem:[%s292 + $0x48] sm:$0xf] %v329
                %v331 = vld [vmem:[%s291 + $0x98] sm:$0xf]
                %332 = vst [vmem:[%s292 + $0x4c] sm:$0xf] %v331
                %v333 = vld [vmem:[%s291 + $0xa0] sm:$0xf]
                %334 = vst [vmem:[%s292 + $0x50] sm:$0xf] %v333
                %v335 = vld [vmem:[%s291 + $0xa8] sm:$0xf]
                %336 = vst [vmem:[%s292 + $0x54] sm:$0xf] %v335
                %v337 = vld [vmem:[%s291 + $0xb0] sm:$0xf]
                %338 = vst [vmem:[%s292 + $0x58] sm:$0xf] %v337
                %v339 = vld [vmem:[%s291 + $0xb8] sm:$0xf]
                %340 = vst [vmem:[%s292 + $0x5c] sm:$0xf] %v339
                %v341 = vld [vmem:[%s291 + $0xc0] sm:$0xf]
                %342 = vst [vmem:[%s292 + $0x60] sm:$0xf] %v341
                %v343 = vld [vmem:[%s291 + $0xc8] sm:$0xf]
                %344 = vst [vmem:[%s292 + $0x64] sm:$0xf] %v343
                %v345 = vld [vmem:[%s291 + $0xd0] sm:$0xf]
                %346 = vst [vmem:[%s292 + $0x68] sm:$0xf] %v345
                %v347 = vld [vmem:[%s291 + $0xd8] sm:$0xf]
                %348 = vst [vmem:[%s292 + $0x6c] sm:$0xf] %v347
                %v349 = vld [vmem:[%s291 + $0xe0] sm:$0xf]
                %350 = vst [vmem:[%s292 + $0x70] sm:$0xf] %v349
                %v351 = vld [vmem:[%s291 + $0xe8] sm:$0xf]
                %352 = vst [vmem:[%s292 + $0x74] sm:$0xf] %v351
                %v353 = vld [vmem:[%s291 + $0xf0] sm:$0xf]
                %354 = vst [vmem:[%s292 + $0x78] sm:$0xf] %v353
                %v355 = vld [vmem:[%s291 + $0xf8] sm:$0xf]
                %356 = vst [vmem:[%s292 + $0x7c] sm:$0xf] %v355
              $region61: #{supernet_forward.3} parent=55 // loop_footer
                %s290 = sadd.s32 1, %s286
              $region62: #{supernet_forward.3} parent=55 // loop_footer_branch
                %285 = sbr.rel target = $region58
              $region63: #{supernet_forward.3} parent=55 // loop_exit
                _
            $region56: #{supernet_forward.3} parent=47 // pred_fallthru
              _
          $region48: #{supernet_forward.3} parent=43 // pred_fallthru
            _
          %440 = vnop
        $region44: #{supernet_forward.3} parent=31 // pred_fallthru
          _
      $region32: #{supernet_forward.3} parent=5 // pred_fallthru
        _
      %p441 = scmp.le.s32.totalorder 1, %s17
      %p442 = scmp.lt.s32.totalorder %s17, 7
      %p443 = pnand %p441, %p442
      %p444 = pneg %p443
      // Predicated region
      $region82: #{supernet_forward.3} parent=5 // pred_check
        _
      $region83: #{supernet_forward.3} parent=5 // pred_check_branch
        %446 = sbr.rel (%p443) target = $region85
      $region84: #{supernet_forward.3} parent=5 // pred_region
        %s447 = ssub.s32 %s17, 1
        // Predicated region
        $region86: #{supernet_forward.3} parent=84 // pred_check
          %p448 = pneg %p50
        $region87: #{supernet_forward.3} parent=84 // pred_check_branch
          %450 = sbr.rel (%p448) target = $region89
        $region88: #{supernet_forward.3} parent=84 // pred_region
          %451 = dma.done [#allocation6], 16
        $region89: #{supernet_forward.3} parent=84 // pred_fallthru
          _
        %s452 = sand.u32 %s157, 1
        %s453 = sand.u32 %s157, 1
        %s454 = smul.addr %s453, 128
        %s455 = scalar_lea.vmem [#allocation7], %s454
        // Predicated region
        $region90: #{supernet_forward.3} parent=84 // pred_check
          %p456 = pneg %p170
        $region91: #{supernet_forward.3} parent=84 // pred_check_branch
          %458 = sbr.rel (%p456) target = $region93
        $region92: #{supernet_forward.3} parent=84 // pred_region
          _
        $region93: #{supernet_forward.3} parent=84 // pred_fallthru
          _
        %459 = sfence
        %p460 = pneg %p50
        %p461 = pneg %p47
        %p462 = scmp.lt.s32.totalorder %s27, 1
        %s463 = scalar_select %p462, %s27, 1
        %s464 = smul.addr %s463, 8
        %s465 = scalar_lea.vmem %s1, %s464
        %p466 = pneg %p76
        %p467 = pneg %p73
        %p468 = pneg %p97
        %p469 = pneg %p94
        %p470 = pneg %p118
        %p471 = pneg %p115
        %p472 = scmp.lt.s32.totalorder %s27, 1
        %s473 = scalar_select %p472, %s27, 1
        %s474 = scalar_lea.vmem %s4, %s473
        %p475 = pneg %p144
        %p476 = pneg %p141
        %s477 = sand.u32 %s157, 1
        %s478 = sand.u32 %s157, 1
        %s479 = smul.addr %s478, 128
        %s480 = scalar_lea.vmem [#allocation7], %s479
        %p481 = pneg %p170
        %p482 = pneg %p167
        %p483 = pneg %p191
        %p484 = pneg %p188
        %p485 = pneg %p217
        %p486 = pneg %p214
        %s487 = sand.u32 %s204, 1
        %s488 = scalar_lea.sflag [#allocation5], %s487
        %s489 = sand.u32 %s204, 1
        %s490 = smul.addr %s489, 8
        %s491 = scalar_lea.vmem [#allocation8], %s490
        %p492 = scmp.lt.s32.totalorder %s27, 1
        %s493 = scalar_select %p492, %s27, 1
        %s494 = smul.addr %s493, 8
        %s495 = scalar_lea.vmem %s1, %s494
        %p496 = scmp.lt.s32.totalorder %s27, 1
        %s497 = scalar_select %p496, %s27, 1
        %s498 = scalar_lea.vmem %s4, %s497
        %s500 = sld [smem:[#allocation4]]
        %s501 = sld [smem:[#allocation4 + $0x1]]
        %s502 = sld [smem:[#allocation4 + $0x2]]
        %s503 = smul.u32 %s27, 128
        %p504 = scmp.eq.s32.totalorder %s26, 0
        %p505 = scmp.eq.s32.totalorder %s27, 0
        %p506 = pnand %p504, %p505
        %p507 = pneg %p506
        // Predicated region
        $region94: #{supernet_forward.3} parent=84 // pred_check
          _
        $region95: #{supernet_forward.3} parent=84 // pred_check_branch
          %509 = sbr.rel (%p506) target = $region97
        $region96: #{supernet_forward.3} parent=84 // pred_region
          %v510 = vld [vmem:[%s6] sm:$0x1f]
          %v511 = vld [vmem:[%s6 + $0x8] sm:$0x1f]
          %512 = vst [vmem:[#allocation2] sm:$0x1f] %v510
          %513 = vst [vmem:[#allocation2 + $0x8] sm:$0x1f] %v511
        $region97: #{supernet_forward.3} parent=84 // pred_fallthru
          _
        %p514 = scmp.lt.s32.totalorder %s26, 0
        %s515 = ssub.s32 0, %s26
        %s516 = scalar_select %p514, %s515, %s26
        %s517 = sand.u32 %s516, 1
        %s518 = ssub.s32 0, %s517
        %s519 = scalar_select %p514, %s518, %s517
        %p520 = scmp.ne.s32.totalorder %s519, 0
        %p521 = scmp.lt.s32.totalorder %s519, 0
        %p522 = pnand %p521, %p520
        %p523 = pneg %p522
        %s524 = sadd.s32 %s519, 2
        %s525 = scalar_select %p523, %s524, %s519
        %p526 = scmp.eq.s32.totalorder %s525, 0
        // Predicated region
        $region98: #{supernet_forward.3} parent=84 // pred_check
          %p527 = pneg %p526
        $region99: #{supernet_forward.3} parent=84 // pred_check_branch
          %529 = sbr.rel (%p527) target = $region101
        $region100: #{supernet_forward.3} parent=84 // pred_region
          %v530 = vld [vmem:[#allocation2] sm:$0x1f]
          %v531 = vld [vmem:[#allocation2 + $0x8] sm:$0x1f]
          %s532 = sshra.s32 %s503, 7
          %s533 = sand.u32 %s503, 127
          %s534 = smul.addr %s532, 8
          %s535 = scalar_lea.vmem [#allocation2], %s534
          %v536 = vld [vmem:[%s535] sm:$0x1f]
          %v537 = vpack.c.bf16 %v530, %v530
          %v538 = vpack.c.bf16 %v531, %v531
          %v539 = vld [vmem:[%s455] sm:$0xf]
          %v540 = vld [vmem:[%s455 + $0x4] sm:$0xf]
          %v541 = vld [vmem:[%s455 + $0x8] sm:$0xf]
          %v542 = vld [vmem:[%s455 + $0xc] sm:$0xf]
          %v543 = vld [vmem:[%s455 + $0x10] sm:$0xf]
          %v544 = vld [vmem:[%s455 + $0x14] sm:$0xf]
          %v545 = vld [vmem:[%s455 + $0x18] sm:$0xf]
          %v546 = vld [vmem:[%s455 + $0x1c] sm:$0xf]
          %v547 = vld [vmem:[%s455 + $0x20] sm:$0xf]
          %v548 = vld [vmem:[%s455 + $0x24] sm:$0xf]
          %v549 = vld [vmem:[%s455 + $0x28] sm:$0xf]
          %v550 = vld [vmem:[%s455 + $0x2c] sm:$0xf]
          %v551 = vld [vmem:[%s455 + $0x30] sm:$0xf]
          %v552 = vld [vmem:[%s455 + $0x34] sm:$0xf]
          %v553 = vld [vmem:[%s455 + $0x38] sm:$0xf]
          %v554 = vld [vmem:[%s455 + $0x3c] sm:$0xf]
          %v555 = vld [vmem:[%s455 + $0x40] sm:$0xf]
          %v556 = vld [vmem:[%s455 + $0x44] sm:$0xf]
          %v557 = vld [vmem:[%s455 + $0x48] sm:$0xf]
          %v558 = vld [vmem:[%s455 + $0x4c] sm:$0xf]
          %v559 = vld [vmem:[%s455 + $0x50] sm:$0xf]
          %v560 = vld [vmem:[%s455 + $0x54] sm:$0xf]
          %v561 = vld [vmem:[%s455 + $0x58] sm:$0xf]
          %v562 = vld [vmem:[%s455 + $0x5c] sm:$0xf]
          %v563 = vld [vmem:[%s455 + $0x60] sm:$0xf]
          %v564 = vld [vmem:[%s455 + $0x64] sm:$0xf]
          %v565 = vld [vmem:[%s455 + $0x68] sm:$0xf]
          %v566 = vld [vmem:[%s455 + $0x6c] sm:$0xf]
          %v567 = vld [vmem:[%s455 + $0x70] sm:$0xf]
          %v568 = vld [vmem:[%s455 + $0x74] sm:$0xf]
          %v569 = vld [vmem:[%s455 + $0x78] sm:$0xf]
          %v570 = vld [vmem:[%s455 + $0x7c] sm:$0xf]
          %v603 = vunpack.c.l.b16 %v539
          %v604 = vunpack.c.l.b16 %v540
          %v605 = vunpack.c.l.b16 %v541
          %v606 = vunpack.c.l.b16 %v542
          %v607 = vunpack.c.l.b16 %v543
          %v608 = vunpack.c.l.b16 %v544
          %v609 = vunpack.c.l.b16 %v545
          %v610 = vunpack.c.l.b16 %v546
          %v611 = vunpack.c.l.b16 %v547
          %v612 = vunpack.c.l.b16 %v548
          %v613 = vunpack.c.l.b16 %v549
          %v614 = vunpack.c.l.b16 %v550
          %v615 = vunpack.c.l.b16 %v551
          %v616 = vunpack.c.l.b16 %v552
          %v617 = vunpack.c.l.b16 %v553
          %v618 = vunpack.c.l.b16 %v554
          %v619 = vunpack.c.l.b16 %v555
          %v620 = vunpack.c.l.b16 %v556
          %v621 = vunpack.c.l.b16 %v557
          %v622 = vunpack.c.l.b16 %v558
          %v623 = vunpack.c.l.b16 %v559
          %v624 = vunpack.c.l.b16 %v560
          %v625 = vunpack.c.l.b16 %v561
          %v626 = vunpack.c.l.b16 %v562
          %v627 = vunpack.c.l.b16 %v563
          %v628 = vunpack.c.l.b16 %v564
          %v629 = vunpack.c.l.b16 %v565
          %v630 = vunpack.c.l.b16 %v566
          %v631 = vunpack.c.l.b16 %v567
          %v632 = vunpack.c.l.b16 %v568
          %v633 = vunpack.c.l.b16 %v569
          %v634 = vunpack.c.l.b16 %v570
          %v635 = vpack.c.b16 %v604, %v603
          %v636 = vpack.c.b16 %v606, %v605
          %v637 = vpack.c.b16 %v608, %v607
          %v638 = vpack.c.b16 %v610, %v609
          %v639 = vpack.c.b16 %v612, %v611
          %v640 = vpack.c.b16 %v614, %v613
          %v641 = vpack.c.b16 %v616, %v615
          %v642 = vpack.c.b16 %v618, %v617
          %v643 = vpack.c.b16 %v620, %v619
          %v644 = vpack.c.b16 %v622, %v621
          %v645 = vpack.c.b16 %v624, %v623
          %v646 = vpack.c.b16 %v626, %v625
          %v647 = vpack.c.b16 %v628, %v627
          %v648 = vpack.c.b16 %v630, %v629
          %v649 = vpack.c.b16 %v632, %v631
          %v650 = vpack.c.b16 %v634, %v633
          %667 = vmatprep.subr.bf16.mxu0 0
          %668 = vmatpush1.bf16.msra.mxu0 %v635
          %669 = vmatprep.subr.bf16.mxu0 0
          %670 = vmatpush1.bf16.msra.mxu0 %v636
          %671 = vmatprep.subr.bf16.mxu0 0
          %672 = vmatpush1.bf16.msra.mxu0 %v637
          %673 = vmatprep.subr.bf16.mxu0 0
          %674 = vmatpush1.bf16.msra.mxu0 %v638
          %675 = vmatprep.subr.bf16.mxu0 0
          %676 = vmatpush1.bf16.msra.mxu0 %v639
          %677 = vmatprep.subr.bf16.mxu0 0
          %678 = vmatpush1.bf16.msra.mxu0 %v640
          %679 = vmatprep.subr.bf16.mxu0 0
          %680 = vmatpush1.bf16.msra.mxu0 %v641
          %681 = vmatprep.subr.bf16.mxu0 0
          %682 = vmatpush1.bf16.msra.mxu0 %v642
          %683 = vmatprep.subr.bf16.mxu0 0
          %684 = vmatpush1.bf16.msra.mxu0 %v643
          %685 = vmatprep.subr.bf16.mxu0 0
          %686 = vmatpush1.bf16.msra.mxu0 %v644
          %687 = vmatprep.subr.bf16.mxu0 0
          %688 = vmatpush1.bf16.msra.mxu0 %v645
          %689 = vmatprep.subr.bf16.mxu0 0
          %690 = vmatpush1.bf16.msra.mxu0 %v646
          %691 = vmatprep.subr.bf16.mxu0 0
          %692 = vmatpush1.bf16.msra.mxu0 %v647
          %693 = vmatprep.subr.bf16.mxu0 0
          %694 = vmatpush1.bf16.msra.mxu0 %v648
          %695 = vmatprep.subr.bf16.mxu0 0
          %696 = vmatpush1.bf16.msra.mxu0 %v649
          %697 = vmatprep.subr.bf16.mxu0 0
          %698 = vmatpush1.bf16.msra.mxu0 %v650
          %699 = vmatprep.mubr.bf16.mxu0 %v538
          %700 = vmatmul.mubr.bf16.gmra.mrb[0].mxu0 %v537
          %v701 = vpop.f32.mrb[0].mxu0
          %v702 = vadd.f32 0.0, %v701
          %v703 = vpop.f32.mrb[0].mxu0
          %v704 = vpop.f32.mrb[0].mxu0
          %v705 = vpop.f32.mrb[0].mxu0
          %706 = vdwg.mxu0
          %v707 = vld [vmem:[%s495] sm:$0x1f]
          %v708 = vstv %s500
          %v709 = vmul.f32 %v708, %v702
          %v710 = vadd.f32 %v707, %v709
          %v711 = vstv %s501
          %v712 = vadd.f32 %v710, %v711
          %v713 = vld [vmem:[%s2] sm:$0x1f]
          %vm714 = vcmask 1044480
          %v715 = vsel %vm714, %v536, 0.0
          %v716 = vrot.slane %v715, 4
          %v717 = vadd.f32 %v715, %v716
          %v718 = vrot.slane %v717, 2
          %v719 = vadd.f32 %v717, %v718
          %v720 = vrot.slane %v719, 1
          %v721 = vadd.f32 %v719, %v720
          %v722 = vld [vmem:[%s3] sm:$0x1f]
          %724 = vset.pattern.permute.xlu0 0
          %725 = vperm.xlu0 %724, %v722
          %v726 = vpop.permute.xlu0 %725
          %vm728 = vcmask 39936
          %v730 = vsel %vm728, %v713, 0
          %v733 = vsel %vm714, %v536, 0
          %735 = vmatprep.subr.mxu0 0.0
          %736 = vmatpush1.msra.mxu0 %v733
          %737 = vmatprep.subr.mxu0 0.0
          %738 = vmatpush1.msra.mxu0 0.0
          %739 = vmatprep.subr.mxu0 0.0
          %740 = vmatpush1.msra.mxu0 0.0
          %741 = vmatprep.subr.mxu0 0.0
          %742 = vmatpush1.msra.mxu0 0.0
          %743 = vmatprep.subr.mxu0 0.0
          %744 = vmatpush1.msra.mxu0 0.0
          %745 = vmatprep.subr.mxu0 0.0
          %746 = vmatpush1.msra.mxu0 0.0
          %747 = vmatprep.subr.mxu0 0.0
          %748 = vmatpush1.msra.mxu0 0.0
          %749 = vmatprep.subr.mxu0 0.0
          %750 = vmatpush1.msra.mxu0 0.0
          %751 = vmatprep.subr.mxu0 0.0
          %752 = vmatpush1.msra.mxu0 0.0
          %753 = vmatprep.subr.mxu0 0.0
          %754 = vmatpush1.msra.mxu0 0.0
          %755 = vmatprep.subr.mxu0 0.0
          %756 = vmatpush1.msra.mxu0 0.0
          %757 = vmatprep.subr.mxu0 0.0
          %758 = vmatpush1.msra.mxu0 0.0
          %759 = vmatprep.subr.mxu0 0.0
          %760 = vmatpush1.msra.mxu0 0.0
          %761 = vmatprep.subr.mxu0 0.0
          %762 = vmatpush1.msra.mxu0 0.0
          %763 = vmatprep.subr.mxu0 0.0
          %764 = vmatpush1.msra.mxu0 0.0
          %765 = vmatprep.subr.mxu0 0.0
          %766 = vmatpush1.msra.mxu0 0.0
          %767 = vmatprep.subr.mxu0 0.0
          %768 = vmatpush1.msra.mxu0 0.0
          %769 = vmatprep.subr.mxu0 0.0
          %770 = vmatpush1.msra.mxu0 0.0
          %771 = vmatprep.subr.mxu0 0.0
          %772 = vmatpush1.msra.mxu0 0.0
          %773 = vmatprep.subr.mxu0 0.0
          %774 = vmatpush1.msra.mxu0 0.0
          %775 = vmatprep.subr.mxu0 0.0
          %776 = vmatpush1.msra.mxu0 0.0
          %777 = vmatprep.subr.mxu0 0.0
          %778 = vmatpush1.msra.mxu0 0.0
          %779 = vmatprep.subr.mxu0 0.0
          %780 = vmatpush1.msra.mxu0 0.0
          %781 = vmatprep.subr.mxu0 0.0
          %782 = vmatpush1.msra.mxu0 0.0
          %783 = vmatprep.subr.mxu0 0.0
          %784 = vmatpush1.msra.mxu0 0.0
          %785 = vmatprep.subr.mxu0 0.0
          %786 = vmatpush1.msra.mxu0 0.0
          %787 = vmatprep.subr.mxu0 0.0
          %788 = vmatpush1.msra.mxu0 0.0
          %789 = vmatprep.subr.mxu0 0.0
          %790 = vmatpush1.msra.mxu0 0.0
          %791 = vmatprep.subr.mxu0 0.0
          %792 = vmatpush1.msra.mxu0 0.0
          %793 = vmatprep.subr.mxu0 0.0
          %794 = vmatpush1.msra.mxu0 0.0
          %795 = vmatprep.subr.mxu0 0.0
          %796 = vmatpush1.msra.mxu0 0.0
          %797 = vmatprep.subr.mxu0 0.0
          %798 = vmatpush1.msra.mxu0 0.0
          %799 = vmatprep.mubr.f32.mxu0 0.0
          %800 = vmatmul.mubr.f32.gmra.mrb[0].mxu0 %v730
          %v801 = vpop.f32.mrb[0].mxu0
          %v802 = vadd.f32 %v726, %v801
          %v803 = vpop.f32.mrb[0].mxu0
          %804 = vdwg.mxu0
          %v805 = vld [vmem:[%s498] sm:$0x1]
          %v806 = vmul.f32 %v708, %v805
          %v808 = vlaneseq
          %v809 = vshrl.u32 %v808, 7
          %v810 = vsub.s32 0, %v809
          %v811 = vrot.slane %v806, %v810
          %v813 = vmul.f32 %v811, %v536
          %v814 = vadd.f32 %v802, %v813
          %v815 = vmul.f32 %v711, %v721
          %v816 = vadd.f32 %v814, %v815
          %v817 = vand.u32 2147483647, %v816
          %v818 = vstv %s502
          %v819 = vadd.f32 %v817, %v818
          %v820 = vmul.f32 %v536, %v712
          %v821 = vrcp.pop %v819
          %v822 = vmul.f32 %v820, %v821
          %v823 = vsel %vm714, %v822, 0.0
          %v824 = vrot.slane %v823, 4
          %v825 = vadd.f32 %v823, %v824
          %v826 = vrot.slane %v825, 2
          %v827 = vadd.f32 %v825, %v826
          %v828 = vrot.slane %v827, 1
          %v829 = vadd.f32 %v827, %v828
          %v830 = vadd.f32 %v829, %v818
          %v831 = vrcp.pop %v830
          %v832 = vmul.f32 %v822, %v831
          %s833 = smul.addr %s532, 8
          %s834 = scalar_lea.vmem [#allocation3], %s833
          %835 = vst [vmem:[%s834] sm:$0x1f] %v832
          %836 = vst [vmem:[%s491] sm:$0x1f] %v832
        $region101: #{supernet_forward.3} parent=84 // pred_fallthru
          _
        %p837 = scmp.eq.s32.totalorder %s525, 1
        // Predicated region
        $region102: #{supernet_forward.3} parent=84 // pred_check
          %p838 = pneg %p837
        $region103: #{supernet_forward.3} parent=84 // pred_check_branch
          %840 = sbr.rel (%p838) target = $region105
        $region104: #{supernet_forward.3} parent=84 // pred_region
          %v841 = vld [vmem:[#allocation3] sm:$0x1f]
          %v842 = vld [vmem:[#allocation3 + $0x8] sm:$0x1f]
          %s843 = sshra.s32 %s503, 7
          %s844 = sand.u32 %s503, 127
          %s845 = smul.addr %s843, 8
          %s846 = scalar_lea.vmem [#allocation3], %s845
          %v847 = vld [vmem:[%s846] sm:$0x1f]
          %v848 = vpack.c.bf16 %v841, %v841
          %v849 = vpack.c.bf16 %v842, %v842
          %v850 = vld [vmem:[%s455] sm:$0xf]
          %v851 = vld [vmem:[%s455 + $0x4] sm:$0xf]
          %v852 = vld [vmem:[%s455 + $0x8] sm:$0xf]
          %v853 = vld [vmem:[%s455 + $0xc] sm:$0xf]
          %v854 = vld [vmem:[%s455 + $0x10] sm:$0xf]
          %v855 = vld [vmem:[%s455 + $0x14] sm:$0xf]
          %v856 = vld [vmem:[%s455 + $0x18] sm:$0xf]
          %v857 = vld [vmem:[%s455 + $0x1c] sm:$0xf]
          %v858 = vld [vmem:[%s455 + $0x20] sm:$0xf]
          %v859 = vld [vmem:[%s455 + $0x24] sm:$0xf]
          %v860 = vld [vmem:[%s455 + $0x28] sm:$0xf]
          %v861 = vld [vmem:[%s455 + $0x2c] sm:$0xf]
          %v862 = vld [vmem:[%s455 + $0x30] sm:$0xf]
          %v863 = vld [vmem:[%s455 + $0x34] sm:$0xf]
          %v864 = vld [vmem:[%s455 + $0x38] sm:$0xf]
          %v865 = vld [vmem:[%s455 + $0x3c] sm:$0xf]
          %v866 = vld [vmem:[%s455 + $0x40] sm:$0xf]
          %v867 = vld [vmem:[%s455 + $0x44] sm:$0xf]
          %v868 = vld [vmem:[%s455 + $0x48] sm:$0xf]
          %v869 = vld [vmem:[%s455 + $0x4c] sm:$0xf]
          %v870 = vld [vmem:[%s455 + $0x50] sm:$0xf]
          %v871 = vld [vmem:[%s455 + $0x54] sm:$0xf]
          %v872 = vld [vmem:[%s455 + $0x58] sm:$0xf]
          %v873 = vld [vmem:[%s455 + $0x5c] sm:$0xf]
          %v874 = vld [vmem:[%s455 + $0x60] sm:$0xf]
          %v875 = vld [vmem:[%s455 + $0x64] sm:$0xf]
          %v876 = vld [vmem:[%s455 + $0x68] sm:$0xf]
          %v877 = vld [vmem:[%s455 + $0x6c] sm:$0xf]
          %v878 = vld [vmem:[%s455 + $0x70] sm:$0xf]
          %v879 = vld [vmem:[%s455 + $0x74] sm:$0xf]
          %v880 = vld [vmem:[%s455 + $0x78] sm:$0xf]
          %v881 = vld [vmem:[%s455 + $0x7c] sm:$0xf]
          %v914 = vunpack.c.l.b16 %v850
          %v915 = vunpack.c.l.b16 %v851
          %v916 = vunpack.c.l.b16 %v852
          %v917 = vunpack.c.l.b16 %v853
          %v918 = vunpack.c.l.b16 %v854
          %v919 = vunpack.c.l.b16 %v855
          %v920 = vunpack.c.l.b16 %v856
          %v921 = vunpack.c.l.b16 %v857
          %v922 = vunpack.c.l.b16 %v858
          %v923 = vunpack.c.l.b16 %v859
          %v924 = vunpack.c.l.b16 %v860
          %v925 = vunpack.c.l.b16 %v861
          %v926 = vunpack.c.l.b16 %v862
          %v927 = vunpack.c.l.b16 %v863
          %v928 = vunpack.c.l.b16 %v864
          %v929 = vunpack.c.l.b16 %v865
          %v930 = vunpack.c.l.b16 %v866
          %v931 = vunpack.c.l.b16 %v867
          %v932 = vunpack.c.l.b16 %v868
          %v933 = vunpack.c.l.b16 %v869
          %v934 = vunpack.c.l.b16 %v870
          %v935 = vunpack.c.l.b16 %v871
          %v936 = vunpack.c.l.b16 %v872
          %v937 = vunpack.c.l.b16 %v873
          %v938 = vunpack.c.l.b16 %v874
          %v939 = vunpack.c.l.b16 %v875
          %v940 = vunpack.c.l.b16 %v876
          %v941 = vunpack.c.l.b16 %v877
          %v942 = vunpack.c.l.b16 %v878
          %v943 = vunpack.c.l.b16 %v879
          %v944 = vunpack.c.l.b16 %v880
          %v945 = vunpack.c.l.b16 %v881
          %v946 = vpack.c.b16 %v915, %v914
          %v947 = vpack.c.b16 %v917, %v916
          %v948 = vpack.c.b16 %v919, %v918
          %v949 = vpack.c.b16 %v921, %v920
          %v950 = vpack.c.b16 %v923, %v922
          %v951 = vpack.c.b16 %v925, %v924
          %v952 = vpack.c.b16 %v927, %v926
          %v953 = vpack.c.b16 %v929, %v928
          %v954 = vpack.c.b16 %v931, %v930
          %v955 = vpack.c.b16 %v933, %v932
          %v956 = vpack.c.b16 %v935, %v934
          %v957 = vpack.c.b16 %v937, %v936
          %v958 = vpack.c.b16 %v939, %v938
          %v959 = vpack.c.b16 %v941, %v940
          %v960 = vpack.c.b16 %v943, %v942
          %v961 = vpack.c.b16 %v945, %v944
          %978 = vmatprep.subr.bf16.mxu0 0
          %979 = vmatpush1.bf16.msra.mxu0 %v946
          %980 = vmatprep.subr.bf16.mxu0 0
          %981 = vmatpush1.bf16.msra.mxu0 %v947
          %982 = vmatprep.subr.bf16.mxu0 0
          %983 = vmatpush1.bf16.msra.mxu0 %v948
          %984 = vmatprep.subr.bf16.mxu0 0
          %985 = vmatpush1.bf16.msra.mxu0 %v949
          %986 = vmatprep.subr.bf16.mxu0 0
          %987 = vmatpush1.bf16.msra.mxu0 %v950
          %988 = vmatprep.subr.bf16.mxu0 0
          %989 = vmatpush1.bf16.msra.mxu0 %v951
          %990 = vmatprep.subr.bf16.mxu0 0
          %991 = vmatpush1.bf16.msra.mxu0 %v952
          %992 = vmatprep.subr.bf16.mxu0 0
          %993 = vmatpush1.bf16.msra.mxu0 %v953
          %994 = vmatprep.subr.bf16.mxu0 0
          %995 = vmatpush1.bf16.msra.mxu0 %v954
          %996 = vmatprep.subr.bf16.mxu0 0
          %997 = vmatpush1.bf16.msra.mxu0 %v955
          %998 = vmatprep.subr.bf16.mxu0 0
          %999 = vmatpush1.bf16.msra.mxu0 %v956
          %1000 = vmatprep.subr.bf16.mxu0 0
          %1001 = vmatpush1.bf16.msra.mxu0 %v957
          %1002 = vmatprep.subr.bf16.mxu0 0
          %1003 = vmatpush1.bf16.msra.mxu0 %v958
          %1004 = vmatprep.subr.bf16.mxu0 0
          %1005 = vmatpush1.bf16.msra.mxu0 %v959
          %1006 = vmatprep.subr.bf16.mxu0 0
          %1007 = vmatpush1.bf16.msra.mxu0 %v960
          %1008 = vmatprep.subr.bf16.mxu0 0
          %1009 = vmatpush1.bf16.msra.mxu0 %v961
          %1010 = vmatprep.mubr.bf16.mxu0 %v849
          %1011 = vmatmul.mubr.bf16.gmra.mrb[0].mxu0 %v848
          %v1012 = vpop.f32.mrb[0].mxu0
          %v1013 = vadd.f32 0.0, %v1012
          %v1014 = vpop.f32.mrb[0].mxu0
          %v1015 = vpop.f32.mrb[0].mxu0
          %v1016 = vpop.f32.mrb[0].mxu0
          %1017 = vdwg.mxu0
          %v1018 = vld [vmem:[%s495] sm:$0x1f]
          %v1019 = vstv %s500
          %v1020 = vmul.f32 %v1019, %v1013
          %v1021 = vadd.f32 %v1018, %v1020
          %v1022 = vstv %s501
          %v1023 = vadd.f32 %v1021, %v1022
          %v1024 = vld [vmem:[%s2] sm:$0x1f]
          %vm1025 = vcmask 1044480
          %v1026 = vsel %vm1025, %v847, 0.0
          %v1027 = vrot.slane %v1026, 4
          %v1028 = vadd.f32 %v1026, %v1027
          %v1029 = vrot.slane %v1028, 2
          %v1030 = vadd.f32 %v1028, %v1029
          %v1031 = vrot.slane %v1030, 1
          %v1032 = vadd.f32 %v1030, %v1031
          %v1033 = vld [vmem:[%s3] sm:$0x1f]
          %1035 = vset.pattern.permute.xlu0 0
          %1036 = vperm.xlu0 %1035, %v1033
          %v1037 = vpop.permute.xlu0 %1036
          %vm1039 = vcmask 39936
          %v1041 = vsel %vm1039, %v1024, 0
          %v1044 = vsel %vm1025, %v847, 0
          %1046 = vmatprep.subr.mxu0 0.0
          %1047 = vmatpush1.msra.mxu0 %v1044
          %1048 = vmatprep.subr.mxu0 0.0
          %1049 = vmatpush1.msra.mxu0 0.0
          %1050 = vmatprep.subr.mxu0 0.0
          %1051 = vmatpush1.msra.mxu0 0.0
          %1052 = vmatprep.subr.mxu0 0.0
          %1053 = vmatpush1.msra.mxu0 0.0
          %1054 = vmatprep.subr.mxu0 0.0
          %1055 = vmatpush1.msra.mxu0 0.0
          %1056 = vmatprep.subr.mxu0 0.0
          %1057 = vmatpush1.msra.mxu0 0.0
          %1058 = vmatprep.subr.mxu0 0.0
          %1059 = vmatpush1.msra.mxu0 0.0
          %1060 = vmatprep.subr.mxu0 0.0
          %1061 = vmatpush1.msra.mxu0 0.0
          %1062 = vmatprep.subr.mxu0 0.0
          %1063 = vmatpush1.msra.mxu0 0.0
          %1064 = vmatprep.subr.mxu0 0.0
          %1065 = vmatpush1.msra.mxu0 0.0
          %1066 = vmatprep.subr.mxu0 0.0
          %1067 = vmatpush1.msra.mxu0 0.0
          %1068 = vmatprep.subr.mxu0 0.0
          %1069 = vmatpush1.msra.mxu0 0.0
          %1070 = vmatprep.subr.mxu0 0.0
          %1071 = vmatpush1.msra.mxu0 0.0
          %1072 = vmatprep.subr.mxu0 0.0
          %1073 = vmatpush1.msra.mxu0 0.0
          %1074 = vmatprep.subr.mxu0 0.0
          %1075 = vmatpush1.msra.mxu0 0.0
          %1076 = vmatprep.subr.mxu0 0.0
          %1077 = vmatpush1.msra.mxu0 0.0
          %1078 = vmatprep.subr.mxu0 0.0
          %1079 = vmatpush1.msra.mxu0 0.0
          %1080 = vmatprep.subr.mxu0 0.0
          %1081 = vmatpush1.msra.mxu0 0.0
          %1082 = vmatprep.subr.mxu0 0.0
          %1083 = vmatpush1.msra.mxu0 0.0
          %1084 = vmatprep.subr.mxu0 0.0
          %1085 = vmatpush1.msra.mxu0 0.0
          %1086 = vmatprep.subr.mxu0 0.0
          %1087 = vmatpush1.msra.mxu0 0.0
          %1088 = vmatprep.subr.mxu0 0.0
          %1089 = vmatpush1.msra.mxu0 0.0
          %1090 = vmatprep.subr.mxu0 0.0
          %1091 = vmatpush1.msra.mxu0 0.0
          %1092 = vmatprep.subr.mxu0 0.0
          %1093 = vmatpush1.msra.mxu0 0.0
          %1094 = vmatprep.subr.mxu0 0.0
          %1095 = vmatpush1.msra.mxu0 0.0
          %1096 = vmatprep.subr.mxu0 0.0
          %1097 = vmatpush1.msra.mxu0 0.0
          %1098 = vmatprep.subr.mxu0 0.0
          %1099 = vmatpush1.msra.mxu0 0.0
          %1100 = vmatprep.subr.mxu0 0.0
          %1101 = vmatpush1.msra.mxu0 0.0
          %1102 = vmatprep.subr.mxu0 0.0
          %1103 = vmatpush1.msra.mxu0 0.0
          %1104 = vmatprep.subr.mxu0 0.0
          %1105 = vmatpush1.msra.mxu0 0.0
          %1106 = vmatprep.subr.mxu0 0.0
          %1107 = vmatpush1.msra.mxu0 0.0
          %1108 = vmatprep.subr.mxu0 0.0
          %1109 = vmatpush1.msra.mxu0 0.0
          %1110 = vmatprep.mubr.f32.mxu0 0.0
          %1111 = vmatmul.mubr.f32.gmra.mrb[0].mxu0 %v1041
          %v1112 = vpop.f32.mrb[0].mxu0
          %v1113 = vadd.f32 %v1037, %v1112
          %v1114 = vpop.f32.mrb[0].mxu0
          %1115 = vdwg.mxu0
          %v1116 = vld [vmem:[%s498] sm:$0x1]
          %v1117 = vmul.f32 %v1019, %v1116
          %v1119 = vlaneseq
          %v1120 = vshrl.u32 %v1119, 7
          %v1121 = vsub.s32 0, %v1120
          %v1122 = vrot.slane %v1117, %v1121
          %v1124 = vmul.f32 %v1122, %v847
          %v1125 = vadd.f32 %v1113, %v1124
          %v1126 = vmul.f32 %v1022, %v1032
          %v1127 = vadd.f32 %v1125, %v1126
          %v1128 = vand.u32 2147483647, %v1127
          %v1129 = vstv %s502
          %v1130 = vadd.f32 %v1128, %v1129
          %v1131 = vmul.f32 %v847, %v1023
          %v1132 = vrcp.pop %v1130
          %v1133 = vmul.f32 %v1131, %v1132
          %v1134 = vsel %vm1025, %v1133, 0.0
          %v1135 = vrot.slane %v1134, 4
          %v1136 = vadd.f32 %v1134, %v1135
          %v1137 = vrot.slane %v1136, 2
          %v1138 = vadd.f32 %v1136, %v1137
          %v1139 = vrot.slane %v1138, 1
          %v1140 = vadd.f32 %v1138, %v1139
          %v1141 = vadd.f32 %v1140, %v1129
          %v1142 = vrcp.pop %v1141
          %v1143 = vmul.f32 %v1133, %v1142
          %s1144 = smul.addr %s843, 8
          %s1145 = scalar_lea.vmem [#allocation2], %s1144
          %1146 = vst [vmem:[%s1145] sm:$0x1f] %v1143
          %1147 = vst [vmem:[%s491] sm:$0x1f] %v1143
        $region105: #{supernet_forward.3} parent=84 // pred_fallthru
          _
        %s1148 = sand.u32 %s204, 1
        %s1149 = scalar_lea.sflag [#allocation5], %s1148
        %s1150 = sand.u32 %s204, 1
        %s1151 = smul.addr %s1150, 8
        %s1152 = scalar_lea.vmem [#allocation8], %s1151
        // Predicated region
        $region106: #{supernet_forward.3} parent=84 // pred_check
          %p1153 = pneg %p214
        $region107: #{supernet_forward.3} parent=84 // pred_check_branch
          %1155 = sbr.rel (%p1153) target = $region109
        $region108: #{supernet_forward.3} parent=84 // pred_region
          %s1157 = ssub.s32 128, 128
          %1158 = vsyncadd %s1149, %s1157
          %s1159 = smul.addr %s27, 128
          %s1160 = scalar_lea.hbm %s7, %s1159
          %s1162 = sshll.u32 %s1152, 4
          %s1163 = int_to_ptr.vmem [resolvable:$true] %s1162
          %1165 = dma.vmem_to_hbm [thread:$0]  %s1163, 128, %s1160, %s1149
        $region109: #{supernet_forward.3} parent=84 // pred_fallthru
          _
      $region85: #{supernet_forward.3} parent=5 // pred_fallthru
        _
      %p1166 = scmp.le.s32.totalorder 2, %s17
      // Predicated region
      $region110: #{supernet_forward.3} parent=5 // pred_check
        %p1167 = pneg %p1166
      $region111: #{supernet_forward.3} parent=5 // pred_check_branch
        %1169 = sbr.rel (%p1167) target = $region113
      $region112: #{supernet_forward.3} parent=5 // pred_region
        %s1170 = ssub.s32 %s17, 2
        // Predicated region
        $region114: #{supernet_forward.3} parent=112 // pred_check
          %p1171 = pneg %p220
        $region115: #{supernet_forward.3} parent=112 // pred_check_branch
          %1173 = sbr.rel (%p1171) target = $region117
        $region116: #{supernet_forward.3} parent=112 // pred_region
          %s1174 = sand.u32 %s205, 1
          %s1175 = scalar_lea.sflag [#allocation5], %s1174
          %s1176 = sand.u32 %s205, 1
          %s1177 = smul.addr %s1176, 8
          %s1178 = scalar_lea.vmem [#allocation8], %s1177
          %1179 = dma.done %s1175, 128
        $region117: #{supernet_forward.3} parent=112 // pred_fallthru
          _
      $region113: #{supernet_forward.3} parent=5 // pred_fallthru
        _
    $region6: #{supernet_forward.3} parent=1 // loop_footer
      %s21 = sadd.s32 1, %s17
    $region7: #{supernet_forward.3} parent=1 // loop_footer_branch
      %16 = sbr.rel target = $region3
    $region8: #{supernet_forward.3} parent=1 // loop_exit
      _
    %1180 = vsyncpa [#allocation5], 1
    %s1181 = scalar_lea.sflag [#allocation5], 1
    %1182 = vsyncpa %s1181, 1
    %1183 = vsyncpa [#allocation6], 1
    %s1184 = scalar_lea.sflag [#allocation6], 1
    %1185 = vsyncpa %s1184, 1

// kernel: supernet_forward.2
$region0: #{supernet_forward.2}
  #allocation0 [shape = 'u32[]', space=smem, size = 0x4, offset = 0x4, fixed_abs, tag = 'smem constant byte address 0x4 - core index']
  #allocation1 [shape = 'u32[144,128]{1,0:T(1,128)}', space=vmem, size = 0x12000, scoped, tag = 'internal scratch']
  %s0 = inlined_call_operand.vmem [shape: f32[2], index: 0, kind: input, shape index: {}]
  %s1 = inlined_call_operand.vmem [shape: f32[256,2], index: 1, kind: input, shape index: {}]
  %s2 = inlined_call_operand.vmem [shape: f32[256,8], index: 2, kind: input, shape index: {}]
  %s3 = inlined_call_operand.vmem [shape: f32[2,256], index: 3, kind: input, shape index: {}]
  %s4 = inlined_call_operand.vmem [shape: f32[8,256], index: 4, kind: input, shape index: {}]
  %s5 = inlined_call_operand.vmem [shape: bf16[256,256], index: 5, kind: output, shape index: {0}]
  %s6 = inlined_call_operand.vmem [shape: f32[256,1], index: 6, kind: output, shape index: {1}]
  %7 = xla_tuple %s5, %s6
  %s8 = sld [smem:[#allocation0]]
  $region65: #{supernet_forward.2} parent=0
    _
  %s10 = ssub.s32 1, %s8
  %s11 = scalar_select 0, %s10, %s8
  $region1: #{supernet_forward.2} parent=0
    #allocation2 [shape = 'u8[512]{0}', space=smem, size = 0x200, scoped, tag = 'input window, operand 0, single buffered']
    #allocation3 [shape = 's32[2]{0}', space=sflag, size = 0x8, scoped, tag = 'scoped memory for supernet_forward.2']
    %12 = vsyncpa [#allocation3], 0
    loop: start=0, step=1, limit=4
    $region2: #{supernet_forward.2} parent=1 // loop_pre_header
      _
    $region3: #{supernet_forward.2} parent=1 // loop_header
      %s14 = sphi 0, %s18
      %p15 = scmp.ge.s32.totalorder %s14, 4
      %s22 = sphi 0, %s22
      %s24 = sphi 0, %s22
      %s25 = sphi 0, %s24
      %s39 = sphi 0, %s25
      %s45 = sphi 0, %s47
      %s48 = sphi 0, %s45
      %s49 = sphi 0, %s48
      %s65 = sphi 0, %s49
      %s71 = sphi 0, %s73
      %s74 = sphi 0, %s71
      %s75 = sphi 0, %s74
      %s91 = sphi 0, %s75
      %s95 = sphi 0, %s95
      %s97 = sphi 0, %s95
      %s98 = sphi 0, %s97
      %s112 = sphi 0, %s98
      %s116 = sphi 0, %s116
      %s118 = sphi 0, %s116
      %s119 = sphi 0, %s118
      %s133 = sphi 0, %s119
      %s139 = sphi 0, %s141
      %s142 = sphi 0, %s139
      %s143 = sphi 0, %s142
      %s159 = sphi 0, %s143
      %s165 = sphi 0, %s167
      %s168 = sphi 0, %s165
      %s169 = sphi 0, %s168
      %s185 = sphi 0, %s169
    $region4: #{supernet_forward.2} parent=1 // loop_header_branch
      %17 = sbr.rel (%p15) target = $region8
    $region5: #{supernet_forward.2} parent=1 // loop_body
      %s19 = ssub.s32 %s14, 1
      %s20 = ssub.s32 %s14, 2
      %s21 = sadd.s32 %s14, 1
      %s23 = sadd.s32 %s22, 1
      %p26 = scmp.eq.s32.totalorder %s14, 1
      %p27 = scmp.ne.s32.totalorder %s22, %s24
      %p28 = scmp.eq.s32.totalorder %s14, 0
      %p29 = por %p27, %p28
      %p30 = scmp.ne.s32.totalorder %s22, %s24
      %p31 = scmp.eq.s32.totalorder %s19, 1
      %p32 = por %p30, %p31
      %p33 = scmp.ne.s32.totalorder %s24, %s25
      %p34 = scmp.eq.s32.totalorder %s19, 0
      %p35 = por %p33, %p34
      %p36 = scmp.ne.s32.totalorder %s24, %s25
      %p37 = scmp.eq.s32.totalorder %s20, 1
      %p38 = por %p36, %p37
      %p40 = scmp.ne.s32.totalorder %s25, %s39
      %p41 = scmp.eq.s32.totalorder %s20, 0
      %p42 = por %p40, %p41
      %s43 = ssub.s32 %s14, %s21
      %p44 = scmp.eq.s32.totalorder %s43, 0
      %s46 = sadd.s32 %s45, 1
      %s47 = scalar_select %p44, %s45, %s46
      %p50 = pneg %p44
      %p51 = scmp.eq.s32.totalorder %s14, 1
      %p52 = por %p50, %p51
      %p53 = scmp.ne.s32.totalorder %s45, %s48
      %p54 = scmp.eq.s32.totalorder %s14, 0
      %p55 = por %p53, %p54
      %p56 = scmp.ne.s32.totalorder %s45, %s48
      %p57 = scmp.eq.s32.totalorder %s19, 1
      %p58 = por %p56, %p57
      %p59 = scmp.ne.s32.totalorder %s48, %s49
      %p60 = scmp.eq.s32.totalorder %s19, 0
      %p61 = por %p59, %p60
      %p62 = scmp.ne.s32.totalorder %s48, %s49
      %p63 = scmp.eq.s32.totalorder %s20, 1
      %p64 = por %p62, %p63
      %p66 = scmp.ne.s32.totalorder %s49, %s65
      %p67 = scmp.eq.s32.totalorder %s20, 0
      %p68 = por %p66, %p67
      %s69 = ssub.s32 %s14, %s21
      %p70 = scmp.eq.s32.totalorder %s69, 0
      %s72 = sadd.s32 %s71, 1
      %s73 = scalar_select %p70, %s71, %s72
      %p76 = pneg %p70
      %p77 = scmp.eq.s32.totalorder %s14, 1
      %p78 = por %p76, %p77
      %p79 = scmp.ne.s32.totalorder %s71, %s74
      %p80 = scmp.eq.s32.totalorder %s14, 0
      %p81 = por %p79, %p80
      %p82 = scmp.ne.s32.totalorder %s71, %s74
      %p83 = scmp.eq.s32.totalorder %s19, 1
      %p84 = por %p82, %p83
      %p85 = scmp.ne.s32.totalorder %s74, %s75
      %p86 = scmp.eq.s32.totalorder %s19, 0
      %p87 = por %p85, %p86
      %p88 = scmp.ne.s32.totalorder %s74, %s75
      %p89 = scmp.eq.s32.totalorder %s20, 1
      %p90 = por %p88, %p89
      %p92 = scmp.ne.s32.totalorder %s75, %s91
      %p93 = scmp.eq.s32.totalorder %s20, 0
      %p94 = por %p92, %p93
      %s96 = sadd.s32 %s95, 1
      %p99 = scmp.eq.s32.totalorder %s14, 1
      %p100 = scmp.ne.s32.totalorder %s95, %s97
      %p101 = scmp.eq.s32.totalorder %s14, 0
      %p102 = por %p100, %p101
      %p103 = scmp.ne.s32.totalorder %s95, %s97
      %p104 = scmp.eq.s32.totalorder %s19, 1
      %p105 = por %p103, %p104
      %p106 = scmp.ne.s32.totalorder %s97, %s98
      %p107 = scmp.eq.s32.totalorder %s19, 0
      %p108 = por %p106, %p107
      %p109 = scmp.ne.s32.totalorder %s97, %s98
      %p110 = scmp.eq.s32.totalorder %s20, 1
      %p111 = por %p109, %p110
      %p113 = scmp.ne.s32.totalorder %s98, %s112
      %p114 = scmp.eq.s32.totalorder %s20, 0
      %p115 = por %p113, %p114
      %s117 = sadd.s32 %s116, 1
      %p120 = scmp.eq.s32.totalorder %s14, 1
      %p121 = scmp.ne.s32.totalorder %s116, %s118
      %p122 = scmp.eq.s32.totalorder %s14, 0
      %p123 = por %p121, %p122
      %p124 = scmp.ne.s32.totalorder %s116, %s118
      %p125 = scmp.eq.s32.totalorder %s19, 1
      %p126 = por %p124, %p125
      %p127 = scmp.ne.s32.totalorder %s118, %s119
      %p128 = scmp.eq.s32.totalorder %s19, 0
      %p129 = por %p127, %p128
      %p130 = scmp.ne.s32.totalorder %s118, %s119
      %p131 = scmp.eq.s32.totalorder %s20, 1
      %p132 = por %p130, %p131
      %p134 = scmp.ne.s32.totalorder %s119, %s133
      %p135 = scmp.eq.s32.totalorder %s20, 0
      %p136 = por %p134, %p135
      %s137 = ssub.s32 %s14, %s21
      %p138 = scmp.eq.s32.totalorder %s137, 0
      %s140 = sadd.s32 %s139, 1
      %s141 = scalar_select %p138, %s139, %s140
      %p144 = pneg %p138
      %p145 = scmp.eq.s32.totalorder %s14, 1
      %p146 = por %p144, %p145
      %p147 = scmp.ne.s32.totalorder %s139, %s142
      %p148 = scmp.eq.s32.totalorder %s14, 0
      %p149 = por %p147, %p148
      %p150 = scmp.ne.s32.totalorder %s139, %s142
      %p151 = scmp.eq.s32.totalorder %s19, 1
      %p152 = por %p150, %p151
      %p153 = scmp.ne.s32.totalorder %s142, %s143
      %p154 = scmp.eq.s32.totalorder %s19, 0
      %p155 = por %p153, %p154
      %p156 = scmp.ne.s32.totalorder %s142, %s143
      %p157 = scmp.eq.s32.totalorder %s20, 1
      %p158 = por %p156, %p157
      %p160 = scmp.ne.s32.totalorder %s143, %s159
      %p161 = scmp.eq.s32.totalorder %s20, 0
      %p162 = por %p160, %p161
      %s163 = ssub.s32 %s14, %s21
      %p164 = scmp.eq.s32.totalorder %s163, 0
      %s166 = sadd.s32 %s165, 1
      %s167 = scalar_select %p164, %s165, %s166
      %p170 = pneg %p164
      %p171 = scmp.eq.s32.totalorder %s14, 1
      %p172 = por %p170, %p171
      %p173 = scmp.ne.s32.totalorder %s165, %s168
      %p174 = scmp.eq.s32.totalorder %s14, 0
      %p175 = por %p173, %p174
      %p176 = scmp.ne.s32.totalorder %s165, %s168
      %p177 = scmp.eq.s32.totalorder %s19, 1
      %p178 = por %p176, %p177
      %p179 = scmp.ne.s32.totalorder %s168, %s169
      %p180 = scmp.eq.s32.totalorder %s19, 0
      %p181 = por %p179, %p180
      %p182 = scmp.ne.s32.totalorder %s168, %s169
      %p183 = scmp.eq.s32.totalorder %s20, 1
      %p184 = por %p182, %p183
      %p186 = scmp.ne.s32.totalorder %s169, %s185
      %p187 = scmp.eq.s32.totalorder %s20, 0
      %p188 = por %p186, %p187
      %p189 = scmp.le.s32.totalorder 1, %s14
      %p190 = scmp.lt.s32.totalorder %s14, 3
      %p191 = pnand %p189, %p190
      %p192 = pneg %p191
      // Predicated region
      $region9: #{supernet_forward.2} parent=5 // pred_check
        _
      $region10: #{supernet_forward.2} parent=5 // pred_check_branch
        %194 = sbr.rel (%p191) target = $region12
      $region11: #{supernet_forward.2} parent=5 // pred_region
        %s195 = ssub.s32 %s14, 1
        // Predicated region
        $region13: #{supernet_forward.2} parent=11 // pred_check
          %p196 = pneg %p35
        $region14: #{supernet_forward.2} parent=11 // pred_check_branch
          %198 = sbr.rel (%p196) target = $region16
        $region15: #{supernet_forward.2} parent=11 // pred_region
          %s200 = ssub.s32 16, 16
          %201 = vsyncadd [#allocation3], %s200
          %s203 = sshll.u32 %s0, 4
          %s204 = int_to_ptr.vmem [resolvable:$true] %s203
          %206 = dma.vmem_to_smem %s204, 16, [#allocation2], [#allocation3]
        $region16: #{supernet_forward.2} parent=11 // pred_fallthru
          _
        // Predicated region
        $region17: #{supernet_forward.2} parent=11 // pred_check
          %p207 = pneg %p108
        $region18: #{supernet_forward.2} parent=11 // pred_check_branch
          %209 = sbr.rel (%p207) target = $region20
        $region19: #{supernet_forward.2} parent=11 // pred_region
          _
        $region20: #{supernet_forward.2} parent=11 // pred_fallthru
          _
        // Predicated region
        $region21: #{supernet_forward.2} parent=11 // pred_check
          %p210 = pneg %p129
        $region22: #{supernet_forward.2} parent=11 // pred_check_branch
          %212 = sbr.rel (%p210) target = $region24
        $region23: #{supernet_forward.2} parent=11 // pred_region
          _
        $region24: #{supernet_forward.2} parent=11 // pred_fallthru
          _
      $region12: #{supernet_forward.2} parent=5 // pred_fallthru
        _
      %p213 = scmp.lt.s32.totalorder %s14, 2
      // Predicated region
      $region25: #{supernet_forward.2} parent=5 // pred_check
        %p214 = pneg %p213
      $region26: #{supernet_forward.2} parent=5 // pred_check_branch
        %216 = sbr.rel (%p214) target = $region28
      $region27: #{supernet_forward.2} parent=5 // pred_region
        // Predicated region
        $region29: #{supernet_forward.2} parent=27 // pred_check
          %p217 = pneg %p55
        $region30: #{supernet_forward.2} parent=27 // pred_check_branch
          %219 = sbr.rel (%p217) target = $region32
        $region31: #{supernet_forward.2} parent=27 // pred_region
          %s220 = smul.u32 16, %s14
          %p221 = scmp.lt.s32.totalorder %s220, 31
          %s222 = scalar_select %p221, %s220, 31
          %s223 = smul.addr %s222, 8
          %s224 = scalar_lea.vmem %s1, %s223
          %s225 = smul.u32 16, %s14
        $region32: #{supernet_forward.2} parent=27 // pred_fallthru
          _
        // Predicated region
        $region33: #{supernet_forward.2} parent=27 // pred_check
          %p226 = pneg %p81
        $region34: #{supernet_forward.2} parent=27 // pred_check_branch
          %228 = sbr.rel (%p226) target = $region36
        $region35: #{supernet_forward.2} parent=27 // pred_region
          %s229 = smul.u32 16, %s14
          %p230 = scmp.lt.s32.totalorder %s229, 31
          %s231 = scalar_select %p230, %s229, 31
          %s232 = smul.addr %s231, 8
          %s233 = scalar_lea.vmem %s2, %s232
          %s234 = smul.u32 16, %s14
        $region36: #{supernet_forward.2} parent=27 // pred_fallthru
          _
      $region28: #{supernet_forward.2} parent=5 // pred_fallthru
        _
      %p235 = scmp.le.s32.totalorder 1, %s14
      %p236 = scmp.lt.s32.totalorder %s14, 3
      %p237 = pnand %p235, %p236
      %p238 = pneg %p237
      // Predicated region
      $region37: #{supernet_forward.2} parent=5 // pred_check
        _
      $region38: #{supernet_forward.2} parent=5 // pred_check_branch
        %240 = sbr.rel (%p237) target = $region40
      $region39: #{supernet_forward.2} parent=5 // pred_region
        %s241 = ssub.s32 %s14, 1
        // Predicated region
        $region41: #{supernet_forward.2} parent=39 // pred_check
          %p242 = pneg %p35
        $region42: #{supernet_forward.2} parent=39 // pred_check_branch
          %244 = sbr.rel (%p242) target = $region44
        $region43: #{supernet_forward.2} parent=39 // pred_region
          %245 = dma.done [#allocation3], 16
        $region44: #{supernet_forward.2} parent=39 // pred_fallthru
          _
        %246 = sfence
        %p247 = pneg %p35
        %p248 = pneg %p32
        %s249 = smul.u32 16, %s19
        %p250 = scmp.lt.s32.totalorder %s249, 31
        %s251 = scalar_select %p250, %s249, 31
        %s252 = smul.addr %s251, 8
        %s253 = scalar_lea.vmem %s1, %s252
        %p254 = pneg %p61
        %p255 = pneg %p58
        %s256 = smul.u32 16, %s19
        %p257 = scmp.lt.s32.totalorder %s256, 31
        %s258 = scalar_select %p257, %s256, 31
        %s259 = smul.addr %s258, 8
        %s260 = scalar_lea.vmem %s2, %s259
        %p261 = pneg %p87
        %p262 = pneg %p84
        %p263 = pneg %p108
        %p264 = pneg %p105
        %p265 = pneg %p129
        %p266 = pneg %p126
        %p267 = pneg %p155
        %p268 = pneg %p152
        %s269 = smul.u32 16, %s19
        %p270 = scmp.lt.s32.totalorder %s269, 31
        %s271 = scalar_select %p270, %s269, 31
        %s272 = smul.addr %s271, 2
        %s273 = smul.addr %s272, 4
        %s274 = scalar_lea.vmem %s5, %s273
        %p275 = pneg %p181
        %p276 = pneg %p178
        %s277 = smul.u32 16, %s19
        %p278 = scmp.lt.s32.totalorder %s277, 31
        %s279 = scalar_select %p278, %s277, 31
        %s280 = smul.addr %s279, 8
        %s281 = scalar_lea.vmem %s6, %s280
        %s282 = smul.u32 16, %s19
        %p283 = scmp.lt.s32.totalorder %s282, 31
        %s284 = scalar_select %p283, %s282, 31
        %s285 = smul.addr %s284, 8
        %s286 = scalar_lea.vmem %s1, %s285
        %s287 = smul.u32 16, %s19
        %s288 = smul.u32 16, %s19
        %p289 = scmp.lt.s32.totalorder %s288, 31
        %s290 = scalar_select %p289, %s288, 31
        %s291 = smul.addr %s290, 8
        %s292 = scalar_lea.vmem %s2, %s291
        %s293 = smul.u32 16, %s19
        %s294 = smul.u32 16, %s19
        %p295 = scmp.lt.s32.totalorder %s294, 31
        %s296 = scalar_select %p295, %s294, 31
        %s297 = smul.addr %s296, 2
        %s298 = smul.addr %s297, 4
        %s299 = scalar_lea.vmem %s5, %s298
        %s300 = smul.u32 16, %s19
        %s301 = smul.u32 16, %s19
        %p302 = scmp.lt.s32.totalorder %s301, 31
        %s303 = scalar_select %p302, %s301, 31
        %s304 = smul.addr %s303, 8
        %s305 = scalar_lea.vmem %s6, %s304
        %s306 = smul.u32 16, %s19
        %s307 = sld [smem:[#allocation2]]
        %s308 = sld [smem:[#allocation2 + $0x1]]
        %v309 = vld [vmem:[%s286] sm:$0xff]
        %v310 = vld [vmem:[%s286 + $0x8] sm:$0xff]
        %v311 = vld [vmem:[%s286 + $0x10] sm:$0xff]
        %v312 = vld [vmem:[%s286 + $0x18] sm:$0xff]
        %v313 = vld [vmem:[%s286 + $0x20] sm:$0xff]
        %v314 = vld [vmem:[%s286 + $0x28] sm:$0xff]
        %v315 = vld [vmem:[%s286 + $0x30] sm:$0xff]
        %v316 = vld [vmem:[%s286 + $0x38] sm:$0xff]
        %v317 = vld [vmem:[%s286 + $0x40] sm:$0xff]
        %v318 = vld [vmem:[%s286 + $0x48] sm:$0xff]
        %v319 = vld [vmem:[%s286 + $0x50] sm:$0xff]
        %v320 = vld [vmem:[%s286 + $0x58] sm:$0xff]
        %v321 = vld [vmem:[%s286 + $0x60] sm:$0xff]
        %v322 = vld [vmem:[%s286 + $0x68] sm:$0xff]
        %v323 = vld [vmem:[%s286 + $0x70] sm:$0xff]
        %v324 = vld [vmem:[%s286 + $0x78] sm:$0xff]
        %v325 = vld [vmem:[%s3] ss:$2 sm:$0x3]
        %s326 = scalar_lea.vmem %s3, 1
        %v327 = vld [vmem:[%s326] ss:$2 sm:$0x3]
        %329 = vset.pattern.permute.xlu0 0
        %330 = vperm.xlu0 %329, %v309
        %v331 = vpop.permute.xlu0 %330
        %334 = vset.pattern.permute.xlu0 0
        %335 = vperm.xlu0 %334, %v310
        %v336 = vpop.permute.xlu0 %335
        %339 = vset.pattern.permute.xlu0 0
        %340 = vperm.xlu0 %339, %v311
        %v341 = vpop.permute.xlu0 %340
        %344 = vset.pattern.permute.xlu0 0
        %345 = vperm.xlu0 %344, %v312
        %v346 = vpop.permute.xlu0 %345
        %349 = vset.pattern.permute.xlu0 0
        %350 = vperm.xlu0 %349, %v313
        %v351 = vpop.permute.xlu0 %350
        %354 = vset.pattern.permute.xlu0 0
        %355 = vperm.xlu0 %354, %v314
        %v356 = vpop.permute.xlu0 %355
        %359 = vset.pattern.permute.xlu0 0
        %360 = vperm.xlu0 %359, %v315
        %v361 = vpop.permute.xlu0 %360
        %364 = vset.pattern.permute.xlu0 0
        %365 = vperm.xlu0 %364, %v316
        %v366 = vpop.permute.xlu0 %365
        %369 = vset.pattern.permute.xlu0 0
        %370 = vperm.xlu0 %369, %v317
        %v371 = vpop.permute.xlu0 %370
        %374 = vset.pattern.permute.xlu0 0
        %375 = vperm.xlu0 %374, %v318
        %v376 = vpop.permute.xlu0 %375
        %379 = vset.pattern.permute.xlu0 0
        %380 = vperm.xlu0 %379, %v319
        %v381 = vpop.permute.xlu0 %380
        %384 = vset.pattern.permute.xlu0 0
        %385 = vperm.xlu0 %384, %v320
        %v386 = vpop.permute.xlu0 %385
        %389 = vset.pattern.permute.xlu0 0
        %390 = vperm.xlu0 %389, %v321
        %v391 = vpop.permute.xlu0 %390
        %394 = vset.pattern.permute.xlu0 0
        %395 = vperm.xlu0 %394, %v322
        %v396 = vpop.permute.xlu0 %395
        %399 = vset.pattern.permute.xlu0 0
        %400 = vperm.xlu0 %399, %v323
        %v401 = vpop.permute.xlu0 %400
        %404 = vset.pattern.permute.xlu0 0
        %405 = vperm.xlu0 %404, %v324
        %v406 = vpop.permute.xlu0 %405
        %v409 = vlaneseq
        %v410 = vshrl.u32 %v409, 7
        %v411 = vsub.s32 0, %v410
        %v412 = vrot.slane %v325, %v411
        %v413 = vlaneseq
        %v414 = vshrl.u32 %v413, 7
        %v415 = vsub.s32 1, %v414
        %v416 = vrot.slane %v325, %v415
        %v419 = vsub.f32 %v331, %v412
        %v420 = vsub.f32 %v331, %v416
        %v421 = vsub.f32 %v336, %v412
        %v422 = vsub.f32 %v336, %v416
        %v423 = vsub.f32 %v341, %v412
        %v424 = vsub.f32 %v341, %v416
        %v425 = vsub.f32 %v346, %v412
        %v426 = vsub.f32 %v346, %v416
        %v427 = vsub.f32 %v351, %v412
        %v428 = vsub.f32 %v351, %v416
        %v429 = vsub.f32 %v356, %v412
        %v430 = vsub.f32 %v356, %v416
        %v431 = vsub.f32 %v361, %v412
        %v432 = vsub.f32 %v361, %v416
        %v433 = vsub.f32 %v366, %v412
        %v434 = vsub.f32 %v366, %v416
        %v435 = vsub.f32 %v371, %v412
        %v436 = vsub.f32 %v371, %v416
        %v437 = vsub.f32 %v376, %v412
        %v438 = vsub.f32 %v376, %v416
        %v439 = vsub.f32 %v381, %v412
        %v440 = vsub.f32 %v381, %v416
        %v441 = vsub.f32 %v386, %v412
        %v442 = vsub.f32 %v386, %v416
        %v443 = vsub.f32 %v391, %v412
        %v444 = vsub.f32 %v391, %v416
        %v445 = vsub.f32 %v396, %v412
        %v446 = vsub.f32 %v396, %v416
        %v447 = vsub.f32 %v401, %v412
        %v448 = vsub.f32 %v401, %v416
        %v449 = vsub.f32 %v406, %v412
        %v450 = vsub.f32 %v406, %v416
        %451 = vset.pattern.permute.xlu0 1
        %452 = vperm.xlu0 %451, %v309
        %v453 = vpop.permute.xlu0 %452
        %455 = vset.pattern.permute.xlu0 1
        %456 = vperm.xlu0 %455, %v310
        %v457 = vpop.permute.xlu0 %456
        %459 = vset.pattern.permute.xlu0 1
        %460 = vperm.xlu0 %459, %v311
        %v461 = vpop.permute.xlu0 %460
        %463 = vset.pattern.permute.xlu0 1
        %464 = vperm.xlu0 %463, %v312
        %v465 = vpop.permute.xlu0 %464
        %467 = vset.pattern.permute.xlu0 1
        %468 = vperm.xlu0 %467, %v313
        %v469 = vpop.permute.xlu0 %468
        %471 = vset.pattern.permute.xlu0 1
        %472 = vperm.xlu0 %471, %v314
        %v473 = vpop.permute.xlu0 %472
        %475 = vset.pattern.permute.xlu0 1
        %476 = vperm.xlu0 %475, %v315
        %v477 = vpop.permute.xlu0 %476
        %479 = vset.pattern.permute.xlu0 1
        %480 = vperm.xlu0 %479, %v316
        %v481 = vpop.permute.xlu0 %480
        %483 = vset.pattern.permute.xlu0 1
        %484 = vperm.xlu0 %483, %v317
        %v485 = vpop.permute.xlu0 %484
        %487 = vset.pattern.permute.xlu0 1
        %488 = vperm.xlu0 %487, %v318
        %v489 = vpop.permute.xlu0 %488
        %491 = vset.pattern.permute.xlu0 1
        %492 = vperm.xlu0 %491, %v319
        %v493 = vpop.permute.xlu0 %492
        %495 = vset.pattern.permute.xlu0 1
        %496 = vperm.xlu0 %495, %v320
        %v497 = vpop.permute.xlu0 %496
        %499 = vset.pattern.permute.xlu0 1
        %500 = vperm.xlu0 %499, %v321
        %v501 = vpop.permute.xlu0 %500
        %503 = vset.pattern.permute.xlu0 1
        %504 = vperm.xlu0 %503, %v322
        %v505 = vpop.permute.xlu0 %504
        %507 = vset.pattern.permute.xlu0 1
        %508 = vperm.xlu0 %507, %v323
        %v509 = vpop.permute.xlu0 %508
        %511 = vset.pattern.permute.xlu0 1
        %512 = vperm.xlu0 %511, %v324
        %v513 = vpop.permute.xlu0 %512
        %v516 = vlaneseq
        %v517 = vshrl.u32 %v516, 7
        %v518 = vsub.s32 0, %v517
        %v519 = vrot.slane %v327, %v518
        %v520 = vlaneseq
        %v521 = vshrl.u32 %v520, 7
        %v522 = vsub.s32 1, %v521
        %v523 = vrot.slane %v327, %v522
        %v526 = vsub.f32 %v453, %v519
        %v527 = vsub.f32 %v453, %v523
        %v528 = vsub.f32 %v457, %v519
        %v529 = vsub.f32 %v457, %v523
        %v530 = vsub.f32 %v461, %v519
        %v531 = vsub.f32 %v461, %v523
        %v532 = vsub.f32 %v465, %v519
        %v533 = vsub.f32 %v465, %v523
        %v534 = vsub.f32 %v469, %v519
        %v535 = vsub.f32 %v469, %v523
        %v536 = vsub.f32 %v473, %v519
        %v537 = vsub.f32 %v473, %v523
        %v538 = vsub.f32 %v477, %v519
        %v539 = vsub.f32 %v477, %v523
        %v540 = vsub.f32 %v481, %v519
        %v541 = vsub.f32 %v481, %v523
        %v542 = vsub.f32 %v485, %v519
        %v543 = vsub.f32 %v485, %v523
        %v544 = vsub.f32 %v489, %v519
        %v545 = vsub.f32 %v489, %v523
        %v546 = vsub.f32 %v493, %v519
        %v547 = vsub.f32 %v493, %v523
        %v548 = vsub.f32 %v497, %v519
        %v549 = vsub.f32 %v497, %v523
        %v550 = vsub.f32 %v501, %v519
        %v551 = vsub.f32 %v501, %v523
        %v552 = vsub.f32 %v505, %v519
        %v553 = vsub.f32 %v505, %v523
        %v554 = vsub.f32 %v509, %v519
        %v555 = vsub.f32 %v509, %v523
        %v556 = vsub.f32 %v513, %v519
        %v557 = vsub.f32 %v513, %v523
        %v558 = vmul.f32 %v419, %v419
        %v559 = vmul.f32 %v420, %v420
        %v560 = vmul.f32 %v421, %v421
        %v561 = vmul.f32 %v422, %v422
        %v562 = vmul.f32 %v423, %v423
        %v563 = vmul.f32 %v424, %v424
        %v564 = vmul.f32 %v425, %v425
        %v565 = vmul.f32 %v426, %v426
        %v566 = vmul.f32 %v427, %v427
        %v567 = vmul.f32 %v428, %v428
        %v568 = vmul.f32 %v429, %v429
        %v569 = vmul.f32 %v430, %v430
        %v570 = vmul.f32 %v431, %v431
        %v571 = vmul.f32 %v432, %v432
        %v572 = vmul.f32 %v433, %v433
        %v573 = vmul.f32 %v434, %v434
        %v574 = vmul.f32 %v435, %v435
        %v575 = vmul.f32 %v436, %v436
        %v576 = vmul.f32 %v437, %v437
        %v577 = vmul.f32 %v438, %v438
        %v578 = vmul.f32 %v439, %v439
        %v579 = vmul.f32 %v440, %v440
        %v580 = vmul.f32 %v441, %v441
        %v581 = vmul.f32 %v442, %v442
        %v582 = vmul.f32 %v443, %v443
        %v583 = vmul.f32 %v444, %v444
        %v584 = vmul.f32 %v445, %v445
        %v585 = vmul.f32 %v446, %v446
        %v586 = vmul.f32 %v447, %v447
        %v587 = vmul.f32 %v448, %v448
        %v588 = vmul.f32 %v449, %v449
        %v589 = vmul.f32 %v450, %v450
        %v590 = vmul.f32 %v526, %v526
        %v591 = vmul.f32 %v527, %v527
        %v592 = vmul.f32 %v528, %v528
        %v593 = vmul.f32 %v529, %v529
        %v594 = vmul.f32 %v530, %v530
        %v595 = vmul.f32 %v531, %v531
        %v596 = vmul.f32 %v532, %v532
        %v597 = vmul.f32 %v533, %v533
        %v598 = vmul.f32 %v534, %v534
        %v599 = vmul.f32 %v535, %v535
        %v600 = vmul.f32 %v536, %v536
        %v601 = vmul.f32 %v537, %v537
        %v602 = vmul.f32 %v538, %v538
        %v603 = vmul.f32 %v539, %v539
        %v604 = vmul.f32 %v540, %v540
        %v605 = vmul.f32 %v541, %v541
        %v606 = vmul.f32 %v542, %v542
        %v607 = vmul.f32 %v543, %v543
        %v608 = vmul.f32 %v544, %v544
        %v609 = vmul.f32 %v545, %v545
        %v610 = vmul.f32 %v546, %v546
        %v611 = vmul.f32 %v547, %v547
        %v612 = vmul.f32 %v548, %v548
        %v613 = vmul.f32 %v549, %v549
        %v614 = vmul.f32 %v550, %v550
        %v615 = vmul.f32 %v551, %v551
        %v616 = vmul.f32 %v552, %v552
        %v617 = vmul.f32 %v553, %v553
        %v618 = vmul.f32 %v554, %v554
        %v619 = vmul.f32 %v555, %v555
        %v620 = vmul.f32 %v556, %v556
        %v621 = vmul.f32 %v557, %v557
        %v622 = vadd.f32 %v558, %v590
        %v623 = vadd.f32 %v559, %v591
        %v624 = vadd.f32 %v560, %v592
        %v625 = vadd.f32 %v561, %v593
        %v626 = vadd.f32 %v562, %v594
        %v627 = vadd.f32 %v563, %v595
        %v628 = vadd.f32 %v564, %v596
        %v629 = vadd.f32 %v565, %v597
        %v630 = vadd.f32 %v566, %v598
        %v631 = vadd.f32 %v567, %v599
        %v632 = vadd.f32 %v568, %v600
        %v633 = vadd.f32 %v569, %v601
        %v634 = vadd.f32 %v570, %v602
        %v635 = vadd.f32 %v571, %v603
        %v636 = vadd.f32 %v572, %v604
        %v637 = vadd.f32 %v573, %v605
        %v638 = vadd.f32 %v574, %v606
        %v639 = vadd.f32 %v575, %v607
        %v640 = vadd.f32 %v576, %v608
        %v641 = vadd.f32 %v577, %v609
        %v642 = vadd.f32 %v578, %v610
        %v643 = vadd.f32 %v579, %v611
        %v644 = vadd.f32 %v580, %v612
        %v645 = vadd.f32 %v581, %v613
        %v646 = vadd.f32 %v582, %v614
        %v647 = vadd.f32 %v583, %v615
        %v648 = vadd.f32 %v584, %v616
        %v649 = vadd.f32 %v585, %v617
        %v650 = vadd.f32 %v586, %v618
        %v651 = vadd.f32 %v587, %v619
        %v652 = vadd.f32 %v588, %v620
        %v653 = vadd.f32 %v589, %v621
        %v654 = vld [vmem:[%s292] sm:$0xff]
        %v655 = vld [vmem:[%s292 + $0x8] sm:$0xff]
        %v656 = vld [vmem:[%s292 + $0x10] sm:$0xff]
        %v657 = vld [vmem:[%s292 + $0x18] sm:$0xff]
        %v658 = vld [vmem:[%s292 + $0x20] sm:$0xff]
        %v659 = vld [vmem:[%s292 + $0x28] sm:$0xff]
        %v660 = vld [vmem:[%s292 + $0x30] sm:$0xff]
        %v661 = vld [vmem:[%s292 + $0x38] sm:$0xff]
        %v662 = vld [vmem:[%s292 + $0x40] sm:$0xff]
        %v663 = vld [vmem:[%s292 + $0x48] sm:$0xff]
        %v664 = vld [vmem:[%s292 + $0x50] sm:$0xff]
        %v665 = vld [vmem:[%s292 + $0x58] sm:$0xff]
        %v666 = vld [vmem:[%s292 + $0x60] sm:$0xff]
        %v667 = vld [vmem:[%s292 + $0x68] sm:$0xff]
        %v668 = vld [vmem:[%s292 + $0x70] sm:$0xff]
        %v669 = vld [vmem:[%s292 + $0x78] sm:$0xff]
        %v670 = vld [vmem:[%s4] ss:$8 sm:$0x3]
        %672 = vset.pattern.permute.xlu0 0
        %673 = vperm.xlu0 %672, %v654
        %v674 = vpop.permute.xlu0 %673
        %677 = vset.pattern.permute.xlu0 0
        %678 = vperm.xlu0 %677, %v655
        %v679 = vpop.permute.xlu0 %678
        %682 = vset.pattern.permute.xlu0 0
        %683 = vperm.xlu0 %682, %v656
        %v684 = vpop.permute.xlu0 %683
        %687 = vset.pattern.permute.xlu0 0
        %688 = vperm.xlu0 %687, %v657
        %v689 = vpop.permute.xlu0 %688
        %692 = vset.pattern.permute.xlu0 0
        %693 = vperm.xlu0 %692, %v658
        %v694 = vpop.permute.xlu0 %693
        %697 = vset.pattern.permute.xlu0 0
        %698 = vperm.xlu0 %697, %v659
        %v699 = vpop.permute.xlu0 %698
        %702 = vset.pattern.permute.xlu0 0
        %703 = vperm.xlu0 %702, %v660
        %v704 = vpop.permute.xlu0 %703
        %707 = vset.pattern.permute.xlu0 0
        %708 = vperm.xlu0 %707, %v661
        %v709 = vpop.permute.xlu0 %708
        %712 = vset.pattern.permute.xlu0 0
        %713 = vperm.xlu0 %712, %v662
        %v714 = vpop.permute.xlu0 %713
        %717 = vset.pattern.permute.xlu0 0
        %718 = vperm.xlu0 %717, %v663
        %v719 = vpop.permute.xlu0 %718
        %722 = vset.pattern.permute.xlu0 0
        %723 = vperm.xlu0 %722, %v664
        %v724 = vpop.permute.xlu0 %723
        %727 = vset.pattern.permute.xlu0 0
        %728 = vperm.xlu0 %727, %v665
        %v729 = vpop.permute.xlu0 %728
        %732 = vset.pattern.permute.xlu0 0
        %733 = vperm.xlu0 %732, %v666
        %v734 = vpop.permute.xlu0 %733
        %737 = vset.pattern.permute.xlu0 0
        %738 = vperm.xlu0 %737, %v667
        %v739 = vpop.permute.xlu0 %738
        %742 = vset.pattern.permute.xlu0 0
        %743 = vperm.xlu0 %742, %v668
        %v744 = vpop.permute.xlu0 %743
        %747 = vset.pattern.permute.xlu0 0
        %748 = vperm.xlu0 %747, %v669
        %v749 = vpop.permute.xlu0 %748
        %v752 = vlaneseq
        %v753 = vshrl.u32 %v752, 7
        %v754 = vsub.s32 0, %v753
        %v755 = vrot.slane %v670, %v754
        %v756 = vlaneseq
        %v757 = vshrl.u32 %v756, 7
        %v758 = vsub.s32 1, %v757
        %v759 = vrot.slane %v670, %v758
        %v762 = vsub.f32 %v674, %v755
        %v763 = vsub.f32 %v674, %v759
        %v764 = vsub.f32 %v679, %v755
        %v765 = vsub.f32 %v679, %v759
        %v766 = vsub.f32 %v684, %v755
        %v767 = vsub.f32 %v684, %v759
        %v768 = vsub.f32 %v689, %v755
        %v769 = vsub.f32 %v689, %v759
        %v770 = vsub.f32 %v694, %v755
        %v771 = vsub.f32 %v694, %v759
        %v772 = vsub.f32 %v699, %v755
        %v773 = vsub.f32 %v699, %v759
        %v774 = vsub.f32 %v704, %v755
        %v775 = vsub.f32 %v704, %v759
        %v776 = vsub.f32 %v709, %v755
        %v777 = vsub.f32 %v709, %v759
        %v778 = vsub.f32 %v714, %v755
        %v779 = vsub.f32 %v714, %v759
        %v780 = vsub.f32 %v719, %v755
        %v781 = vsub.f32 %v719, %v759
        %v782 = vsub.f32 %v724, %v755
        %v783 = vsub.f32 %v724, %v759
        %v784 = vsub.f32 %v729, %v755
        %v785 = vsub.f32 %v729, %v759
        %v786 = vsub.f32 %v734, %v755
        %v787 = vsub.f32 %v734, %v759
        %v788 = vsub.f32 %v739, %v755
        %v789 = vsub.f32 %v739, %v759
        %v790 = vsub.f32 %v744, %v755
        %v791 = vsub.f32 %v744, %v759
        %v792 = vsub.f32 %v749, %v755
        %v793 = vsub.f32 %v749, %v759
        %v794 = vand.u32 2147483647, %v762
        %v795 = vand.u32 2147483647, %v763
        %v796 = vand.u32 2147483647, %v764
        %v797 = vand.u32 2147483647, %v765
        %v798 = vand.u32 2147483647, %v766
        %v799 = vand.u32 2147483647, %v767
        %v800 = vand.u32 2147483647, %v768
        %v801 = vand.u32 2147483647, %v769
        %v802 = vand.u32 2147483647, %v770
        %v803 = vand.u32 2147483647, %v771
        %v804 = vand.u32 2147483647, %v772
        %v805 = vand.u32 2147483647, %v773
        %v806 = vand.u32 2147483647, %v774
        %v807 = vand.u32 2147483647, %v775
        %v808 = vand.u32 2147483647, %v776
        %v809 = vand.u32 2147483647, %v777
        %v810 = vand.u32 2147483647, %v778
        %v811 = vand.u32 2147483647, %v779
        %v812 = vand.u32 2147483647, %v780
        %v813 = vand.u32 2147483647, %v781
        %v814 = vand.u32 2147483647, %v782
        %v815 = vand.u32 2147483647, %v783
        %v816 = vand.u32 2147483647, %v784
        %v817 = vand.u32 2147483647, %v785
        %v818 = vand.u32 2147483647, %v786
        %v819 = vand.u32 2147483647, %v787
        %v820 = vand.u32 2147483647, %v788
        %v821 = vand.u32 2147483647, %v789
        %v822 = vand.u32 2147483647, %v790
        %v823 = vand.u32 2147483647, %v791
        %v824 = vand.u32 2147483647, %v792
        %v825 = vand.u32 2147483647, %v793
        %v826 = vadd.f32 %v794, 0.0
        %v827 = vadd.f32 %v795, 0.0
        %v828 = vadd.f32 %v796, 0.0
        %v829 = vadd.f32 %v797, 0.0
        %v830 = vadd.f32 %v798, 0.0
        %v831 = vadd.f32 %v799, 0.0
        %v832 = vadd.f32 %v800, 0.0
        %v833 = vadd.f32 %v801, 0.0
        %v834 = vadd.f32 %v802, 0.0
        %v835 = vadd.f32 %v803, 0.0
        %v836 = vadd.f32 %v804, 0.0
        %v837 = vadd.f32 %v805, 0.0
        %v838 = vadd.f32 %v806, 0.0
        %v839 = vadd.f32 %v807, 0.0
        %v840 = vadd.f32 %v808, 0.0
        %v841 = vadd.f32 %v809, 0.0
        %v842 = vadd.f32 %v810, 0.0
        %v843 = vadd.f32 %v811, 0.0
        %v844 = vadd.f32 %v812, 0.0
        %v845 = vadd.f32 %v813, 0.0
        %v846 = vadd.f32 %v814, 0.0
        %v847 = vadd.f32 %v815, 0.0
        %v848 = vadd.f32 %v816, 0.0
        %v849 = vadd.f32 %v817, 0.0
        %v850 = vadd.f32 %v818, 0.0
        %v851 = vadd.f32 %v819, 0.0
        %v852 = vadd.f32 %v820, 0.0
        %v853 = vadd.f32 %v821, 0.0
        %v854 = vadd.f32 %v822, 0.0
        %v855 = vadd.f32 %v823, 0.0
        %v856 = vadd.f32 %v824, 0.0
        %v857 = vadd.f32 %v825, 0.0
        %s858 = scalar_lea.vmem %s4, 1
        %v859 = vld [vmem:[%s858] ss:$8 sm:$0x3]
        %860 = vset.pattern.permute.xlu0 1
        %861 = vperm.xlu0 %860, %v654
        %v862 = vpop.permute.xlu0 %861
        %864 = vset.pattern.permute.xlu0 1
        %865 = vperm.xlu0 %864, %v655
        %v866 = vpop.permute.xlu0 %865
        %868 = vset.pattern.permute.xlu0 1
        %869 = vperm.xlu0 %868, %v656
        %v870 = vpop.permute.xlu0 %869
        %872 = vset.pattern.permute.xlu0 1
        %873 = vperm.xlu0 %872, %v657
        %v874 = vpop.permute.xlu0 %873
        %876 = vset.pattern.permute.xlu0 1
        %877 = vperm.xlu0 %876, %v658
        %v878 = vpop.permute.xlu0 %877
        %880 = vset.pattern.permute.xlu0 1
        %881 = vperm.xlu0 %880, %v659
        %v882 = vpop.permute.xlu0 %881
        %884 = vset.pattern.permute.xlu0 1
        %885 = vperm.xlu0 %884, %v660
        %v886 = vpop.permute.xlu0 %885
        %888 = vset.pattern.permute.xlu0 1
        %889 = vperm.xlu0 %888, %v661
        %v890 = vpop.permute.xlu0 %889
        %892 = vset.pattern.permute.xlu0 1
        %893 = vperm.xlu0 %892, %v662
        %v894 = vpop.permute.xlu0 %893
        %896 = vset.pattern.permute.xlu0 1
        %897 = vperm.xlu0 %896, %v663
        %v898 = vpop.permute.xlu0 %897
        %900 = vset.pattern.permute.xlu0 1
        %901 = vperm.xlu0 %900, %v664
        %v902 = vpop.permute.xlu0 %901
        %904 = vset.pattern.permute.xlu0 1
        %905 = vperm.xlu0 %904, %v665
        %v906 = vpop.permute.xlu0 %905
        %908 = vset.pattern.permute.xlu0 1
        %909 = vperm.xlu0 %908, %v666
        %v910 = vpop.permute.xlu0 %909
        %912 = vset.pattern.permute.xlu0 1
        %913 = vperm.xlu0 %912, %v667
        %v914 = vpop.permute.xlu0 %913
        %916 = vset.pattern.permute.xlu0 1
        %917 = vperm.xlu0 %916, %v668
        %v918 = vpop.permute.xlu0 %917
        %920 = vset.pattern.permute.xlu0 1
        %921 = vperm.xlu0 %920, %v669
        %v922 = vpop.permute.xlu0 %921
        %v925 = vlaneseq
        %v926 = vshrl.u32 %v925, 7
        %v927 = vsub.s32 0, %v926
        %v928 = vrot.slane %v859, %v927
        %v929 = vlaneseq
        %v930 = vshrl.u32 %v929, 7
        %v931 = vsub.s32 1, %v930
        %v932 = vrot.slane %v859, %v931
        %v935 = vsub.f32 %v862, %v928
        %v936 = vsub.f32 %v862, %v932
        %v937 = vsub.f32 %v866, %v928
        %v938 = vsub.f32 %v866, %v932
        %v939 = vsub.f32 %v870, %v928
        %v940 = vsub.f32 %v870, %v932
        %v941 = vsub.f32 %v874, %v928
        %v942 = vsub.f32 %v874, %v932
        %v943 = vsub.f32 %v878, %v928
        %v944 = vsub.f32 %v878, %v932
        %v945 = vsub.f32 %v882, %v928
        %v946 = vsub.f32 %v882, %v932
        %v947 = vsub.f32 %v886, %v928
        %v948 = vsub.f32 %v886, %v932
        %v949 = vsub.f32 %v890, %v928
        %v950 = vsub.f32 %v890, %v932
        %v951 = vsub.f32 %v894, %v928
        %v952 = vsub.f32 %v894, %v932
        %v953 = vsub.f32 %v898, %v928
        %v954 = vsub.f32 %v898, %v932
        %v955 = vsub.f32 %v902, %v928
        %v956 = vsub.f32 %v902, %v932
        %v957 = vsub.f32 %v906, %v928
        %v958 = vsub.f32 %v906, %v932
        %v959 = vsub.f32 %v910, %v928
        %v960 = vsub.f32 %v910, %v932
        %v961 = vsub.f32 %v914, %v928
        %v962 = vsub.f32 %v914, %v932
        %v963 = vsub.f32 %v918, %v928
        %v964 = vsub.f32 %v918, %v932
        %v965 = vsub.f32 %v922, %v928
        %v966 = vsub.f32 %v922, %v932
        %v967 = vand.u32 2147483647, %v935
        %v968 = vand.u32 2147483647, %v936
        %v969 = vand.u32 2147483647, %v937
        %v970 = vand.u32 2147483647, %v938
        %v971 = vand.u32 2147483647, %v939
        %v972 = vand.u32 2147483647, %v940
        %v973 = vand.u32 2147483647, %v941
        %v974 = vand.u32 2147483647, %v942
        %v975 = vand.u32 2147483647, %v943
        %v976 = vand.u32 2147483647, %v944
        %v977 = vand.u32 2147483647, %v945
        %v978 = vand.u32 2147483647, %v946
        %v979 = vand.u32 2147483647, %v947
        %v980 = vand.u32 2147483647, %v948
        %v981 = vand.u32 2147483647, %v949
        %v982 = vand.u32 2147483647, %v950
        %v983 = vand.u32 2147483647, %v951
        %v984 = vand.u32 2147483647, %v952
        %v985 = vand.u32 2147483647, %v953
        %v986 = vand.u32 2147483647, %v954
        %v987 = vand.u32 2147483647, %v955
        %v988 = vand.u32 2147483647, %v956
        %v989 = vand.u32 2147483647, %v957
        %v990 = vand.u32 2147483647, %v958
        %v991 = vand.u32 2147483647, %v959
        %v992 = vand.u32 2147483647, %v960
        %v993 = vand.u32 2147483647, %v961
        %v994 = vand.u32 2147483647, %v962
        %v995 = vand.u32 2147483647, %v963
        %v996 = vand.u32 2147483647, %v964
        %v997 = vand.u32 2147483647, %v965
        %v998 = vand.u32 2147483647, %v966
        %v999 = vadd.f32 %v826, %v967
        %v1000 = vadd.f32 %v827, %v968
        %v1001 = vadd.f32 %v828, %v969
        %v1002 = vadd.f32 %v829, %v970
        %v1003 = vadd.f32 %v830, %v971
        %v1004 = vadd.f32 %v831, %v972
        %v1005 = vadd.f32 %v832, %v973
        %v1006 = vadd.f32 %v833, %v974
        %v1007 = vadd.f32 %v834, %v975
        %v1008 = vadd.f32 %v835, %v976
        %v1009 = vadd.f32 %v836, %v977
        %v1010 = vadd.f32 %v837, %v978
        %v1011 = vadd.f32 %v838, %v979
        %v1012 = vadd.f32 %v839, %v980
        %v1013 = vadd.f32 %v840, %v981
        %v1014 = vadd.f32 %v841, %v982
        %v1015 = vadd.f32 %v842, %v983
        %v1016 = vadd.f32 %v843, %v984
        %v1017 = vadd.f32 %v844, %v985
        %v1018 = vadd.f32 %v845, %v986
        %v1019 = vadd.f32 %v846, %v987
        %v1020 = vadd.f32 %v847, %v988
        %v1021 = vadd.f32 %v848, %v989
        %v1022 = vadd.f32 %v849, %v990
        %v1023 = vadd.f32 %v850, %v991
        %v1024 = vadd.f32 %v851, %v992
        %v1025 = vadd.f32 %v852, %v993
        %v1026 = vadd.f32 %v853, %v994
        %v1027 = vadd.f32 %v854, %v995
        %v1028 = vadd.f32 %v855, %v996
        %v1029 = vadd.f32 %v856, %v997
        %v1030 = vadd.f32 %v857, %v998
        %s1031 = scalar_lea.vmem %s4, 2
        %v1032 = vld [vmem:[%s1031] ss:$8 sm:$0x3]
        %1033 = vset.pattern.permute.xlu0 2
        %1034 = vperm.xlu0 %1033, %v654
        %v1035 = vpop.permute.xlu0 %1034
        %1037 = vset.pattern.permute.xlu0 2
        %1038 = vperm.xlu0 %1037, %v655
        %v1039 = vpop.permute.xlu0 %1038
        %1041 = vset.pattern.permute.xlu0 2
        %1042 = vperm.xlu0 %1041, %v656
        %v1043 = vpop.permute.xlu0 %1042
        %1045 = vset.pattern.permute.xlu0 2
        %1046 = vperm.xlu0 %1045, %v657
        %v1047 = vpop.permute.xlu0 %1046
        %1049 = vset.pattern.permute.xlu0 2
        %1050 = vperm.xlu0 %1049, %v658
        %v1051 = vpop.permute.xlu0 %1050
        %1053 = vset.pattern.permute.xlu0 2
        %1054 = vperm.xlu0 %1053, %v659
        %v1055 = vpop.permute.xlu0 %1054
        %1057 = vset.pattern.permute.xlu0 2
        %1058 = vperm.xlu0 %1057, %v660
        %v1059 = vpop.permute.xlu0 %1058
        %1061 = vset.pattern.permute.xlu0 2
        %1062 = vperm.xlu0 %1061, %v661
        %v1063 = vpop.permute.xlu0 %1062
        %1065 = vset.pattern.permute.xlu0 2
        %1066 = vperm.xlu0 %1065, %v662
        %v1067 = vpop.permute.xlu0 %1066
        %1069 = vset.pattern.permute.xlu0 2
        %1070 = vperm.xlu0 %1069, %v663
        %v1071 = vpop.permute.xlu0 %1070
        %1073 = vset.pattern.permute.xlu0 2
        %1074 = vperm.xlu0 %1073, %v664
        %v1075 = vpop.permute.xlu0 %1074
        %1077 = vset.pattern.permute.xlu0 2
        %1078 = vperm.xlu0 %1077, %v665
        %v1079 = vpop.permute.xlu0 %1078
        %1081 = vset.pattern.permute.xlu0 2
        %1082 = vperm.xlu0 %1081, %v666
        %v1083 = vpop.permute.xlu0 %1082
        %1085 = vset.pattern.permute.xlu0 2
        %1086 = vperm.xlu0 %1085, %v667
        %v1087 = vpop.permute.xlu0 %1086
        %1089 = vset.pattern.permute.xlu0 2
        %1090 = vperm.xlu0 %1089, %v668
        %v1091 = vpop.permute.xlu0 %1090
        %1093 = vset.pattern.permute.xlu0 2
        %1094 = vperm.xlu0 %1093, %v669
        %v1095 = vpop.permute.xlu0 %1094
        %v1098 = vlaneseq
        %v1099 = vshrl.u32 %v1098, 7
        %v1100 = vsub.s32 0, %v1099
        %v1101 = vrot.slane %v1032, %v1100
        %v1102 = vlaneseq
        %v1103 = vshrl.u32 %v1102, 7
        %v1104 = vsub.s32 1, %v1103
        %v1105 = vrot.slane %v1032, %v1104
        %v1108 = vsub.f32 %v1035, %v1101
        %v1109 = vsub.f32 %v1035, %v1105
        %v1110 = vsub.f32 %v1039, %v1101
        %v1111 = vsub.f32 %v1039, %v1105
        %v1112 = vsub.f32 %v1043, %v1101
        %v1113 = vsub.f32 %v1043, %v1105
        %v1114 = vsub.f32 %v1047, %v1101
        %v1115 = vsub.f32 %v1047, %v1105
        %v1116 = vsub.f32 %v1051, %v1101
        %v1117 = vsub.f32 %v1051, %v1105
        %v1118 = vsub.f32 %v1055, %v1101
        %v1119 = vsub.f32 %v1055, %v1105
        %v1120 = vsub.f32 %v1059, %v1101
        %v1121 = vsub.f32 %v1059, %v1105
        %v1122 = vsub.f32 %v1063, %v1101
        %v1123 = vsub.f32 %v1063, %v1105
        %v1124 = vsub.f32 %v1067, %v1101
        %v1125 = vsub.f32 %v1067, %v1105
        %v1126 = vsub.f32 %v1071, %v1101
        %v1127 = vsub.f32 %v1071, %v1105
        %v1128 = vsub.f32 %v1075, %v1101
        %v1129 = vsub.f32 %v1075, %v1105
        %v1130 = vsub.f32 %v1079, %v1101
        %v1131 = vsub.f32 %v1079, %v1105
        %v1132 = vsub.f32 %v1083, %v1101
        %v1133 = vsub.f32 %v1083, %v1105
        %v1134 = vsub.f32 %v1087, %v1101
        %v1135 = vsub.f32 %v1087, %v1105
        %v1136 = vsub.f32 %v1091, %v1101
        %v1137 = vsub.f32 %v1091, %v1105
        %v1138 = vsub.f32 %v1095, %v1101
        %v1139 = vsub.f32 %v1095, %v1105
        %v1140 = vand.u32 2147483647, %v1108
        %v1141 = vand.u32 2147483647, %v1109
        %v1142 = vand.u32 2147483647, %v1110
        %v1143 = vand.u32 2147483647, %v1111
        %v1144 = vand.u32 2147483647, %v1112
        %v1145 = vand.u32 2147483647, %v1113
        %v1146 = vand.u32 2147483647, %v1114
        %v1147 = vand.u32 2147483647, %v1115
        %v1148 = vand.u32 2147483647, %v1116
        %v1149 = vand.u32 2147483647, %v1117
        %v1150 = vand.u32 2147483647, %v1118
        %v1151 = vand.u32 2147483647, %v1119
        %v1152 = vand.u32 2147483647, %v1120
        %v1153 = vand.u32 2147483647, %v1121
        %v1154 = vand.u32 2147483647, %v1122
        %v1155 = vand.u32 2147483647, %v1123
        %v1156 = vand.u32 2147483647, %v1124
        %v1157 = vand.u32 2147483647, %v1125
        %v1158 = vand.u32 2147483647, %v1126
        %v1159 = vand.u32 2147483647, %v1127
        %v1160 = vand.u32 2147483647, %v1128
        %v1161 = vand.u32 2147483647, %v1129
        %v1162 = vand.u32 2147483647, %v1130
        %v1163 = vand.u32 2147483647, %v1131
        %v1164 = vand.u32 2147483647, %v1132
        %v1165 = vand.u32 2147483647, %v1133
        %v1166 = vand.u32 2147483647, %v1134
        %v1167 = vand.u32 2147483647, %v1135
        %v1168 = vand.u32 2147483647, %v1136
        %v1169 = vand.u32 2147483647, %v1137
        %v1170 = vand.u32 2147483647, %v1138
        %v1171 = vand.u32 2147483647, %v1139
        %v1172 = vadd.f32 %v999, %v1140
        %v1173 = vadd.f32 %v1000, %v1141
        %v1174 = vadd.f32 %v1001, %v1142
        %v1175 = vadd.f32 %v1002, %v1143
        %v1176 = vadd.f32 %v1003, %v1144
        %v1177 = vadd.f32 %v1004, %v1145
        %v1178 = vadd.f32 %v1005, %v1146
        %v1179 = vadd.f32 %v1006, %v1147
        %v1180 = vadd.f32 %v1007, %v1148
        %v1181 = vadd.f32 %v1008, %v1149
        %v1182 = vadd.f32 %v1009, %v1150
        %v1183 = vadd.f32 %v1010, %v1151
        %v1184 = vadd.f32 %v1011, %v1152
        %v1185 = vadd.f32 %v1012, %v1153
        %v1186 = vadd.f32 %v1013, %v1154
        %v1187 = vadd.f32 %v1014, %v1155
        %v1188 = vadd.f32 %v1015, %v1156
        %v1189 = vadd.f32 %v1016, %v1157
        %v1190 = vadd.f32 %v1017, %v1158
        %v1191 = vadd.f32 %v1018, %v1159
        %v1192 = vadd.f32 %v1019, %v1160
        %v1193 = vadd.f32 %v1020, %v1161
        %v1194 = vadd.f32 %v1021, %v1162
        %v1195 = vadd.f32 %v1022, %v1163
        %v1196 = vadd.f32 %v1023, %v1164
        %v1197 = vadd.f32 %v1024, %v1165
        %v1198 = vadd.f32 %v1025, %v1166
        %v1199 = vadd.f32 %v1026, %v1167
        %v1200 = vadd.f32 %v1027, %v1168
        %v1201 = vadd.f32 %v1028, %v1169
        %v1202 = vadd.f32 %v1029, %v1170
        %v1203 = vadd.f32 %v1030, %v1171
        %s1204 = scalar_lea.vmem %s4, 3
        %v1205 = vld [vmem:[%s1204] ss:$8 sm:$0x3]
        %1206 = vset.pattern.permute.xlu0 3
        %1207 = vperm.xlu0 %1206, %v654
        %v1208 = vpop.permute.xlu0 %1207
        %1210 = vset.pattern.permute.xlu0 3
        %1211 = vperm.xlu0 %1210, %v655
        %v1212 = vpop.permute.xlu0 %1211
        %1214 = vset.pattern.permute.xlu0 3
        %1215 = vperm.xlu0 %1214, %v656
        %v1216 = vpop.permute.xlu0 %1215
        %1218 = vset.pattern.permute.xlu0 3
        %1219 = vperm.xlu0 %1218, %v657
        %v1220 = vpop.permute.xlu0 %1219
        %1222 = vset.pattern.permute.xlu0 3
        %1223 = vperm.xlu0 %1222, %v658
        %v1224 = vpop.permute.xlu0 %1223
        %1226 = vset.pattern.permute.xlu0 3
        %1227 = vperm.xlu0 %1226, %v659
        %v1228 = vpop.permute.xlu0 %1227
        %1230 = vset.pattern.permute.xlu0 3
        %1231 = vperm.xlu0 %1230, %v660
        %v1232 = vpop.permute.xlu0 %1231
        %1234 = vset.pattern.permute.xlu0 3
        %1235 = vperm.xlu0 %1234, %v661
        %v1236 = vpop.permute.xlu0 %1235
        %1238 = vset.pattern.permute.xlu0 3
        %1239 = vperm.xlu0 %1238, %v662
        %v1240 = vpop.permute.xlu0 %1239
        %1242 = vset.pattern.permute.xlu0 3
        %1243 = vperm.xlu0 %1242, %v663
        %v1244 = vpop.permute.xlu0 %1243
        %1246 = vset.pattern.permute.xlu0 3
        %1247 = vperm.xlu0 %1246, %v664
        %v1248 = vpop.permute.xlu0 %1247
        %1250 = vset.pattern.permute.xlu0 3
        %1251 = vperm.xlu0 %1250, %v665
        %v1252 = vpop.permute.xlu0 %1251
        %1254 = vset.pattern.permute.xlu0 3
        %1255 = vperm.xlu0 %1254, %v666
        %v1256 = vpop.permute.xlu0 %1255
        %1258 = vset.pattern.permute.xlu0 3
        %1259 = vperm.xlu0 %1258, %v667
        %v1260 = vpop.permute.xlu0 %1259
        %1262 = vset.pattern.permute.xlu0 3
        %1263 = vperm.xlu0 %1262, %v668
        %v1264 = vpop.permute.xlu0 %1263
        %1266 = vset.pattern.permute.xlu0 3
        %1267 = vperm.xlu0 %1266, %v669
        %v1268 = vpop.permute.xlu0 %1267
        %v1271 = vlaneseq
        %v1272 = vshrl.u32 %v1271, 7
        %v1273 = vsub.s32 0, %v1272
        %v1274 = vrot.slane %v1205, %v1273
        %v1275 = vlaneseq
        %v1276 = vshrl.u32 %v1275, 7
        %v1277 = vsub.s32 1, %v1276
        %v1278 = vrot.slane %v1205, %v1277
        %v1281 = vsub.f32 %v1208, %v1274
        %v1282 = vsub.f32 %v1208, %v1278
        %v1283 = vsub.f32 %v1212, %v1274
        %v1284 = vsub.f32 %v1212, %v1278
        %v1285 = vsub.f32 %v1216, %v1274
        %v1286 = vsub.f32 %v1216, %v1278
        %v1287 = vsub.f32 %v1220, %v1274
        %v1288 = vsub.f32 %v1220, %v1278
        %v1289 = vsub.f32 %v1224, %v1274
        %v1290 = vsub.f32 %v1224, %v1278
        %v1291 = vsub.f32 %v1228, %v1274
        %v1292 = vsub.f32 %v1228, %v1278
        %v1293 = vsub.f32 %v1232, %v1274
        %v1294 = vsub.f32 %v1232, %v1278
        %v1295 = vsub.f32 %v1236, %v1274
        %v1296 = vsub.f32 %v1236, %v1278
        %v1297 = vsub.f32 %v1240, %v1274
        %v1298 = vsub.f32 %v1240, %v1278
        %v1299 = vsub.f32 %v1244, %v1274
        %v1300 = vsub.f32 %v1244, %v1278
        %v1301 = vsub.f32 %v1248, %v1274
        %v1302 = vsub.f32 %v1248, %v1278
        %v1303 = vsub.f32 %v1252, %v1274
        %v1304 = vsub.f32 %v1252, %v1278
        %v1305 = vsub.f32 %v1256, %v1274
        %v1306 = vsub.f32 %v1256, %v1278
        %v1307 = vsub.f32 %v1260, %v1274
        %v1308 = vsub.f32 %v1260, %v1278
        %v1309 = vsub.f32 %v1264, %v1274
        %v1310 = vsub.f32 %v1264, %v1278
        %v1311 = vsub.f32 %v1268, %v1274
        %v1312 = vsub.f32 %v1268, %v1278
        %v1313 = vand.u32 2147483647, %v1281
        %v1314 = vand.u32 2147483647, %v1282
        %v1315 = vand.u32 2147483647, %v1283
        %v1316 = vand.u32 2147483647, %v1284
        %v1317 = vand.u32 2147483647, %v1285
        %v1318 = vand.u32 2147483647, %v1286
        %v1319 = vand.u32 2147483647, %v1287
        %v1320 = vand.u32 2147483647, %v1288
        %v1321 = vand.u32 2147483647, %v1289
        %v1322 = vand.u32 2147483647, %v1290
        %v1323 = vand.u32 2147483647, %v1291
        %v1324 = vand.u32 2147483647, %v1292
        %v1325 = vand.u32 2147483647, %v1293
        %v1326 = vand.u32 2147483647, %v1294
        %v1327 = vand.u32 2147483647, %v1295
        %v1328 = vand.u32 2147483647, %v1296
        %v1329 = vand.u32 2147483647, %v1297
        %v1330 = vand.u32 2147483647, %v1298
        %v1331 = vand.u32 2147483647, %v1299
        %v1332 = vand.u32 2147483647, %v1300
        %v1333 = vand.u32 2147483647, %v1301
        %v1334 = vand.u32 2147483647, %v1302
        %v1335 = vand.u32 2147483647, %v1303
        %v1336 = vand.u32 2147483647, %v1304
        %v1337 = vand.u32 2147483647, %v1305
        %v1338 = vand.u32 2147483647, %v1306
        %v1339 = vand.u32 2147483647, %v1307
        %v1340 = vand.u32 2147483647, %v1308
        %v1341 = vand.u32 2147483647, %v1309
        %v1342 = vand.u32 2147483647, %v1310
        %v1343 = vand.u32 2147483647, %v1311
        %v1344 = vand.u32 2147483647, %v1312
        %v1345 = vadd.f32 %v1172, %v1313
        %v1346 = vadd.f32 %v1173, %v1314
        %v1347 = vadd.f32 %v1174, %v1315
        %v1348 = vadd.f32 %v1175, %v1316
        %v1349 = vadd.f32 %v1176, %v1317
        %v1350 = vadd.f32 %v1177, %v1318
        %v1351 = vadd.f32 %v1178, %v1319
        %v1352 = vadd.f32 %v1179, %v1320
        %v1353 = vadd.f32 %v1180, %v1321
        %v1354 = vadd.f32 %v1181, %v1322
        %v1355 = vadd.f32 %v1182, %v1323
        %v1356 = vadd.f32 %v1183, %v1324
        %v1357 = vadd.f32 %v1184, %v1325
        %v1358 = vadd.f32 %v1185, %v1326
        %v1359 = vadd.f32 %v1186, %v1327
        %v1360 = vadd.f32 %v1187, %v1328
        %v1361 = vadd.f32 %v1188, %v1329
        %v1362 = vadd.f32 %v1189, %v1330
        %v1363 = vadd.f32 %v1190, %v1331
        %v1364 = vadd.f32 %v1191, %v1332
        %v1365 = vadd.f32 %v1192, %v1333
        %v1366 = vadd.f32 %v1193, %v1334
        %v1367 = vadd.f32 %v1194, %v1335
        %v1368 = vadd.f32 %v1195, %v1336
        %v1369 = vadd.f32 %v1196, %v1337
        %v1370 = vadd.f32 %v1197, %v1338
        %v1371 = vadd.f32 %v1198, %v1339
        %v1372 = vadd.f32 %v1199, %v1340
        %v1373 = vadd.f32 %v1200, %v1341
        %v1374 = vadd.f32 %v1201, %v1342
        %v1375 = vadd.f32 %v1202, %v1343
        %v1376 = vadd.f32 %v1203, %v1344
        %s1377 = scalar_lea.vmem %s4, 4
        %v1378 = vld [vmem:[%s1377] ss:$8 sm:$0x3]
        %1379 = vset.pattern.permute.xlu0 4
        %1380 = vperm.xlu0 %1379, %v654
        %v1381 = vpop.permute.xlu0 %1380
        %1383 = vset.pattern.permute.xlu0 4
        %1384 = vperm.xlu0 %1383, %v655
        %v1385 = vpop.permute.xlu0 %1384
        %1387 = vset.pattern.permute.xlu0 4
        %1388 = vperm.xlu0 %1387, %v656
        %v1389 = vpop.permute.xlu0 %1388
        %1391 = vset.pattern.permute.xlu0 4
        %1392 = vperm.xlu0 %1391, %v657
        %v1393 = vpop.permute.xlu0 %1392
        %1395 = vset.pattern.permute.xlu0 4
        %1396 = vperm.xlu0 %1395, %v658
        %v1397 = vpop.permute.xlu0 %1396
        %1399 = vset.pattern.permute.xlu0 4
        %1400 = vperm.xlu0 %1399, %v659
        %v1401 = vpop.permute.xlu0 %1400
        %1403 = vset.pattern.permute.xlu0 4
        %1404 = vperm.xlu0 %1403, %v660
        %v1405 = vpop.permute.xlu0 %1404
        %1407 = vset.pattern.permute.xlu0 4
        %1408 = vperm.xlu0 %1407, %v661
        %v1409 = vpop.permute.xlu0 %1408
        %1411 = vset.pattern.permute.xlu0 4
        %1412 = vperm.xlu0 %1411, %v662
        %v1413 = vpop.permute.xlu0 %1412
        %1415 = vset.pattern.permute.xlu0 4
        %1416 = vperm.xlu0 %1415, %v663
        %v1417 = vpop.permute.xlu0 %1416
        %1419 = vset.pattern.permute.xlu0 4
        %1420 = vperm.xlu0 %1419, %v664
        %v1421 = vpop.permute.xlu0 %1420
        %1423 = vset.pattern.permute.xlu0 4
        %1424 = vperm.xlu0 %1423, %v665
        %v1425 = vpop.permute.xlu0 %1424
        %1427 = vset.pattern.permute.xlu0 4
        %1428 = vperm.xlu0 %1427, %v666
        %v1429 = vpop.permute.xlu0 %1428
        %1431 = vset.pattern.permute.xlu0 4
        %1432 = vperm.xlu0 %1431, %v667
        %v1433 = vpop.permute.xlu0 %1432
        %1435 = vset.pattern.permute.xlu0 4
        %1436 = vperm.xlu0 %1435, %v668
        %v1437 = vpop.permute.xlu0 %1436
        %1439 = vset.pattern.permute.xlu0 4
        %1440 = vperm.xlu0 %1439, %v669
        %v1441 = vpop.permute.xlu0 %1440
        %v1444 = vlaneseq
        %v1445 = vshrl.u32 %v1444, 7
        %v1446 = vsub.s32 0, %v1445
        %v1447 = vrot.slane %v1378, %v1446
        %v1448 = vlaneseq
        %v1449 = vshrl.u32 %v1448, 7
        %v1450 = vsub.s32 1, %v1449
        %v1451 = vrot.slane %v1378, %v1450
        %v1454 = vsub.f32 %v1381, %v1447
        %v1455 = vsub.f32 %v1381, %v1451
        %v1456 = vsub.f32 %v1385, %v1447
        %v1457 = vsub.f32 %v1385, %v1451
        %v1458 = vsub.f32 %v1389, %v1447
        %v1459 = vsub.f32 %v1389, %v1451
        %v1460 = vsub.f32 %v1393, %v1447
        %v1461 = vsub.f32 %v1393, %v1451
        %v1462 = vsub.f32 %v1397, %v1447
        %v1463 = vsub.f32 %v1397, %v1451
        %v1464 = vsub.f32 %v1401, %v1447
        %v1465 = vsub.f32 %v1401, %v1451
        %v1466 = vsub.f32 %v1405, %v1447
        %v1467 = vsub.f32 %v1405, %v1451
        %v1468 = vsub.f32 %v1409, %v1447
        %v1469 = vsub.f32 %v1409, %v1451
        %v1470 = vsub.f32 %v1413, %v1447
        %v1471 = vsub.f32 %v1413, %v1451
        %v1472 = vsub.f32 %v1417, %v1447
        %v1473 = vsub.f32 %v1417, %v1451
        %v1474 = vsub.f32 %v1421, %v1447
        %v1475 = vsub.f32 %v1421, %v1451
        %v1476 = vsub.f32 %v1425, %v1447
        %v1477 = vsub.f32 %v1425, %v1451
        %v1478 = vsub.f32 %v1429, %v1447
        %v1479 = vsub.f32 %v1429, %v1451
        %v1480 = vsub.f32 %v1433, %v1447
        %v1481 = vsub.f32 %v1433, %v1451
        %v1482 = vsub.f32 %v1437, %v1447
        %v1483 = vsub.f32 %v1437, %v1451
        %v1484 = vsub.f32 %v1441, %v1447
        %v1485 = vsub.f32 %v1441, %v1451
        %v1486 = vand.u32 2147483647, %v1454
        %v1487 = vand.u32 2147483647, %v1455
        %v1488 = vand.u32 2147483647, %v1456
        %v1489 = vand.u32 2147483647, %v1457
        %v1490 = vand.u32 2147483647, %v1458
        %v1491 = vand.u32 2147483647, %v1459
        %v1492 = vand.u32 2147483647, %v1460
        %v1493 = vand.u32 2147483647, %v1461
        %v1494 = vand.u32 2147483647, %v1462
        %v1495 = vand.u32 2147483647, %v1463
        %v1496 = vand.u32 2147483647, %v1464
        %v1497 = vand.u32 2147483647, %v1465
        %v1498 = vand.u32 2147483647, %v1466
        %v1499 = vand.u32 2147483647, %v1467
        %v1500 = vand.u32 2147483647, %v1468
        %v1501 = vand.u32 2147483647, %v1469
        %v1502 = vand.u32 2147483647, %v1470
        %v1503 = vand.u32 2147483647, %v1471
        %v1504 = vand.u32 2147483647, %v1472
        %v1505 = vand.u32 2147483647, %v1473
        %v1506 = vand.u32 2147483647, %v1474
        %v1507 = vand.u32 2147483647, %v1475
        %v1508 = vand.u32 2147483647, %v1476
        %v1509 = vand.u32 2147483647, %v1477
        %v1510 = vand.u32 2147483647, %v1478
        %v1511 = vand.u32 2147483647, %v1479
        %v1512 = vand.u32 2147483647, %v1480
        %v1513 = vand.u32 2147483647, %v1481
        %v1514 = vand.u32 2147483647, %v1482
        %v1515 = vand.u32 2147483647, %v1483
        %v1516 = vand.u32 2147483647, %v1484
        %v1517 = vand.u32 2147483647, %v1485
        %v1518 = vadd.f32 %v1345, %v1486
        %v1519 = vadd.f32 %v1346, %v1487
        %v1520 = vadd.f32 %v1347, %v1488
        %v1521 = vadd.f32 %v1348, %v1489
        %v1522 = vadd.f32 %v1349, %v1490
        %v1523 = vadd.f32 %v1350, %v1491
        %v1524 = vadd.f32 %v1351, %v1492
        %v1525 = vadd.f32 %v1352, %v1493
        %v1526 = vadd.f32 %v1353, %v1494
        %v1527 = vadd.f32 %v1354, %v1495
        %v1528 = vadd.f32 %v1355, %v1496
        %v1529 = vadd.f32 %v1356, %v1497
        %v1530 = vadd.f32 %v1357, %v1498
        %v1531 = vadd.f32 %v1358, %v1499
        %v1532 = vadd.f32 %v1359, %v1500
        %v1533 = vadd.f32 %v1360, %v1501
        %v1534 = vadd.f32 %v1361, %v1502
        %v1535 = vadd.f32 %v1362, %v1503
        %v1536 = vadd.f32 %v1363, %v1504
        %v1537 = vadd.f32 %v1364, %v1505
        %v1538 = vadd.f32 %v1365, %v1506
        %v1539 = vadd.f32 %v1366, %v1507
        %v1540 = vadd.f32 %v1367, %v1508
        %v1541 = vadd.f32 %v1368, %v1509
        %v1542 = vadd.f32 %v1369, %v1510
        %v1543 = vadd.f32 %v1370, %v1511
        %v1544 = vadd.f32 %v1371, %v1512
        %v1545 = vadd.f32 %v1372, %v1513
        %v1546 = vadd.f32 %v1373, %v1514
        %v1547 = vadd.f32 %v1374, %v1515
        %v1548 = vadd.f32 %v1375, %v1516
        %v1549 = vadd.f32 %v1376, %v1517
        %s1550 = scalar_lea.vmem %s4, 5
        %v1551 = vld [vmem:[%s1550] ss:$8 sm:$0x3]
        %1552 = vset.pattern.permute.xlu0 5
        %1553 = vperm.xlu0 %1552, %v654
        %v1554 = vpop.permute.xlu0 %1553
        %1556 = vset.pattern.permute.xlu0 5
        %1557 = vperm.xlu0 %1556, %v655
        %v1558 = vpop.permute.xlu0 %1557
        %1560 = vset.pattern.permute.xlu0 5
        %1561 = vperm.xlu0 %1560, %v656
        %v1562 = vpop.permute.xlu0 %1561
        %1564 = vset.pattern.permute.xlu0 5
        %1565 = vperm.xlu0 %1564, %v657
        %v1566 = vpop.permute.xlu0 %1565
        %1568 = vset.pattern.permute.xlu0 5
        %1569 = vperm.xlu0 %1568, %v658
        %v1570 = vpop.permute.xlu0 %1569
        %1572 = vset.pattern.permute.xlu0 5
        %1573 = vperm.xlu0 %1572, %v659
        %v1574 = vpop.permute.xlu0 %1573
        %1576 = vset.pattern.permute.xlu0 5
        %1577 = vperm.xlu0 %1576, %v660
        %v1578 = vpop.permute.xlu0 %1577
        %1580 = vset.pattern.permute.xlu0 5
        %1581 = vperm.xlu0 %1580, %v661
        %v1582 = vpop.permute.xlu0 %1581
        %1584 = vset.pattern.permute.xlu0 5
        %1585 = vperm.xlu0 %1584, %v662
        %v1586 = vpop.permute.xlu0 %1585
        %1588 = vset.pattern.permute.xlu0 5
        %1589 = vperm.xlu0 %1588, %v663
        %v1590 = vpop.permute.xlu0 %1589
        %1592 = vset.pattern.permute.xlu0 5
        %1593 = vperm.xlu0 %1592, %v664
        %v1594 = vpop.permute.xlu0 %1593
        %1596 = vset.pattern.permute.xlu0 5
        %1597 = vperm.xlu0 %1596, %v665
        %v1598 = vpop.permute.xlu0 %1597
        %1600 = vset.pattern.permute.xlu0 5
        %1601 = vperm.xlu0 %1600, %v666
        %v1602 = vpop.permute.xlu0 %1601
        %1604 = vset.pattern.permute.xlu0 5
        %1605 = vperm.xlu0 %1604, %v667
        %v1606 = vpop.permute.xlu0 %1605
        %1608 = vset.pattern.permute.xlu0 5
        %1609 = vperm.xlu0 %1608, %v668
        %v1610 = vpop.permute.xlu0 %1609
        %1612 = vset.pattern.permute.xlu0 5
        %1613 = vperm.xlu0 %1612, %v669
        %v1614 = vpop.permute.xlu0 %1613
        %v1617 = vlaneseq
        %v1618 = vshrl.u32 %v1617, 7
        %v1619 = vsub.s32 0, %v1618
        %v1620 = vrot.slane %v1551, %v1619
        %v1621 = vlaneseq
        %v1622 = vshrl.u32 %v1621, 7
        %v1623 = vsub.s32 1, %v1622
        %v1624 = vrot.slane %v1551, %v1623
        %v1627 = vsub.f32 %v1554, %v1620
        %v1628 = vsub.f32 %v1554, %v1624
        %v1629 = vsub.f32 %v1558, %v1620
        %v1630 = vsub.f32 %v1558, %v1624
        %v1631 = vsub.f32 %v1562, %v1620
        %v1632 = vsub.f32 %v1562, %v1624
        %v1633 = vsub.f32 %v1566, %v1620
        %v1634 = vsub.f32 %v1566, %v1624
        %v1635 = vsub.f32 %v1570, %v1620
        %v1636 = vsub.f32 %v1570, %v1624
        %v1637 = vsub.f32 %v1574, %v1620
        %v1638 = vsub.f32 %v1574, %v1624
        %v1639 = vsub.f32 %v1578, %v1620
        %v1640 = vsub.f32 %v1578, %v1624
        %v1641 = vsub.f32 %v1582, %v1620
        %v1642 = vsub.f32 %v1582, %v1624
        %v1643 = vsub.f32 %v1586, %v1620
        %v1644 = vsub.f32 %v1586, %v1624
        %v1645 = vsub.f32 %v1590, %v1620
        %v1646 = vsub.f32 %v1590, %v1624
        %v1647 = vsub.f32 %v1594, %v1620
        %v1648 = vsub.f32 %v1594, %v1624
        %v1649 = vsub.f32 %v1598, %v1620
        %v1650 = vsub.f32 %v1598, %v1624
        %v1651 = vsub.f32 %v1602, %v1620
        %v1652 = vsub.f32 %v1602, %v1624
        %v1653 = vsub.f32 %v1606, %v1620
        %v1654 = vsub.f32 %v1606, %v1624
        %v1655 = vsub.f32 %v1610, %v1620
        %v1656 = vsub.f32 %v1610, %v1624
        %v1657 = vsub.f32 %v1614, %v1620
        %v1658 = vsub.f32 %v1614, %v1624
        %v1659 = vand.u32 2147483647, %v1627
        %v1660 = vand.u32 2147483647, %v1628
        %v1661 = vand.u32 2147483647, %v1629
        %v1662 = vand.u32 2147483647, %v1630
        %v1663 = vand.u32 2147483647, %v1631
        %v1664 = vand.u32 2147483647, %v1632
        %v1665 = vand.u32 2147483647, %v1633
        %v1666 = vand.u32 2147483647, %v1634
        %v1667 = vand.u32 2147483647, %v1635
        %v1668 = vand.u32 2147483647, %v1636
        %v1669 = vand.u32 2147483647, %v1637
        %v1670 = vand.u32 2147483647, %v1638
        %v1671 = vand.u32 2147483647, %v1639
        %v1672 = vand.u32 2147483647, %v1640
        %v1673 = vand.u32 2147483647, %v1641
        %v1674 = vand.u32 2147483647, %v1642
        %v1675 = vand.u32 2147483647, %v1643
        %v1676 = vand.u32 2147483647, %v1644
        %v1677 = vand.u32 2147483647, %v1645
        %v1678 = vand.u32 2147483647, %v1646
        %v1679 = vand.u32 2147483647, %v1647
        %v1680 = vand.u32 2147483647, %v1648
        %v1681 = vand.u32 2147483647, %v1649
        %v1682 = vand.u32 2147483647, %v1650
        %v1683 = vand.u32 2147483647, %v1651
        %v1684 = vand.u32 2147483647, %v1652
        %v1685 = vand.u32 2147483647, %v1653
        %v1686 = vand.u32 2147483647, %v1654
        %v1687 = vand.u32 2147483647, %v1655
        %v1688 = vand.u32 2147483647, %v1656
        %v1689 = vand.u32 2147483647, %v1657
        %v1690 = vand.u32 2147483647, %v1658
        %v1691 = vadd.f32 %v1518, %v1659
        %v1692 = vadd.f32 %v1519, %v1660
        %v1693 = vadd.f32 %v1520, %v1661
        %v1694 = vadd.f32 %v1521, %v1662
        %v1695 = vadd.f32 %v1522, %v1663
        %v1696 = vadd.f32 %v1523, %v1664
        %v1697 = vadd.f32 %v1524, %v1665
        %v1698 = vadd.f32 %v1525, %v1666
        %v1699 = vadd.f32 %v1526, %v1667
        %v1700 = vadd.f32 %v1527, %v1668
        %v1701 = vadd.f32 %v1528, %v1669
        %v1702 = vadd.f32 %v1529, %v1670
        %v1703 = vadd.f32 %v1530, %v1671
        %v1704 = vadd.f32 %v1531, %v1672
        %v1705 = vadd.f32 %v1532, %v1673
        %v1706 = vadd.f32 %v1533, %v1674
        %v1707 = vadd.f32 %v1534, %v1675
        %v1708 = vadd.f32 %v1535, %v1676
        %v1709 = vadd.f32 %v1536, %v1677
        %v1710 = vadd.f32 %v1537, %v1678
        %v1711 = vadd.f32 %v1538, %v1679
        %v1712 = vadd.f32 %v1539, %v1680
        %v1713 = vadd.f32 %v1540, %v1681
        %v1714 = vadd.f32 %v1541, %v1682
        %v1715 = vadd.f32 %v1542, %v1683
        %v1716 = vadd.f32 %v1543, %v1684
        %v1717 = vadd.f32 %v1544, %v1685
        %v1718 = vadd.f32 %v1545, %v1686
        %v1719 = vadd.f32 %v1546, %v1687
        %v1720 = vadd.f32 %v1547, %v1688
        %v1721 = vadd.f32 %v1548, %v1689
        %v1722 = vadd.f32 %v1549, %v1690
        %s1723 = scalar_lea.vmem %s4, 6
        %v1724 = vld [vmem:[%s1723] ss:$8 sm:$0x3]
        %1725 = vset.pattern.permute.xlu0 6
        %1726 = vperm.xlu0 %1725, %v654
        %v1727 = vpop.permute.xlu0 %1726
        %1729 = vset.pattern.permute.xlu0 6
        %1730 = vperm.xlu0 %1729, %v655
        %v1731 = vpop.permute.xlu0 %1730
        %1733 = vset.pattern.permute.xlu0 6
        %1734 = vperm.xlu0 %1733, %v656
        %v1735 = vpop.permute.xlu0 %1734
        %1737 = vset.pattern.permute.xlu0 6
        %1738 = vperm.xlu0 %1737, %v657
        %v1739 = vpop.permute.xlu0 %1738
        %1741 = vset.pattern.permute.xlu0 6
        %1742 = vperm.xlu0 %1741, %v658
        %v1743 = vpop.permute.xlu0 %1742
        %1745 = vset.pattern.permute.xlu0 6
        %1746 = vperm.xlu0 %1745, %v659
        %v1747 = vpop.permute.xlu0 %1746
        %1749 = vset.pattern.permute.xlu0 6
        %1750 = vperm.xlu0 %1749, %v660
        %v1751 = vpop.permute.xlu0 %1750
        %1753 = vset.pattern.permute.xlu0 6
        %1754 = vperm.xlu0 %1753, %v661
        %v1755 = vpop.permute.xlu0 %1754
        %1757 = vset.pattern.permute.xlu0 6
        %1758 = vperm.xlu0 %1757, %v662
        %v1759 = vpop.permute.xlu0 %1758
        %1761 = vset.pattern.permute.xlu0 6
        %1762 = vperm.xlu0 %1761, %v663
        %v1763 = vpop.permute.xlu0 %1762
        %1765 = vset.pattern.permute.xlu0 6
        %1766 = vperm.xlu0 %1765, %v664
        %v1767 = vpop.permute.xlu0 %1766
        %1769 = vset.pattern.permute.xlu0 6
        %1770 = vperm.xlu0 %1769, %v665
        %v1771 = vpop.permute.xlu0 %1770
        %1773 = vset.pattern.permute.xlu0 6
        %1774 = vperm.xlu0 %1773, %v666
        %v1775 = vpop.permute.xlu0 %1774
        %1777 = vset.pattern.permute.xlu0 6
        %1778 = vperm.xlu0 %1777, %v667
        %v1779 = vpop.permute.xlu0 %1778
        %1781 = vset.pattern.permute.xlu0 6
        %1782 = vperm.xlu0 %1781, %v668
        %v1783 = vpop.permute.xlu0 %1782
        %1785 = vset.pattern.permute.xlu0 6
        %1786 = vperm.xlu0 %1785, %v669
        %v1787 = vpop.permute.xlu0 %1786
        %v1790 = vlaneseq
        %v1791 = vshrl.u32 %v1790, 7
        %v1792 = vsub.s32 0, %v1791
        %v1793 = vrot.slane %v1724, %v1792
        %v1794 = vlaneseq
        %v1795 = vshrl.u32 %v1794, 7
        %v1796 = vsub.s32 1, %v1795
        %v1797 = vrot.slane %v1724, %v1796
        %v1800 = vsub.f32 %v1727, %v1793
        %v1801 = vsub.f32 %v1727, %v1797
        %v1802 = vsub.f32 %v1731, %v1793
        %v1803 = vsub.f32 %v1731, %v1797
        %v1804 = vsub.f32 %v1735, %v1793
        %v1805 = vsub.f32 %v1735, %v1797
        %v1806 = vsub.f32 %v1739, %v1793
        %v1807 = vsub.f32 %v1739, %v1797
        %v1808 = vsub.f32 %v1743, %v1793
        %v1809 = vsub.f32 %v1743, %v1797
        %v1810 = vsub.f32 %v1747, %v1793
        %v1811 = vsub.f32 %v1747, %v1797
        %v1812 = vsub.f32 %v1751, %v1793
        %v1813 = vsub.f32 %v1751, %v1797
        %v1814 = vsub.f32 %v1755, %v1793
        %v1815 = vsub.f32 %v1755, %v1797
        %v1816 = vsub.f32 %v1759, %v1793
        %v1817 = vsub.f32 %v1759, %v1797
        %v1818 = vsub.f32 %v1763, %v1793
        %v1819 = vsub.f32 %v1763, %v1797
        %v1820 = vsub.f32 %v1767, %v1793
        %v1821 = vsub.f32 %v1767, %v1797
        %v1822 = vsub.f32 %v1771, %v1793
        %v1823 = vsub.f32 %v1771, %v1797
        %v1824 = vsub.f32 %v1775, %v1793
        %v1825 = vsub.f32 %v1775, %v1797
        %v1826 = vsub.f32 %v1779, %v1793
        %v1827 = vsub.f32 %v1779, %v1797
        %v1828 = vsub.f32 %v1783, %v1793
        %v1829 = vsub.f32 %v1783, %v1797
        %v1830 = vsub.f32 %v1787, %v1793
        %v1831 = vsub.f32 %v1787, %v1797
        %v1832 = vand.u32 2147483647, %v1800
        %v1833 = vand.u32 2147483647, %v1801
        %v1834 = vand.u32 2147483647, %v1802
        %v1835 = vand.u32 2147483647, %v1803
        %v1836 = vand.u32 2147483647, %v1804
        %v1837 = vand.u32 2147483647, %v1805
        %v1838 = vand.u32 2147483647, %v1806
        %v1839 = vand.u32 2147483647, %v1807
        %v1840 = vand.u32 2147483647, %v1808
        %v1841 = vand.u32 2147483647, %v1809
        %v1842 = vand.u32 2147483647, %v1810
        %v1843 = vand.u32 2147483647, %v1811
        %v1844 = vand.u32 2147483647, %v1812
        %v1845 = vand.u32 2147483647, %v1813
        %v1846 = vand.u32 2147483647, %v1814
        %v1847 = vand.u32 2147483647, %v1815
        %v1848 = vand.u32 2147483647, %v1816
        %v1849 = vand.u32 2147483647, %v1817
        %v1850 = vand.u32 2147483647, %v1818
        %v1851 = vand.u32 2147483647, %v1819
        %v1852 = vand.u32 2147483647, %v1820
        %v1853 = vand.u32 2147483647, %v1821
        %v1854 = vand.u32 2147483647, %v1822
        %v1855 = vand.u32 2147483647, %v1823
        %v1856 = vand.u32 2147483647, %v1824
        %v1857 = vand.u32 2147483647, %v1825
        %v1858 = vand.u32 2147483647, %v1826
        %v1859 = vand.u32 2147483647, %v1827
        %v1860 = vand.u32 2147483647, %v1828
        %v1861 = vand.u32 2147483647, %v1829
        %v1862 = vand.u32 2147483647, %v1830
        %v1863 = vand.u32 2147483647, %v1831
        %v1864 = vadd.f32 %v1691, %v1832
        %v1865 = vadd.f32 %v1692, %v1833
        %v1866 = vadd.f32 %v1693, %v1834
        %v1867 = vadd.f32 %v1694, %v1835
        %v1868 = vadd.f32 %v1695, %v1836
        %v1869 = vadd.f32 %v1696, %v1837
        %v1870 = vadd.f32 %v1697, %v1838
        %v1871 = vadd.f32 %v1698, %v1839
        %v1872 = vadd.f32 %v1699, %v1840
        %v1873 = vadd.f32 %v1700, %v1841
        %v1874 = vadd.f32 %v1701, %v1842
        %v1875 = vadd.f32 %v1702, %v1843
        %v1876 = vadd.f32 %v1703, %v1844
        %v1877 = vadd.f32 %v1704, %v1845
        %v1878 = vadd.f32 %v1705, %v1846
        %v1879 = vadd.f32 %v1706, %v1847
        %v1880 = vadd.f32 %v1707, %v1848
        %v1881 = vadd.f32 %v1708, %v1849
        %v1882 = vadd.f32 %v1709, %v1850
        %v1883 = vadd.f32 %v1710, %v1851
        %v1884 = vadd.f32 %v1711, %v1852
        %v1885 = vadd.f32 %v1712, %v1853
        %v1886 = vadd.f32 %v1713, %v1854
        %v1887 = vadd.f32 %v1714, %v1855
        %v1888 = vadd.f32 %v1715, %v1856
        %v1889 = vadd.f32 %v1716, %v1857
        %v1890 = vadd.f32 %v1717, %v1858
        %v1891 = vadd.f32 %v1718, %v1859
        %v1892 = vadd.f32 %v1719, %v1860
        %v1893 = vadd.f32 %v1720, %v1861
        %v1894 = vadd.f32 %v1721, %v1862
        %v1895 = vadd.f32 %v1722, %v1863
        %s1896 = scalar_lea.vmem %s4, 7
        %v1897 = vld [vmem:[%s1896] ss:$8 sm:$0x3]
        %1898 = vset.pattern.permute.xlu0 7
        %1899 = vperm.xlu0 %1898, %v654
        %v1900 = vpop.permute.xlu0 %1899
        %1902 = vset.pattern.permute.xlu0 7
        %1903 = vperm.xlu0 %1902, %v655
        %v1904 = vpop.permute.xlu0 %1903
        %1906 = vset.pattern.permute.xlu0 7
        %1907 = vperm.xlu0 %1906, %v656
        %v1908 = vpop.permute.xlu0 %1907
        %1910 = vset.pattern.permute.xlu0 7
        %1911 = vperm.xlu0 %1910, %v657
        %v1912 = vpop.permute.xlu0 %1911
        %1914 = vset.pattern.permute.xlu0 7
        %1915 = vperm.xlu0 %1914, %v658
        %v1916 = vpop.permute.xlu0 %1915
        %1918 = vset.pattern.permute.xlu0 7
        %1919 = vperm.xlu0 %1918, %v659
        %v1920 = vpop.permute.xlu0 %1919
        %1922 = vset.pattern.permute.xlu0 7
        %1923 = vperm.xlu0 %1922, %v660
        %v1924 = vpop.permute.xlu0 %1923
        %1926 = vset.pattern.permute.xlu0 7
        %1927 = vperm.xlu0 %1926, %v661
        %v1928 = vpop.permute.xlu0 %1927
        %1930 = vset.pattern.permute.xlu0 7
        %1931 = vperm.xlu0 %1930, %v662
        %v1932 = vpop.permute.xlu0 %1931
        %1934 = vset.pattern.permute.xlu0 7
        %1935 = vperm.xlu0 %1934, %v663
        %v1936 = vpop.permute.xlu0 %1935
        %1938 = vset.pattern.permute.xlu0 7
        %1939 = vperm.xlu0 %1938, %v664
        %v1940 = vpop.permute.xlu0 %1939
        %1942 = vset.pattern.permute.xlu0 7
        %1943 = vperm.xlu0 %1942, %v665
        %v1944 = vpop.permute.xlu0 %1943
        %1946 = vset.pattern.permute.xlu0 7
        %1947 = vperm.xlu0 %1946, %v666
        %v1948 = vpop.permute.xlu0 %1947
        %1950 = vset.pattern.permute.xlu0 7
        %1951 = vperm.xlu0 %1950, %v667
        %v1952 = vpop.permute.xlu0 %1951
        %1954 = vset.pattern.permute.xlu0 7
        %1955 = vperm.xlu0 %1954, %v668
        %v1956 = vpop.permute.xlu0 %1955
        %1958 = vset.pattern.permute.xlu0 7
        %1959 = vperm.xlu0 %1958, %v669
        %v1960 = vpop.permute.xlu0 %1959
        %v1963 = vlaneseq
        %v1964 = vshrl.u32 %v1963, 7
        %v1965 = vsub.s32 0, %v1964
        %v1966 = vrot.slane %v1897, %v1965
        %v1967 = vlaneseq
        %v1968 = vshrl.u32 %v1967, 7
        %v1969 = vsub.s32 1, %v1968
        %v1970 = vrot.slane %v1897, %v1969
        %v1973 = vsub.f32 %v1900, %v1966
        %v1974 = vsub.f32 %v1900, %v1970
        %v1975 = vsub.f32 %v1904, %v1966
        %v1976 = vsub.f32 %v1904, %v1970
        %v1977 = vsub.f32 %v1908, %v1966
        %v1978 = vsub.f32 %v1908, %v1970
        %v1979 = vsub.f32 %v1912, %v1966
        %v1980 = vsub.f32 %v1912, %v1970
        %v1981 = vsub.f32 %v1916, %v1966
        %v1982 = vsub.f32 %v1916, %v1970
        %v1983 = vsub.f32 %v1920, %v1966
        %v1984 = vsub.f32 %v1920, %v1970
        %v1985 = vsub.f32 %v1924, %v1966
        %v1986 = vsub.f32 %v1924, %v1970
        %v1987 = vsub.f32 %v1928, %v1966
        %v1988 = vsub.f32 %v1928, %v1970
        %v1989 = vsub.f32 %v1932, %v1966
        %v1990 = vsub.f32 %v1932, %v1970
        %v1991 = vsub.f32 %v1936, %v1966
        %v1992 = vsub.f32 %v1936, %v1970
        %v1993 = vsub.f32 %v1940, %v1966
        %v1994 = vsub.f32 %v1940, %v1970
        %v1995 = vsub.f32 %v1944, %v1966
        %v1996 = vsub.f32 %v1944, %v1970
        %v1997 = vsub.f32 %v1948, %v1966
        %v1998 = vsub.f32 %v1948, %v1970
        %v1999 = vsub.f32 %v1952, %v1966
        %v2000 = vsub.f32 %v1952, %v1970
        %v2001 = vsub.f32 %v1956, %v1966
        %v2002 = vsub.f32 %v1956, %v1970
        %v2003 = vsub.f32 %v1960, %v1966
        %v2004 = vsub.f32 %v1960, %v1970
        %v2005 = vand.u32 2147483647, %v1973
        %v2006 = vand.u32 2147483647, %v1974
        %v2007 = vand.u32 2147483647, %v1975
        %v2008 = vand.u32 2147483647, %v1976
        %v2009 = vand.u32 2147483647, %v1977
        %v2010 = vand.u32 2147483647, %v1978
        %v2011 = vand.u32 2147483647, %v1979
        %v2012 = vand.u32 2147483647, %v1980
        %v2013 = vand.u32 2147483647, %v1981
        %v2014 = vand.u32 2147483647, %v1982
        %v2015 = vand.u32 2147483647, %v1983
        %v2016 = vand.u32 2147483647, %v1984
        %v2017 = vand.u32 2147483647, %v1985
        %v2018 = vand.u32 2147483647, %v1986
        %v2019 = vand.u32 2147483647, %v1987
        %v2020 = vand.u32 2147483647, %v1988
        %v2021 = vand.u32 2147483647, %v1989
        %v2022 = vand.u32 2147483647, %v1990
        %v2023 = vand.u32 2147483647, %v1991
        %v2024 = vand.u32 2147483647, %v1992
        %v2025 = vand.u32 2147483647, %v1993
        %v2026 = vand.u32 2147483647, %v1994
        %v2027 = vand.u32 2147483647, %v1995
        %v2028 = vand.u32 2147483647, %v1996
        %v2029 = vand.u32 2147483647, %v1997
        %v2030 = vand.u32 2147483647, %v1998
        %v2031 = vand.u32 2147483647, %v1999
        %v2032 = vand.u32 2147483647, %v2000
        %v2033 = vand.u32 2147483647, %v2001
        %v2034 = vand.u32 2147483647, %v2002
        %v2035 = vand.u32 2147483647, %v2003
        %v2036 = vand.u32 2147483647, %v2004
        %v2037 = vadd.f32 %v1864, %v2005
        %v2038 = vadd.f32 %v1865, %v2006
        %v2039 = vadd.f32 %v1866, %v2007
        %v2040 = vadd.f32 %v1867, %v2008
        %v2041 = vadd.f32 %v1868, %v2009
        %v2042 = vadd.f32 %v1869, %v2010
        %v2043 = vadd.f32 %v1870, %v2011
        %v2044 = vadd.f32 %v1871, %v2012
        %v2045 = vadd.f32 %v1872, %v2013
        %v2046 = vadd.f32 %v1873, %v2014
        %v2047 = vadd.f32 %v1874, %v2015
        %v2048 = vadd.f32 %v1875, %v2016
        %v2049 = vadd.f32 %v1876, %v2017
        %v2050 = vadd.f32 %v1877, %v2018
        %v2051 = vadd.f32 %v1878, %v2019
        %v2052 = vadd.f32 %v1879, %v2020
        %v2053 = vadd.f32 %v1880, %v2021
        %v2054 = vadd.f32 %v1881, %v2022
        %v2055 = vadd.f32 %v1882, %v2023
        %v2056 = vadd.f32 %v1883, %v2024
        %v2057 = vadd.f32 %v1884, %v2025
        %v2058 = vadd.f32 %v1885, %v2026
        %v2059 = vadd.f32 %v1886, %v2027
        %v2060 = vadd.f32 %v1887, %v2028
        %v2061 = vadd.f32 %v1888, %v2029
        %v2062 = vadd.f32 %v1889, %v2030
        %v2063 = vadd.f32 %v1890, %v2031
        %v2064 = vadd.f32 %v1891, %v2032
        %v2065 = vadd.f32 %v1892, %v2033
        %v2066 = vadd.f32 %v1893, %v2034
        %v2067 = vadd.f32 %v1894, %v2035
        %v2068 = vadd.f32 %v1895, %v2036
        %v2069 = vstv %s307
        %v2070 = vmul.f32 %v622, %v2069
        %v2071 = vmul.f32 %v623, %v2069
        %v2072 = vmul.f32 %v624, %v2069
        %v2073 = vmul.f32 %v625, %v2069
        %v2074 = vmul.f32 %v626, %v2069
        %v2075 = vmul.f32 %v627, %v2069
        %v2076 = vmul.f32 %v628, %v2069
        %v2077 = vmul.f32 %v629, %v2069
        %v2078 = vmul.f32 %v630, %v2069
        %v2079 = vmul.f32 %v631, %v2069
        %v2080 = vmul.f32 %v632, %v2069
        %v2081 = vmul.f32 %v633, %v2069
        %v2082 = vmul.f32 %v634, %v2069
        %v2083 = vmul.f32 %v635, %v2069
        %v2084 = vmul.f32 %v636, %v2069
        %v2085 = vmul.f32 %v637, %v2069
        %v2086 = vmul.f32 %v638, %v2069
        %v2087 = vmul.f32 %v639, %v2069
        %v2088 = vmul.f32 %v640, %v2069
        %v2089 = vmul.f32 %v641, %v2069
        %v2090 = vmul.f32 %v642, %v2069
        %v2091 = vmul.f32 %v643, %v2069
        %v2092 = vmul.f32 %v644, %v2069
        %v2093 = vmul.f32 %v645, %v2069
        %v2094 = vmul.f32 %v646, %v2069
        %v2095 = vmul.f32 %v647, %v2069
        %v2096 = vmul.f32 %v648, %v2069
        %v2097 = vmul.f32 %v649, %v2069
        %v2098 = vmul.f32 %v650, %v2069
        %v2099 = vmul.f32 %v651, %v2069
        %v2100 = vmul.f32 %v652, %v2069
        %v2101 = vmul.f32 %v653, %v2069
        %v2102 = vmul.f32 %v2037, %v2037
        %v2103 = vmul.f32 %v2038, %v2038
        %v2104 = vmul.f32 %v2039, %v2039
        %v2105 = vmul.f32 %v2040, %v2040
        %v2106 = vmul.f32 %v2041, %v2041
        %v2107 = vmul.f32 %v2042, %v2042
        %v2108 = vmul.f32 %v2043, %v2043
        %v2109 = vmul.f32 %v2044, %v2044
        %v2110 = vmul.f32 %v2045, %v2045
        %v2111 = vmul.f32 %v2046, %v2046
        %v2112 = vmul.f32 %v2047, %v2047
        %v2113 = vmul.f32 %v2048, %v2048
        %v2114 = vmul.f32 %v2049, %v2049
        %v2115 = vmul.f32 %v2050, %v2050
        %v2116 = vmul.f32 %v2051, %v2051
        %v2117 = vmul.f32 %v2052, %v2052
        %v2118 = vmul.f32 %v2053, %v2053
        %v2119 = vmul.f32 %v2054, %v2054
        %v2120 = vmul.f32 %v2055, %v2055
        %v2121 = vmul.f32 %v2056, %v2056
        %v2122 = vmul.f32 %v2057, %v2057
        %v2123 = vmul.f32 %v2058, %v2058
        %v2124 = vmul.f32 %v2059, %v2059
        %v2125 = vmul.f32 %v2060, %v2060
        %v2126 = vmul.f32 %v2061, %v2061
        %v2127 = vmul.f32 %v2062, %v2062
        %v2128 = vmul.f32 %v2063, %v2063
        %v2129 = vmul.f32 %v2064, %v2064
        %v2130 = vmul.f32 %v2065, %v2065
        %v2131 = vmul.f32 %v2066, %v2066
        %v2132 = vmul.f32 %v2067, %v2067
        %v2133 = vmul.f32 %v2068, %v2068
        %v2134 = vstv %s308
        %v2135 = vmul.f32 %v2102, %v2134
        %v2136 = vmul.f32 %v2103, %v2134
        %v2137 = vmul.f32 %v2104, %v2134
        %v2138 = vmul.f32 %v2105, %v2134
        %v2139 = vmul.f32 %v2106, %v2134
        %v2140 = vmul.f32 %v2107, %v2134
        %v2141 = vmul.f32 %v2108, %v2134
        %v2142 = vmul.f32 %v2109, %v2134
        %v2143 = vmul.f32 %v2110, %v2134
        %v2144 = vmul.f32 %v2111, %v2134
        %v2145 = vmul.f32 %v2112, %v2134
        %v2146 = vmul.f32 %v2113, %v2134
        %v2147 = vmul.f32 %v2114, %v2134
        %v2148 = vmul.f32 %v2115, %v2134
        %v2149 = vmul.f32 %v2116, %v2134
        %v2150 = vmul.f32 %v2117, %v2134
        %v2151 = vmul.f32 %v2118, %v2134
        %v2152 = vmul.f32 %v2119, %v2134
        %v2153 = vmul.f32 %v2120, %v2134
        %v2154 = vmul.f32 %v2121, %v2134
        %v2155 = vmul.f32 %v2122, %v2134
        %v2156 = vmul.f32 %v2123, %v2134
        %v2157 = vmul.f32 %v2124, %v2134
        %v2158 = vmul.f32 %v2125, %v2134
        %v2159 = vmul.f32 %v2126, %v2134
        %v2160 = vmul.f32 %v2127, %v2134
        %v2161 = vmul.f32 %v2128, %v2134
        %v2162 = vmul.f32 %v2129, %v2134
        %v2163 = vmul.f32 %v2130, %v2134
        %v2164 = vmul.f32 %v2131, %v2134
        %v2165 = vmul.f32 %v2132, %v2134
        %v2166 = vmul.f32 %v2133, %v2134
        %v2167 = vadd.f32 %v2070, %v2135
        %v2168 = vadd.f32 %v2071, %v2136
        %v2169 = vadd.f32 %v2072, %v2137
        %v2170 = vadd.f32 %v2073, %v2138
        %v2171 = vadd.f32 %v2074, %v2139
        %v2172 = vadd.f32 %v2075, %v2140
        %v2173 = vadd.f32 %v2076, %v2141
        %v2174 = vadd.f32 %v2077, %v2142
        %v2175 = vadd.f32 %v2078, %v2143
        %v2176 = vadd.f32 %v2079, %v2144
        %v2177 = vadd.f32 %v2080, %v2145
        %v2178 = vadd.f32 %v2081, %v2146
        %v2179 = vadd.f32 %v2082, %v2147
        %v2180 = vadd.f32 %v2083, %v2148
        %v2181 = vadd.f32 %v2084, %v2149
        %v2182 = vadd.f32 %v2085, %v2150
        %v2183 = vadd.f32 %v2086, %v2151
        %v2184 = vadd.f32 %v2087, %v2152
        %v2185 = vadd.f32 %v2088, %v2153
        %v2186 = vadd.f32 %v2089, %v2154
        %v2187 = vadd.f32 %v2090, %v2155
        %v2188 = vadd.f32 %v2091, %v2156
        %v2189 = vadd.f32 %v2092, %v2157
        %v2190 = vadd.f32 %v2093, %v2158
        %v2191 = vadd.f32 %v2094, %v2159
        %v2192 = vadd.f32 %v2095, %v2160
        %v2193 = vadd.f32 %v2096, %v2161
        %v2194 = vadd.f32 %v2097, %v2162
        %v2195 = vadd.f32 %v2098, %v2163
        %v2196 = vadd.f32 %v2099, %v2164
        %v2197 = vadd.f32 %v2100, %v2165
        %v2198 = vadd.f32 %v2101, %v2166
        %v2199 = vsub.f32 0.0, %v2167
        %v2200 = vsub.f32 0.0, %v2168
        %v2201 = vsub.f32 0.0, %v2169
        %v2202 = vsub.f32 0.0, %v2170
        %v2203 = vsub.f32 0.0, %v2171
        %v2204 = vsub.f32 0.0, %v2172
        %v2205 = vsub.f32 0.0, %v2173
        %v2206 = vsub.f32 0.0, %v2174
        %v2207 = vsub.f32 0.0, %v2175
        %v2208 = vsub.f32 0.0, %v2176
        %v2209 = vsub.f32 0.0, %v2177
        %v2210 = vsub.f32 0.0, %v2178
        %v2211 = vsub.f32 0.0, %v2179
        %v2212 = vsub.f32 0.0, %v2180
        %v2213 = vsub.f32 0.0, %v2181
        %v2214 = vsub.f32 0.0, %v2182
        %v2215 = vsub.f32 0.0, %v2183
        %v2216 = vsub.f32 0.0, %v2184
        %v2217 = vsub.f32 0.0, %v2185
        %v2218 = vsub.f32 0.0, %v2186
        %v2219 = vsub.f32 0.0, %v2187
        %v2220 = vsub.f32 0.0, %v2188
        %v2221 = vsub.f32 0.0, %v2189
        %v2222 = vsub.f32 0.0, %v2190
        %v2223 = vsub.f32 0.0, %v2191
        %v2224 = vsub.f32 0.0, %v2192
        %v2225 = vsub.f32 0.0, %v2193
        %v2226 = vsub.f32 0.0, %v2194
        %v2227 = vsub.f32 0.0, %v2195
        %v2228 = vsub.f32 0.0, %v2196
        %v2229 = vsub.f32 0.0, %v2197
        %v2230 = vsub.f32 0.0, %v2198
        %v2231 = vmul.f32 %v2199, 1.442695
        %v2232 = vpow.pop %v2231
        %v2233 = vmul.f32 %v2200, 1.442695
        %v2234 = vpow.pop %v2233
        %v2235 = vmul.f32 %v2201, 1.442695
        %v2236 = vpow.pop %v2235
        %v2237 = vmul.f32 %v2202, 1.442695
        %v2238 = vpow.pop %v2237
        %v2239 = vmul.f32 %v2203, 1.442695
        %v2240 = vpow.pop %v2239
        %v2241 = vmul.f32 %v2204, 1.442695
        %v2242 = vpow.pop %v2241
        %v2243 = vmul.f32 %v2205, 1.442695
        %v2244 = vpow.pop %v2243
        %v2245 = vmul.f32 %v2206, 1.442695
        %v2246 = vpow.pop %v2245
        %v2247 = vmul.f32 %v2207, 1.442695
        %v2248 = vpow.pop %v2247
        %v2249 = vmul.f32 %v2208, 1.442695
        %v2250 = vpow.pop %v2249
        %v2251 = vmul.f32 %v2209, 1.442695
        %v2252 = vpow.pop %v2251
        %v2253 = vmul.f32 %v2210, 1.442695
        %v2254 = vpow.pop %v2253
        %v2255 = vmul.f32 %v2211, 1.442695
        %v2256 = vpow.pop %v2255
        %v2257 = vmul.f32 %v2212, 1.442695
        %v2258 = vpow.pop %v2257
        %v2259 = vmul.f32 %v2213, 1.442695
        %v2260 = vpow.pop %v2259
        %v2261 = vmul.f32 %v2214, 1.442695
        %v2262 = vpow.pop %v2261
        %v2263 = vmul.f32 %v2215, 1.442695
        %v2264 = vpow.pop %v2263
        %v2265 = vmul.f32 %v2216, 1.442695
        %v2266 = vpow.pop %v2265
        %v2267 = vmul.f32 %v2217, 1.442695
        %v2268 = vpow.pop %v2267
        %v2269 = vmul.f32 %v2218, 1.442695
        %v2270 = vpow.pop %v2269
        %v2271 = vmul.f32 %v2219, 1.442695
        %v2272 = vpow.pop %v2271
        %v2273 = vmul.f32 %v2220, 1.442695
        %v2274 = vpow.pop %v2273
        %v2275 = vmul.f32 %v2221, 1.442695
        %v2276 = vpow.pop %v2275
        %v2277 = vmul.f32 %v2222, 1.442695
        %v2278 = vpow.pop %v2277
        %v2279 = vmul.f32 %v2223, 1.442695
        %v2280 = vpow.pop %v2279
        %v2281 = vmul.f32 %v2224, 1.442695
        %v2282 = vpow.pop %v2281
        %v2283 = vmul.f32 %v2225, 1.442695
        %v2284 = vpow.pop %v2283
        %v2285 = vmul.f32 %v2226, 1.442695
        %v2286 = vpow.pop %v2285
        %v2287 = vmul.f32 %v2227, 1.442695
        %v2288 = vpow.pop %v2287
        %v2289 = vmul.f32 %v2228, 1.442695
        %v2290 = vpow.pop %v2289
        %v2291 = vmul.f32 %v2229, 1.442695
        %v2292 = vpow.pop %v2291
        %v2293 = vmul.f32 %v2230, 1.442695
        %v2294 = vpow.pop %v2293
        %v2295 = vpack.c.bf16 %v2236, %v2232
        %v2296 = vpack.c.bf16 %v2238, %v2234
        %v2297 = vpack.c.bf16 %v2244, %v2240
        %v2298 = vpack.c.bf16 %v2246, %v2242
        %v2299 = vpack.c.bf16 %v2252, %v2248
        %v2300 = vpack.c.bf16 %v2254, %v2250
        %v2301 = vpack.c.bf16 %v2260, %v2256
        %v2302 = vpack.c.bf16 %v2262, %v2258
        %v2303 = vpack.c.bf16 %v2268, %v2264
        %v2304 = vpack.c.bf16 %v2270, %v2266
        %v2305 = vpack.c.bf16 %v2276, %v2272
        %v2306 = vpack.c.bf16 %v2278, %v2274
        %v2307 = vpack.c.bf16 %v2284, %v2280
        %v2308 = vpack.c.bf16 %v2286, %v2282
        %v2309 = vpack.c.bf16 %v2292, %v2288
        %v2310 = vpack.c.bf16 %v2294, %v2290
        %v2327 = vunpack.c.l.b16 %v2295
        %v2328 = vunpack.c.l.b16 %v2296
        %v2329 = vunpack.c.h.b16 %v2295
        %v2330 = vunpack.c.h.b16 %v2296
        %v2331 = vunpack.c.l.b16 %v2297
        %v2332 = vunpack.c.l.b16 %v2298
        %v2333 = vunpack.c.h.b16 %v2297
        %v2334 = vunpack.c.h.b16 %v2298
        %v2335 = vunpack.c.l.b16 %v2299
        %v2336 = vunpack.c.l.b16 %v2300
        %v2337 = vunpack.c.h.b16 %v2299
        %v2338 = vunpack.c.h.b16 %v2300
        %v2339 = vunpack.c.l.b16 %v2301
        %v2340 = vunpack.c.l.b16 %v2302
        %v2341 = vunpack.c.h.b16 %v2301
        %v2342 = vunpack.c.h.b16 %v2302
        %v2343 = vunpack.c.l.b16 %v2303
        %v2344 = vunpack.c.l.b16 %v2304
        %v2345 = vunpack.c.h.b16 %v2303
        %v2346 = vunpack.c.h.b16 %v2304
        %v2347 = vunpack.c.l.b16 %v2305
        %v2348 = vunpack.c.l.b16 %v2306
        %v2349 = vunpack.c.h.b16 %v2305
        %v2350 = vunpack.c.h.b16 %v2306
        %v2351 = vunpack.c.l.b16 %v2307
        %v2352 = vunpack.c.l.b16 %v2308
        %v2353 = vunpack.c.h.b16 %v2307
        %v2354 = vunpack.c.h.b16 %v2308
        %v2355 = vunpack.c.l.b16 %v2309
        %v2356 = vunpack.c.l.b16 %v2310
        %v2357 = vunpack.c.h.b16 %v2309
        %v2358 = vunpack.c.h.b16 %v2310
        %v2359 = vpack.c.b16 %v2328, %v2327
        %v2360 = vpack.c.b16 %v2330, %v2329
        %v2361 = vpack.c.b16 %v2332, %v2331
        %v2362 = vpack.c.b16 %v2334, %v2333
        %v2363 = vpack.c.b16 %v2336, %v2335
        %v2364 = vpack.c.b16 %v2338, %v2337
        %v2365 = vpack.c.b16 %v2340, %v2339
        %v2366 = vpack.c.b16 %v2342, %v2341
        %v2367 = vpack.c.b16 %v2344, %v2343
        %v2368 = vpack.c.b16 %v2346, %v2345
        %v2369 = vpack.c.b16 %v2348, %v2347
        %v2370 = vpack.c.b16 %v2350, %v2349
        %v2371 = vpack.c.b16 %v2352, %v2351
        %v2372 = vpack.c.b16 %v2354, %v2353
        %v2373 = vpack.c.b16 %v2356, %v2355
        %v2374 = vpack.c.b16 %v2358, %v2357
        %2391 = vst [vmem:[%s299] sm:$0xff] %v2359
        %2392 = vst [vmem:[%s299 + $0x8] sm:$0xff] %v2360
        %2393 = vst [vmem:[%s299 + $0x10] sm:$0xff] %v2361
        %2394 = vst [vmem:[%s299 + $0x18] sm:$0xff] %v2362
        %2395 = vst [vmem:[%s299 + $0x20] sm:$0xff] %v2363
        %2396 = vst [vmem:[%s299 + $0x28] sm:$0xff] %v2364
        %2397 = vst [vmem:[%s299 + $0x30] sm:$0xff] %v2365
        %2398 = vst [vmem:[%s299 + $0x38] sm:$0xff] %v2366
        %2399 = vst [vmem:[%s299 + $0x40] sm:$0xff] %v2367
        %2400 = vst [vmem:[%s299 + $0x48] sm:$0xff] %v2368
        %2401 = vst [vmem:[%s299 + $0x50] sm:$0xff] %v2369
        %2402 = vst [vmem:[%s299 + $0x58] sm:$0xff] %v2370
        %2403 = vst [vmem:[%s299 + $0x60] sm:$0xff] %v2371
        %2404 = vst [vmem:[%s299 + $0x68] sm:$0xff] %v2372
        %2405 = vst [vmem:[%s299 + $0x70] sm:$0xff] %v2373
        %2406 = vst [vmem:[%s299 + $0x78] sm:$0xff] %v2374
        %v2407 = vadd.f32 %v2232, %v2234
        %2408 = vadd.xlane.f32.xlu0 %v2407
        %v2409 = vpop.xlane.xlu0 %2408
        %v2410 = vadd.f32 %v2236, %v2238
        %2411 = vadd.xlane.f32.xlu0 %v2410
        %v2412 = vpop.xlane.xlu0 %2411
        %v2413 = vadd.f32 %v2240, %v2242
        %2414 = vadd.xlane.f32.xlu0 %v2413
        %v2415 = vpop.xlane.xlu0 %2414
        %v2416 = vadd.f32 %v2244, %v2246
        %2417 = vadd.xlane.f32.xlu0 %v2416
        %v2418 = vpop.xlane.xlu0 %2417
        %v2419 = vadd.f32 %v2248, %v2250
        %2420 = vadd.xlane.f32.xlu0 %v2419
        %v2421 = vpop.xlane.xlu0 %2420
        %v2422 = vadd.f32 %v2252, %v2254
        %2423 = vadd.xlane.f32.xlu0 %v2422
        %v2424 = vpop.xlane.xlu0 %2423
        %v2425 = vadd.f32 %v2256, %v2258
        %2426 = vadd.xlane.f32.xlu0 %v2425
        %v2427 = vpop.xlane.xlu0 %2426
        %v2428 = vadd.f32 %v2260, %v2262
        %2429 = vadd.xlane.f32.xlu0 %v2428
        %v2430 = vpop.xlane.xlu0 %2429
        %v2431 = vadd.f32 %v2264, %v2266
        %2432 = vadd.xlane.f32.xlu0 %v2431
        %v2433 = vpop.xlane.xlu0 %2432
        %v2434 = vadd.f32 %v2268, %v2270
        %2435 = vadd.xlane.f32.xlu0 %v2434
        %v2436 = vpop.xlane.xlu0 %2435
        %v2437 = vadd.f32 %v2272, %v2274
        %2438 = vadd.xlane.f32.xlu0 %v2437
        %v2439 = vpop.xlane.xlu0 %2438
        %v2440 = vadd.f32 %v2276, %v2278
        %2441 = vadd.xlane.f32.xlu0 %v2440
        %v2442 = vpop.xlane.xlu0 %2441
        %v2443 = vadd.f32 %v2280, %v2282
        %2444 = vadd.xlane.f32.xlu0 %v2443
        %v2445 = vpop.xlane.xlu0 %2444
        %v2446 = vadd.f32 %v2284, %v2286
        %2447 = vadd.xlane.f32.xlu0 %v2446
        %v2448 = vpop.xlane.xlu0 %2447
        %v2449 = vadd.f32 %v2288, %v2290
        %2450 = vadd.xlane.f32.xlu0 %v2449
        %v2451 = vpop.xlane.xlu0 %2450
        %v2452 = vadd.f32 %v2292, %v2294
        %2453 = vadd.xlane.f32.xlu0 %v2452
        %v2454 = vpop.xlane.xlu0 %2453
        %vm2455 = vcmask 7168
        %2456 = vst.msk [vmem:[%s305] sm:$0xff] %vm2455, %v2409
        %2457 = vst.msk [vmem:[%s305 + $0x8] sm:$0xff] %vm2455, %v2412
        %2458 = vst.msk [vmem:[%s305 + $0x10] sm:$0xff] %vm2455, %v2415
        %2459 = vst.msk [vmem:[%s305 + $0x18] sm:$0xff] %vm2455, %v2418
        %2460 = vst.msk [vmem:[%s305 + $0x20] sm:$0xff] %vm2455, %v2421
        %2461 = vst.msk [vmem:[%s305 + $0x28] sm:$0xff] %vm2455, %v2424
        %2462 = vst.msk [vmem:[%s305 + $0x30] sm:$0xff] %vm2455, %v2427
        %2463 = vst.msk [vmem:[%s305 + $0x38] sm:$0xff] %vm2455, %v2430
        %2464 = vst.msk [vmem:[%s305 + $0x40] sm:$0xff] %vm2455, %v2433
        %2465 = vst.msk [vmem:[%s305 + $0x48] sm:$0xff] %vm2455, %v2436
        %2466 = vst.msk [vmem:[%s305 + $0x50] sm:$0xff] %vm2455, %v2439
        %2467 = vst.msk [vmem:[%s305 + $0x58] sm:$0xff] %vm2455, %v2442
        %2468 = vst.msk [vmem:[%s305 + $0x60] sm:$0xff] %vm2455, %v2445
        %2469 = vst.msk [vmem:[%s305 + $0x68] sm:$0xff] %vm2455, %v2448
        %2470 = vst.msk [vmem:[%s305 + $0x70] sm:$0xff] %vm2455, %v2451
        %2471 = vst.msk [vmem:[%s305 + $0x78] sm:$0xff] %vm2455, %v2454
        %s2472 = smul.u32 16, %s19
        %p2473 = scmp.lt.s32.totalorder %s2472, 31
        %s2474 = scalar_select %p2473, %s2472, 31
        %s2475 = smul.addr %s2474, 2
        %s2476 = smul.addr %s2475, 4
        %s2477 = scalar_lea.vmem %s5, %s2476
        %s2478 = smul.u32 16, %s19
        %p2479 = scmp.lt.s32.totalorder %s2478, 31
        %s2480 = scalar_select %p2479, %s2478, 31
        %s2481 = smul.addr %s2480, 8
        %s2482 = scalar_lea.vmem %s6, %s2481
        // Predicated region
        $region45: #{supernet_forward.2} parent=39 // pred_check
          %p2483 = pneg %p152
        $region46: #{supernet_forward.2} parent=39 // pred_check_branch
          %2485 = sbr.rel (%p2483) target = $region48
        $region47: #{supernet_forward.2} parent=39 // pred_region
          %s2486 = smul.u32 16, %s19
        $region48: #{supernet_forward.2} parent=39 // pred_fallthru
          _
        // Predicated region
        $region49: #{supernet_forward.2} parent=39 // pred_check
          %p2487 = pneg %p178
        $region50: #{supernet_forward.2} parent=39 // pred_check_branch
          %2489 = sbr.rel (%p2487) target = $region52
        $region51: #{supernet_forward.2} parent=39 // pred_region
          %s2490 = smul.u32 16, %s19
        $region52: #{supernet_forward.2} parent=39 // pred_fallthru
          _
      $region40: #{supernet_forward.2} parent=5 // pred_fallthru
        _
      %p2491 = scmp.le.s32.totalorder 2, %s14
      // Predicated region
      $region53: #{supernet_forward.2} parent=5 // pred_check
        %p2492 = pneg %p2491
      $region54: #{supernet_forward.2} parent=5 // pred_check_branch
        %2494 = sbr.rel (%p2492) target = $region56
      $region55: #{supernet_forward.2} parent=5 // pred_region
        %s2495 = ssub.s32 %s14, 2
        // Predicated region
        $region57: #{supernet_forward.2} parent=55 // pred_check
          %p2496 = pneg %p158
        $region58: #{supernet_forward.2} parent=55 // pred_check_branch
          %2498 = sbr.rel (%p2496) target = $region60
        $region59: #{supernet_forward.2} parent=55 // pred_region
          %s2499 = smul.u32 16, %s20
          %p2500 = scmp.lt.s32.totalorder %s2499, 31
          %s2501 = scalar_select %p2500, %s2499, 31
          %s2502 = smul.addr %s2501, 2
          %s2503 = smul.addr %s2502, 4
          %s2504 = scalar_lea.vmem %s5, %s2503
        $region60: #{supernet_forward.2} parent=55 // pred_fallthru
          _
        // Predicated region
        $region61: #{supernet_forward.2} parent=55 // pred_check
          %p2505 = pneg %p184
        $region62: #{supernet_forward.2} parent=55 // pred_check_branch
          %2507 = sbr.rel (%p2505) target = $region64
        $region63: #{supernet_forward.2} parent=55 // pred_region
          %s2508 = smul.u32 16, %s20
          %p2509 = scmp.lt.s32.totalorder %s2508, 31
          %s2510 = scalar_select %p2509, %s2508, 31
          %s2511 = smul.addr %s2510, 8
          %s2512 = scalar_lea.vmem %s6, %s2511
        $region64: #{supernet_forward.2} parent=55 // pred_fallthru
          _
      $region56: #{supernet_forward.2} parent=5 // pred_fallthru
        _
    $region6: #{supernet_forward.2} parent=1 // loop_footer
      %s18 = sadd.s32 1, %s14
    $region7: #{supernet_forward.2} parent=1 // loop_footer_branch
      %13 = sbr.rel target = $region3
    $region8: #{supernet_forward.2} parent=1 // loop_exit
      _
    %2513 = vsyncpa [#allocation3], 1
    %s2514 = scalar_lea.sflag [#allocation3], 1
    %2515 = vsyncpa %s2514, 1

</llo_original>
